<compile_context>
chip_gen: v7x
topology: tpu7x:2x2x1
jax: 0.10.0
libtpu: 0.0.40
codegen_flags: <defaults>
</compile_context>

<pallas_src>
import jax
import jax.numpy as jnp
from jax.experimental import pallas as pl
from jax.experimental.pallas import tpu as pltpu


# ----------------------------- fused Pallas kernel --------------------------------

def _resblock_kernel(x_ref, w1_ref, w2_ref, b1_ref, b2_ref, o_ref,
                     xp_ref, t1p_ref):
    # x_ref  : (1, H, W, C)   unpadded NHWC input tile
    # w*_ref : (9*C, C)       im2col conv weights, BN scale already folded in
    # b*_ref : (1, C)         folded BatchNorm bias
    # o_ref  : (1, H, W, C)   output tile
    # xp_ref : (H+2, W+2, C)  VMEM scratch: zero-padded input
    # t1p_ref: (H+2, W+2, C)  VMEM scratch: zero-padded conv1 output
    H, W, C = o_ref.shape[1], o_ref.shape[2], o_ref.shape[3]

    x = x_ref[0]                                         # (H, W, C)

    zrow = jnp.zeros((1, W + 2, C), jnp.float32)
    zcol = jnp.zeros((H + 2, 1, C), jnp.float32)

    def pad_into(dst_ref, interior):
        # Zero the 1-pixel halo ring, then write the interior at offset (1, 1).
        dst_ref[0:1, :, :] = zrow
        dst_ref[H + 1:H + 2, :, :] = zrow
        dst_ref[:, 0:1, :] = zcol
        dst_ref[:, W + 1:W + 2, :] = zcol
        dst_ref[1:H + 1, 1:W + 1, :] = interior

    def conv3x3(src_ref, w_ref, b_ref):
        # im2col: concatenate the 9 shifted (H, W, C) views along the channel
        # (lane) axis and run ONE deep-K MXU dot (K = 9*C) -- no per-tap
        # accumulator read-modify-writes.
        src = src_ref[...]                               # (H+2, W+2, C)
        pieces = [src[kh:kh + H, kw:kw + W, :]
                  for kh in range(3) for kw in range(3)]
        patch = jnp.concatenate(pieces, axis=-1).reshape(H * W, 9 * C)
        return jnp.dot(patch, w_ref[...],
                       preferred_element_type=jnp.float32) + b_ref[...]

    # ---- conv1 -> folded BN1 -> ReLU ----------------------------------------------
    pad_into(xp_ref, x)
    t1 = jnp.maximum(conv3x3(xp_ref, w1_ref, b1_ref), 0.0).reshape(H, W, C)

    # ---- conv2 zero-pads conv1's OUTPUT (PyTorch padding=1 semantics) -------------
    pad_into(t1p_ref, t1)
    y = conv3x3(t1p_ref, w2_ref, b2_ref)                 # (H*W, C), folded BN2

    # ---- residual add + final ReLU -------------------------------------------------
    o_ref[...] = jnp.maximum(y + x.reshape(H * W, C), 0.0).reshape(1, H, W, C)


# ----------------------------- wrapper ---------------------------------------------

def _fold_bn_into_conv(w, bn, eps):
    """Fold eval-mode BatchNorm into the conv: returns ((9*Cin, Cout) weight, (1, Cout) bias)."""
    gamma, beta, mean, var = bn
    s = gamma * jax.lax.rsqrt(var + eps)                 # [Cout]
    b = beta - mean * s                                  # [Cout]
    w_eff = w * s[:, None, None, None]                   # scale output channels (OIHW)
    c_out, c_in = w.shape[0], w.shape[1]
    # (O, I, kh, kw) -> (kh, kw, I, O) -> (9*Cin, Cout); K ordered tap-major to
    # match the kernel's patch concatenation order.
    w_mat = jnp.transpose(w_eff, (2, 3, 1, 0)).reshape(9 * c_in, c_out)
    return w_mat.astype(jnp.float32), b.reshape(1, c_out).astype(jnp.float32)


def residual_block_forward_nhwc(x, w1, bn1, w2, bn2, eps=1e-5):
    """Fused OriginalResidualBlock forward (eval-mode BN), NHWC layout, no HBM pad/transpose.

    x  : [N, H, W, C]  f32
    w* : [C, C, 3, 3]  f32 (OIHW, PyTorch layout), bias-free
    bn*: tuple (gamma, beta, running_mean, running_var), each [C] f32
    """
    N, H, W, C = x.shape
    assert w1.shape == (C, C, 3, 3) and w2.shape == (C, C, 3, 3)
    assert C % 128 == 0, "channels on lanes: keep C a multiple of 128 for lane density"
    assert W % 8 == 0, "W multiple of 8 keeps in-kernel reshapes layout-preserving"

    w1m, b1 = _fold_bn_into_conv(w1, bn1, eps)
    w2m, b2 = _fold_bn_into_conv(w2, bn2, eps)

    # NOTE: the weight / bias BlockSpecs use a constant index_map, so their
    # blocks are fetched once and not re-DMA'd per grid step; for C >= 256 a
    # pipeline_mode=pl.Buffered(1) would additionally avoid double-buffering.
    return pl.pallas_call(
        _resblock_kernel,
        out_shape=jax.ShapeDtypeStruct((N, H, W, C), jnp.float32),
        grid=(N,),
        in_specs=[
            pl.BlockSpec((1, H, W, C), lambda n: (n, 0, 0, 0)),   # x
            pl.BlockSpec((9 * C, C), lambda n: (0, 0)),           # W1 (BN1 folded)
            pl.BlockSpec((9 * C, C), lambda n: (0, 0)),           # W2 (BN2 folded)
            pl.BlockSpec((1, C), lambda n: (0, 0)),               # b1
            pl.BlockSpec((1, C), lambda n: (0, 0)),               # b2
        ],
        out_specs=pl.BlockSpec((1, H, W, C), lambda n: (n, 0, 0, 0)),
        scratch_shapes=[
            pltpu.VMEM((H + 2, W + 2, C), jnp.float32),           # padded input
            pltpu.VMEM((H + 2, W + 2, C), jnp.float32),           # padded conv1 output
        ],
        compiler_params=pltpu.CompilerParams(
            dimension_semantics=("parallel",),
            vmem_limit_bytes=32 * 1024 * 1024,
        ),
    )(x, w1m, w2m, b1, b2)


def residual_block_forward(x, w1, bn1, w2, bn2, eps=1e-5):
    """NCHW (PyTorch layout) entry point; thin transpose wrapper around the NHWC core."""
    x_nhwc = jnp.transpose(x, (0, 2, 3, 1))
    out = residual_block_forward_nhwc(x_nhwc, w1, bn1, w2, bn2, eps)
    return jnp.transpose(out, (0, 3, 1, 2))


# ----------------------------- pure-JAX reference -----------------------------------

def residual_block_reference(x, w1, bn1, w2, bn2, eps=1e-5):
    g1, be1, m1, v1 = bn1
    g2, be2, m2, v2 = bn2
    s1 = g1 * jax.lax.rsqrt(v1 + eps)
    b1 = be1 - m1 * s1
    s2 = g2 * jax.lax.rsqrt(v2 + eps)
    b2 = be2 - m2 * s2
    dn = ('NCHW', 'OIHW', 'NCHW')
    y = jax.lax.conv_general_dilated(
        x, w1, (1, 1), ((1, 1), (1, 1)), dimension_numbers=dn,
        precision=jax.lax.Precision.HIGHEST)
    y = jnp.maximum(y * s1[None, :, None, None] + b1[None, :, None, None], 0.0)
    y = jax.lax.conv_general_dilated(
        y, w2, (1, 1), ((1, 1), (1, 1)), dimension_numbers=dn,
        precision=jax.lax.Precision.HIGHEST)
    y = y * s2[None, :, None, None] + b2[None, :, None, None]
    return jnp.maximum(y + x, 0.0)


# ----------------------------- demo --------------------------------------------------

if __name__ == "__main__":
    key = jax.random.PRNGKey(0)
    keys = jax.random.split(key, 11)
    N, C, H, W = 2, 128, 16, 16           # in_channels == out_channels, stride = 1

    x = jax.random.normal(keys[0], (N, C, H, W), dtype=jnp.float32)
    w_scale = (2.0 / (9 * C)) ** 0.5
    w1 = w_scale * jax.random.normal(keys[1], (C, C, 3, 3), dtype=jnp.float32)
    w2 = w_scale * jax.random.normal(keys[2], (C, C, 3, 3), dtype=jnp.float32)

    bn1 = (1.0 + 0.1 * jax.random.normal(keys[3], (C,), dtype=jnp.float32),   # gamma
           0.1 * jax.random.normal(keys[4], (C,), dtype=jnp.float32),          # beta
           0.1 * jax.random.normal(keys[5], (C,), dtype=jnp.float32),          # running_mean
           0.5 + jax.random.uniform(keys[6], (C,), dtype=jnp.float32))         # running_var
    bn2 = (1.0 + 0.1 * jax.random.normal(keys[7], (C,), dtype=jnp.float32),
           0.1 * jax.random.normal(keys[8], (C,), dtype=jnp.float32),
           0.1 * jax.random.normal(keys[9], (C,), dtype=jnp.float32),
           0.5 + jax.random.uniform(keys[10], (C,), dtype=jnp.float32))

    fwd = jax.jit(residual_block_forward)
    out = jax.block_until_ready(fwd(x, w1, bn1, w2, bn2))
    assert out.shape == (N, C, H, W)

    ref = jax.block_until_ready(residual_block_reference(x, w1, bn1, w2, bn2))
    max_err = float(jnp.max(jnp.abs(out - ref)))
    assert max_err < 1e-2, f"mismatch vs reference: {max_err}"
    print("KERNEL_OK")
</pallas_src>

<mosaic_0001>
module attributes {stable_mosaic.version = 11 : i64} {
  func.func @_resblock_kernel(%arg0: i32, %arg1: memref<1x16x16x128xf32, #tpu.memory_space<vmem>>, %arg2: memref<1152x128xf32, #tpu.memory_space<vmem>>, %arg3: memref<1152x128xf32, #tpu.memory_space<vmem>>, %arg4: memref<1x128xf32, #tpu.memory_space<vmem>>, %arg5: memref<1x128xf32, #tpu.memory_space<vmem>>, %arg6: memref<1x16x16x128xf32, #tpu.memory_space<vmem>>, %arg7: memref<18x18x128xf32, #tpu.memory_space<vmem>>, %arg8: memref<18x18x128xf32, #tpu.memory_space<vmem>>) attributes {dimension_semantics = [#tpu.dimension_semantics<parallel>], iteration_bounds = array<i64: 2>, scalar_prefetch = 0 : i64, scratch_operands = 2 : i64, tpu.core_type = #tpu.core_type<tc>, window_params = [{transform_indices = @transform_0, window_bounds = array<i64: 1, 16, 16, 128>}, {pipeline_mode = #tpu.pipeline_mode<synchronous>, transform_indices = @transform_1, window_bounds = array<i64: 1152, 128>}, {pipeline_mode = #tpu.pipeline_mode<synchronous>, transform_indices = @transform_2, window_bounds = array<i64: 1152, 128>}, {pipeline_mode = #tpu.pipeline_mode<synchronous>, transform_indices = @transform_3, window_bounds = array<i64: 1, 128>}, {pipeline_mode = #tpu.pipeline_mode<synchronous>, transform_indices = @transform_4, window_bounds = array<i64: 1, 128>}, {transform_indices = @transform_5, window_bounds = array<i64: 1, 16, 16, 128>}]} {
    %c0 = arith.constant 0 : index
    %c0_0 = arith.constant 0 : index
    %c0_1 = arith.constant 0 : index
    %c0_2 = arith.constant 0 : index
    %0 = vector.load %arg1[%c0, %c0_0, %c0_1, %c0_2] : memref<1x16x16x128xf32, #tpu.memory_space<vmem>>, vector<1x16x16x128xf32>
    %1 = vector.shape_cast %0 : vector<1x16x16x128xf32> to vector<16x16x128xf32>
    %cst = arith.constant 0.000000e+00 : f32
    %2 = vector.broadcast %cst : f32 to vector<1x18x128xf32>
    %cst_3 = arith.constant 0.000000e+00 : f32
    %3 = vector.broadcast %cst_3 : f32 to vector<18x1x128xf32>
    %c0_4 = arith.constant 0 : index
    %c0_5 = arith.constant 0 : index
    %c0_6 = arith.constant 0 : index
    %4 = vector.load %arg7[%c0_4, %c0_5, %c0_6] : memref<18x18x128xf32, #tpu.memory_space<vmem>>, vector<1x18x128xf32>
    tpu.vector_store %arg7[%c0_4, %c0_5, %c0_6], %2 {strides = array<i32>} : memref<18x18x128xf32, #tpu.memory_space<vmem>>, vector<1x18x128xf32>,
    %c17 = arith.constant 17 : index
    %c0_7 = arith.constant 0 : index
    %c0_8 = arith.constant 0 : index
    %5 = vector.load %arg7[%c17, %c0_7, %c0_8] : memref<18x18x128xf32, #tpu.memory_space<vmem>>, vector<1x18x128xf32>
    tpu.vector_store %arg7[%c17, %c0_7, %c0_8], %2 {strides = array<i32>} : memref<18x18x128xf32, #tpu.memory_space<vmem>>, vector<1x18x128xf32>,
    %c0_9 = arith.constant 0 : index
    %c0_10 = arith.constant 0 : index
    %c0_11 = arith.constant 0 : index
    %6 = vector.load %arg7[%c0_9, %c0_10, %c0_11] : memref<18x18x128xf32, #tpu.memory_space<vmem>>, vector<18x1x128xf32>
    tpu.vector_store %arg7[%c0_9, %c0_10, %c0_11], %3 {strides = array<i32>} : memref<18x18x128xf32, #tpu.memory_space<vmem>>, vector<18x1x128xf32>,
    %c0_12 = arith.constant 0 : index
    %c17_13 = arith.constant 17 : index
    %c0_14 = arith.constant 0 : index
    %7 = vector.load %arg7[%c0_12, %c17_13, %c0_14] : memref<18x18x128xf32, #tpu.memory_space<vmem>>, vector<18x1x128xf32>
    tpu.vector_store %arg7[%c0_12, %c17_13, %c0_14], %3 {strides = array<i32>} : memref<18x18x128xf32, #tpu.memory_space<vmem>>, vector<18x1x128xf32>,
    %c1 = arith.constant 1 : index
    %c1_15 = arith.constant 1 : index
    %c0_16 = arith.constant 0 : index
    %8 = vector.load %arg7[%c1, %c1_15, %c0_16] : memref<18x18x128xf32, #tpu.memory_space<vmem>>, vector<16x16x128xf32>
    tpu.vector_store %arg7[%c1, %c1_15, %c0_16], %1 {strides = array<i32>} : memref<18x18x128xf32, #tpu.memory_space<vmem>>, vector<16x16x128xf32>,
    %c0_17 = arith.constant 0 : index
    %c0_18 = arith.constant 0 : index
    %c0_19 = arith.constant 0 : index
    %9 = vector.load %arg7[%c0_17, %c0_18, %c0_19] : memref<18x18x128xf32, #tpu.memory_space<vmem>>, vector<18x18x128xf32>
    %10 = vector.extract_strided_slice %9 {offsets = [0, 0, 0], sizes = [16, 16, 128], strides = [1, 1, 1]} : vector<18x18x128xf32> to vector<16x16x128xf32>
    %11 = vector.extract_strided_slice %9 {offsets = [0, 1, 0], sizes = [16, 16, 128], strides = [1, 1, 1]} : vector<18x18x128xf32> to vector<16x16x128xf32>
    %12 = vector.extract_strided_slice %9 {offsets = [0, 2, 0], sizes = [16, 16, 128], strides = [1, 1, 1]} : vector<18x18x128xf32> to vector<16x16x128xf32>
    %13 = vector.extract_strided_slice %9 {offsets = [1, 0, 0], sizes = [16, 16, 128], strides = [1, 1, 1]} : vector<18x18x128xf32> to vector<16x16x128xf32>
    %14 = vector.extract_strided_slice %9 {offsets = [1, 1, 0], sizes = [16, 16, 128], strides = [1, 1, 1]} : vector<18x18x128xf32> to vector<16x16x128xf32>
    %15 = vector.extract_strided_slice %9 {offsets = [1, 2, 0], sizes = [16, 16, 128], strides = [1, 1, 1]} : vector<18x18x128xf32> to vector<16x16x128xf32>
    %16 = vector.extract_strided_slice %9 {offsets = [2, 0, 0], sizes = [16, 16, 128], strides = [1, 1, 1]} : vector<18x18x128xf32> to vector<16x16x128xf32>
    %17 = vector.extract_strided_slice %9 {offsets = [2, 1, 0], sizes = [16, 16, 128], strides = [1, 1, 1]} : vector<18x18x128xf32> to vector<16x16x128xf32>
    %18 = vector.extract_strided_slice %9 {offsets = [2, 2, 0], sizes = [16, 16, 128], strides = [1, 1, 1]} : vector<18x18x128xf32> to vector<16x16x128xf32>
    %19 = tpu.concatenate %10, %11, %12, %13, %14, %15, %16, %17, %18 in 2 : vector<16x16x128xf32>, vector<16x16x128xf32>, vector<16x16x128xf32>, vector<16x16x128xf32>, vector<16x16x128xf32>, vector<16x16x128xf32>, vector<16x16x128xf32>, vector<16x16x128xf32>, vector<16x16x128xf32> -> vector<16x16x1152xf32>
    %20 = vector.shape_cast %19 : vector<16x16x1152xf32> to vector<256x1152xf32>
    %c0_20 = arith.constant 0 : index
    %c0_21 = arith.constant 0 : index
    %21 = vector.load %arg2[%c0_20, %c0_21] : memref<1152x128xf32, #tpu.memory_space<vmem>>, vector<1152x128xf32>
    %cst_22 = arith.constant dense<0.000000e+00> : vector<256x128xf32>
    %22 = tpu.matmul %20, %21, %cst_22 {dimension_numbers = #tpu.dot_dimension_numbers<[1], [0], [0], [1], [0, 0, 1, 1], [], []>} : vector<256x1152xf32>, vector<1152x128xf32>, vector<256x128xf32> -> vector<256x128xf32>
    %c0_23 = arith.constant 0 : index
    %c0_24 = arith.constant 0 : index
    %23 = vector.load %arg4[%c0_23, %c0_24] : memref<1x128xf32, #tpu.memory_space<vmem>>, vector<1x128xf32>
    %24 = vector.broadcast %23 : vector<1x128xf32> to vector<256x128xf32>
    %25 = arith.addf %22, %24 : vector<256x128xf32>
    %cst_25 = arith.constant 0.000000e+00 : f32
    %26 = vector.broadcast %cst_25 : f32 to vector<256x128xf32>
    %27 = arith.maximumf %25, %26 : vector<256x128xf32>
    %28 = vector.shape_cast %27 : vector<256x128xf32> to vector<16x16x128xf32>
    %c0_26 = arith.constant 0 : index
    %c0_27 = arith.constant 0 : index
    %c0_28 = arith.constant 0 : index
    %29 = vector.load %arg8[%c0_26, %c0_27, %c0_28] : memref<18x18x128xf32, #tpu.memory_space<vmem>>, vector<1x18x128xf32>
    tpu.vector_store %arg8[%c0_26, %c0_27, %c0_28], %2 {strides = array<i32>} : memref<18x18x128xf32, #tpu.memory_space<vmem>>, vector<1x18x128xf32>,
    %c17_29 = arith.constant 17 : index
    %c0_30 = arith.constant 0 : index
    %c0_31 = arith.constant 0 : index
    %30 = vector.load %arg8[%c17_29, %c0_30, %c0_31] : memref<18x18x128xf32, #tpu.memory_space<vmem>>, vector<1x18x128xf32>
    tpu.vector_store %arg8[%c17_29, %c0_30, %c0_31], %2 {strides = array<i32>} : memref<18x18x128xf32, #tpu.memory_space<vmem>>, vector<1x18x128xf32>,
    %c0_32 = arith.constant 0 : index
    %c0_33 = arith.constant 0 : index
    %c0_34 = arith.constant 0 : index
    %31 = vector.load %arg8[%c0_32, %c0_33, %c0_34] : memref<18x18x128xf32, #tpu.memory_space<vmem>>, vector<18x1x128xf32>
    tpu.vector_store %arg8[%c0_32, %c0_33, %c0_34], %3 {strides = array<i32>} : memref<18x18x128xf32, #tpu.memory_space<vmem>>, vector<18x1x128xf32>,
    %c0_35 = arith.constant 0 : index
    %c17_36 = arith.constant 17 : index
    %c0_37 = arith.constant 0 : index
    %32 = vector.load %arg8[%c0_35, %c17_36, %c0_37] : memref<18x18x128xf32, #tpu.memory_space<vmem>>, vector<18x1x128xf32>
    tpu.vector_store %arg8[%c0_35, %c17_36, %c0_37], %3 {strides = array<i32>} : memref<18x18x128xf32, #tpu.memory_space<vmem>>, vector<18x1x128xf32>,
    %c1_38 = arith.constant 1 : index
    %c1_39 = arith.constant 1 : index
    %c0_40 = arith.constant 0 : index
    %33 = vector.load %arg8[%c1_38, %c1_39, %c0_40] : memref<18x18x128xf32, #tpu.memory_space<vmem>>, vector<16x16x128xf32>
    tpu.vector_store %arg8[%c1_38, %c1_39, %c0_40], %28 {strides = array<i32>} : memref<18x18x128xf32, #tpu.memory_space<vmem>>, vector<16x16x128xf32>,
    %c0_41 = arith.constant 0 : index
    %c0_42 = arith.constant 0 : index
    %c0_43 = arith.constant 0 : index
    %34 = vector.load %arg8[%c0_41, %c0_42, %c0_43] : memref<18x18x128xf32, #tpu.memory_space<vmem>>, vector<18x18x128xf32>
    %35 = vector.extract_strided_slice %34 {offsets = [0, 0, 0], sizes = [16, 16, 128], strides = [1, 1, 1]} : vector<18x18x128xf32> to vector<16x16x128xf32>
    %36 = vector.extract_strided_slice %34 {offsets = [0, 1, 0], sizes = [16, 16, 128], strides = [1, 1, 1]} : vector<18x18x128xf32> to vector<16x16x128xf32>
    %37 = vector.extract_strided_slice %34 {offsets = [0, 2, 0], sizes = [16, 16, 128], strides = [1, 1, 1]} : vector<18x18x128xf32> to vector<16x16x128xf32>
    %38 = vector.extract_strided_slice %34 {offsets = [1, 0, 0], sizes = [16, 16, 128], strides = [1, 1, 1]} : vector<18x18x128xf32> to vector<16x16x128xf32>
    %39 = vector.extract_strided_slice %34 {offsets = [1, 1, 0], sizes = [16, 16, 128], strides = [1, 1, 1]} : vector<18x18x128xf32> to vector<16x16x128xf32>
    %40 = vector.extract_strided_slice %34 {offsets = [1, 2, 0], sizes = [16, 16, 128], strides = [1, 1, 1]} : vector<18x18x128xf32> to vector<16x16x128xf32>
    %41 = vector.extract_strided_slice %34 {offsets = [2, 0, 0], sizes = [16, 16, 128], strides = [1, 1, 1]} : vector<18x18x128xf32> to vector<16x16x128xf32>
    %42 = vector.extract_strided_slice %34 {offsets = [2, 1, 0], sizes = [16, 16, 128], strides = [1, 1, 1]} : vector<18x18x128xf32> to vector<16x16x128xf32>
    %43 = vector.extract_strided_slice %34 {offsets = [2, 2, 0], sizes = [16, 16, 128], strides = [1, 1, 1]} : vector<18x18x128xf32> to vector<16x16x128xf32>
    %44 = tpu.concatenate %35, %36, %37, %38, %39, %40, %41, %42, %43 in 2 : vector<16x16x128xf32>, vector<16x16x128xf32>, vector<16x16x128xf32>, vector<16x16x128xf32>, vector<16x16x128xf32>, vector<16x16x128xf32>, vector<16x16x128xf32>, vector<16x16x128xf32>, vector<16x16x128xf32> -> vector<16x16x1152xf32>
    %45 = vector.shape_cast %44 : vector<16x16x1152xf32> to vector<256x1152xf32>
    %c0_44 = arith.constant 0 : index
    %c0_45 = arith.constant 0 : index
    %46 = vector.load %arg3[%c0_44, %c0_45] : memref<1152x128xf32, #tpu.memory_space<vmem>>, vector<1152x128xf32>
    %cst_46 = arith.constant dense<0.000000e+00> : vector<256x128xf32>
    %47 = tpu.matmul %45, %46, %cst_46 {dimension_numbers = #tpu.dot_dimension_numbers<[1], [0], [0], [1], [0, 0, 1, 1], [], []>} : vector<256x1152xf32>, vector<1152x128xf32>, vector<256x128xf32> -> vector<256x128xf32>
    %c0_47 = arith.constant 0 : index
    %c0_48 = arith.constant 0 : index
    %48 = vector.load %arg5[%c0_47, %c0_48] : memref<1x128xf32, #tpu.memory_space<vmem>>, vector<1x128xf32>
    %49 = vector.broadcast %48 : vector<1x128xf32> to vector<256x128xf32>
    %50 = arith.addf %47, %49 : vector<256x128xf32>
    %51 = vector.shape_cast %1 : vector<16x16x128xf32> to vector<256x128xf32>
    %52 = arith.addf %50, %51 : vector<256x128xf32>
    %cst_49 = arith.constant 0.000000e+00 : f32
    %53 = vector.broadcast %cst_49 : f32 to vector<256x128xf32>
    %54 = arith.maximumf %52, %53 : vector<256x128xf32>
    %55 = vector.shape_cast %54 : vector<256x128xf32> to vector<1x16x16x128xf32>
    %c0_50 = arith.constant 0 : index
    %c0_51 = arith.constant 0 : index
    %c0_52 = arith.constant 0 : index
    %c0_53 = arith.constant 0 : index
    %56 = vector.load %arg6[%c0_50, %c0_51, %c0_52, %c0_53] : memref<1x16x16x128xf32, #tpu.memory_space<vmem>>, vector<1x16x16x128xf32>
    tpu.vector_store %arg6[%c0_50, %c0_51, %c0_52, %c0_53], %55 {strides = array<i32>} : memref<1x16x16x128xf32, #tpu.memory_space<vmem>>, vector<1x16x16x128xf32>,
    return
  }
  func.func @transform_0(%arg0: i32) -> (i32, i32, i32, i32) {
    %c0_i32 = arith.constant 0 : i32
    %c0_i32_0 = arith.constant 0 : i32
    %c0_i32_1 = arith.constant 0 : i32
    %c0_i32_2 = arith.constant 0 : i32
    return %arg0, %c0_i32, %c0_i32_0, %c0_i32_1 : i32, i32, i32, i32
  }
  func.func @transform_1(%arg0: i32) -> (i32, i32) {
    %c0_i32 = arith.constant 0 : i32
    %c0_i32_0 = arith.constant 0 : i32
    %c0_i32_1 = arith.constant 0 : i32
    return %c0_i32, %c0_i32_0 : i32, i32
  }
  func.func @transform_2(%arg0: i32) -> (i32, i32) {
    %c0_i32 = arith.constant 0 : i32
    %c0_i32_0 = arith.constant 0 : i32
    %c0_i32_1 = arith.constant 0 : i32
    return %c0_i32, %c0_i32_0 : i32, i32
  }
  func.func @transform_3(%arg0: i32) -> (i32, i32) {
    %c0_i32 = arith.constant 0 : i32
    %c0_i32_0 = arith.constant 0 : i32
    %c0_i32_1 = arith.constant 0 : i32
    return %c0_i32, %c0_i32_0 : i32, i32
  }
  func.func @transform_4(%arg0: i32) -> (i32, i32) {
    %c0_i32 = arith.constant 0 : i32
    %c0_i32_0 = arith.constant 0 : i32
    %c0_i32_1 = arith.constant 0 : i32
    return %c0_i32, %c0_i32_0 : i32, i32
  }
  func.func @transform_5(%arg0: i32) -> (i32, i32, i32, i32) {
    %c0_i32 = arith.constant 0 : i32
    %c0_i32_0 = arith.constant 0 : i32
    %c0_i32_1 = arith.constant 0 : i32
    %c0_i32_2 = arith.constant 0 : i32
    return %arg0, %c0_i32, %c0_i32_0, %c0_i32_1 : i32, i32, i32, i32
  }
}

</mosaic_0001>

<llo_original>
// kernel: residual_block_forward.1
$region0: #{residual_block_forward.1}
  #allocation0 [shape = 'u32[]', space=smem, size = 0x4, offset = 0x4, fixed_abs, tag = 'smem constant byte address 0x4 - core index']
  #allocation1 [shape = 'u32[144,128]{1,0:T(1,128)}', space=vmem, size = 0x12000, scoped, tag = 'internal scratch']
  #allocation2 [shape = 'f32[18,18,128]{2,1,0:T(8,128)}', space=vmem, size = 0x36000, scoped, tag = 'scratch operand']
  #allocation3 [shape = 'f32[18,18,128]{2,1,0:T(8,128)}', space=vmem, size = 0x36000, scoped, tag = 'scratch operand']
  %s0 = inlined_call_operand.vmem [shape: f32[2,16,16,128], index: 0, kind: input, shape index: {}]
  %s1 = inlined_call_operand.vmem [shape: f32[1152,128], index: 1, kind: input, shape index: {}]
  %s2 = inlined_call_operand.vmem [shape: f32[1152,128], index: 2, kind: input, shape index: {}]
  %s3 = inlined_call_operand.vmem [shape: f32[1,128], index: 3, kind: input, shape index: {}]
  %s4 = inlined_call_operand.vmem [shape: f32[1,128], index: 4, kind: input, shape index: {}]
  %s5 = inlined_call_operand.hbm [shape: f32[2,16,16,128], index: 5, kind: output, shape index: {}]
  %s6 = sld [smem:[#allocation0]]
  $region53: #{residual_block_forward.1} parent=0
    _
  %s8 = ssub.s32 1, %s6
  %s9 = scalar_select 0, %s8, %s6
  $region1: #{residual_block_forward.1} parent=0
    #allocation4 [shape = 'u8[262144]{0}', space=vmem, size = 0x40000, scoped, tag = 'output window, operand 0']
    #allocation5 [shape = 's32[2]{0}', space=sflag, size = 0x8, scoped, tag = 'scoped memory for residual_block_forward.1']
    %10 = vsyncpa [#allocation5], 0
    %s11 = scalar_lea.sflag [#allocation5], 1
    %12 = vsyncpa %s11, 0
    loop: start=0, step=1, limit=4
    $region2: #{residual_block_forward.1} parent=1 // loop_pre_header
      _
    $region3: #{residual_block_forward.1} parent=1 // loop_header
      %s14 = sphi 0, %s18
      %p15 = scmp.ge.s32.totalorder %s14, 4
      %s24 = sphi 0, %s26
      %s27 = sphi 0, %s24
      %s28 = sphi 0, %s27
      %s44 = sphi 0, %s28
      %s48 = sphi 0, %s48
      %s50 = sphi 0, %s48
      %s51 = sphi 0, %s50
      %s65 = sphi 0, %s51
      %s69 = sphi 0, %s69
      %s71 = sphi 0, %s69
      %s72 = sphi 0, %s71
      %s86 = sphi 0, %s72
      %s90 = sphi 0, %s90
      %s92 = sphi 0, %s90
      %s93 = sphi 0, %s92
      %s107 = sphi 0, %s93
      %s111 = sphi 0, %s111
      %s113 = sphi 0, %s111
      %s114 = sphi 0, %s113
      %s128 = sphi 0, %s114
      %s134 = sphi 0, %s136
      %s137 = sphi 0, %s134
      %s138 = sphi 0, %s137
      %s154 = sphi 0, %s138
    $region4: #{residual_block_forward.1} parent=1 // loop_header_branch
      %17 = sbr.rel (%p15) target = $region8
    $region5: #{residual_block_forward.1} parent=1 // loop_body
      %s19 = ssub.s32 %s14, 1
      %s20 = ssub.s32 %s14, 2
      %s21 = sadd.s32 %s14, 1
      %s22 = ssub.s32 %s14, %s21
      %p23 = scmp.eq.s32.totalorder %s22, 0
      %s25 = sadd.s32 %s24, 1
      %s26 = scalar_select %p23, %s24, %s25
      %p29 = pneg %p23
      %p30 = scmp.eq.s32.totalorder %s14, 1
      %p31 = por %p29, %p30
      %p32 = scmp.ne.s32.totalorder %s24, %s27
      %p33 = scmp.eq.s32.totalorder %s14, 0
      %p34 = por %p32, %p33
      %p35 = scmp.ne.s32.totalorder %s24, %s27
      %p36 = scmp.eq.s32.totalorder %s19, 1
      %p37 = por %p35, %p36
      %p38 = scmp.ne.s32.totalorder %s27, %s28
      %p39 = scmp.eq.s32.totalorder %s19, 0
      %p40 = por %p38, %p39
      %p41 = scmp.ne.s32.totalorder %s27, %s28
      %p42 = scmp.eq.s32.totalorder %s20, 1
      %p43 = por %p41, %p42
      %p45 = scmp.ne.s32.totalorder %s28, %s44
      %p46 = scmp.eq.s32.totalorder %s20, 0
      %p47 = por %p45, %p46
      %s49 = sadd.s32 %s48, 1
      %p52 = scmp.eq.s32.totalorder %s14, 1
      %p53 = scmp.ne.s32.totalorder %s48, %s50
      %p54 = scmp.eq.s32.totalorder %s14, 0
      %p55 = por %p53, %p54
      %p56 = scmp.ne.s32.totalorder %s48, %s50
      %p57 = scmp.eq.s32.totalorder %s19, 1
      %p58 = por %p56, %p57
      %p59 = scmp.ne.s32.totalorder %s50, %s51
      %p60 = scmp.eq.s32.totalorder %s19, 0
      %p61 = por %p59, %p60
      %p62 = scmp.ne.s32.totalorder %s50, %s51
      %p63 = scmp.eq.s32.totalorder %s20, 1
      %p64 = por %p62, %p63
      %p66 = scmp.ne.s32.totalorder %s51, %s65
      %p67 = scmp.eq.s32.totalorder %s20, 0
      %p68 = por %p66, %p67
      %s70 = sadd.s32 %s69, 1
      %p73 = scmp.eq.s32.totalorder %s14, 1
      %p74 = scmp.ne.s32.totalorder %s69, %s71
      %p75 = scmp.eq.s32.totalorder %s14, 0
      %p76 = por %p74, %p75
      %p77 = scmp.ne.s32.totalorder %s69, %s71
      %p78 = scmp.eq.s32.totalorder %s19, 1
      %p79 = por %p77, %p78
      %p80 = scmp.ne.s32.totalorder %s71, %s72
      %p81 = scmp.eq.s32.totalorder %s19, 0
      %p82 = por %p80, %p81
      %p83 = scmp.ne.s32.totalorder %s71, %s72
      %p84 = scmp.eq.s32.totalorder %s20, 1
      %p85 = por %p83, %p84
      %p87 = scmp.ne.s32.totalorder %s72, %s86
      %p88 = scmp.eq.s32.totalorder %s20, 0
      %p89 = por %p87, %p88
      %s91 = sadd.s32 %s90, 1
      %p94 = scmp.eq.s32.totalorder %s14, 1
      %p95 = scmp.ne.s32.totalorder %s90, %s92
      %p96 = scmp.eq.s32.totalorder %s14, 0
      %p97 = por %p95, %p96
      %p98 = scmp.ne.s32.totalorder %s90, %s92
      %p99 = scmp.eq.s32.totalorder %s19, 1
      %p100 = por %p98, %p99
      %p101 = scmp.ne.s32.totalorder %s92, %s93
      %p102 = scmp.eq.s32.totalorder %s19, 0
      %p103 = por %p101, %p102
      %p104 = scmp.ne.s32.totalorder %s92, %s93
      %p105 = scmp.eq.s32.totalorder %s20, 1
      %p106 = por %p104, %p105
      %p108 = scmp.ne.s32.totalorder %s93, %s107
      %p109 = scmp.eq.s32.totalorder %s20, 0
      %p110 = por %p108, %p109
      %s112 = sadd.s32 %s111, 1
      %p115 = scmp.eq.s32.totalorder %s14, 1
      %p116 = scmp.ne.s32.totalorder %s111, %s113
      %p117 = scmp.eq.s32.totalorder %s14, 0
      %p118 = por %p116, %p117
      %p119 = scmp.ne.s32.totalorder %s111, %s113
      %p120 = scmp.eq.s32.totalorder %s19, 1
      %p121 = por %p119, %p120
      %p122 = scmp.ne.s32.totalorder %s113, %s114
      %p123 = scmp.eq.s32.totalorder %s19, 0
      %p124 = por %p122, %p123
      %p125 = scmp.ne.s32.totalorder %s113, %s114
      %p126 = scmp.eq.s32.totalorder %s20, 1
      %p127 = por %p125, %p126
      %p129 = scmp.ne.s32.totalorder %s114, %s128
      %p130 = scmp.eq.s32.totalorder %s20, 0
      %p131 = por %p129, %p130
      %s132 = ssub.s32 %s14, %s21
      %p133 = scmp.eq.s32.totalorder %s132, 0
      %s135 = sadd.s32 %s134, 1
      %s136 = scalar_select %p133, %s134, %s135
      %p139 = pneg %p133
      %p140 = scmp.eq.s32.totalorder %s14, 1
      %p141 = por %p139, %p140
      %p142 = scmp.ne.s32.totalorder %s134, %s137
      %p143 = scmp.eq.s32.totalorder %s14, 0
      %p144 = por %p142, %p143
      %p145 = scmp.ne.s32.totalorder %s134, %s137
      %p146 = scmp.eq.s32.totalorder %s19, 1
      %p147 = por %p145, %p146
      %p148 = scmp.ne.s32.totalorder %s137, %s138
      %p149 = scmp.eq.s32.totalorder %s19, 0
      %p150 = por %p148, %p149
      %p151 = scmp.ne.s32.totalorder %s137, %s138
      %p152 = scmp.eq.s32.totalorder %s20, 1
      %p153 = por %p151, %p152
      %p155 = scmp.ne.s32.totalorder %s138, %s154
      %p156 = scmp.eq.s32.totalorder %s20, 0
      %p157 = por %p155, %p156
      %p158 = scmp.le.s32.totalorder 1, %s14
      %p159 = scmp.lt.s32.totalorder %s14, 3
      %p160 = pnand %p158, %p159
      %p161 = pneg %p160
      // Predicated region
      $region9: #{residual_block_forward.1} parent=5 // pred_check
        _
      $region10: #{residual_block_forward.1} parent=5 // pred_check_branch
        %163 = sbr.rel (%p160) target = $region12
      $region11: #{residual_block_forward.1} parent=5 // pred_region
        %s164 = ssub.s32 %s14, 1
        // Predicated region
        $region13: #{residual_block_forward.1} parent=11 // pred_check
          %p165 = pneg %p61
        $region14: #{residual_block_forward.1} parent=11 // pred_check_branch
          %167 = sbr.rel (%p165) target = $region16
        $region15: #{residual_block_forward.1} parent=11 // pred_region
          _
        $region16: #{residual_block_forward.1} parent=11 // pred_fallthru
          _
        // Predicated region
        $region17: #{residual_block_forward.1} parent=11 // pred_check
          %p168 = pneg %p82
        $region18: #{residual_block_forward.1} parent=11 // pred_check_branch
          %170 = sbr.rel (%p168) target = $region20
        $region19: #{residual_block_forward.1} parent=11 // pred_region
          _
        $region20: #{residual_block_forward.1} parent=11 // pred_fallthru
          _
        // Predicated region
        $region21: #{residual_block_forward.1} parent=11 // pred_check
          %p171 = pneg %p103
        $region22: #{residual_block_forward.1} parent=11 // pred_check_branch
          %173 = sbr.rel (%p171) target = $region24
        $region23: #{residual_block_forward.1} parent=11 // pred_region
          _
        $region24: #{residual_block_forward.1} parent=11 // pred_fallthru
          _
        // Predicated region
        $region25: #{residual_block_forward.1} parent=11 // pred_check
          %p174 = pneg %p124
        $region26: #{residual_block_forward.1} parent=11 // pred_check_branch
          %176 = sbr.rel (%p174) target = $region28
        $region27: #{residual_block_forward.1} parent=11 // pred_region
          _
        $region28: #{residual_block_forward.1} parent=11 // pred_fallthru
          _
      $region12: #{residual_block_forward.1} parent=5 // pred_fallthru
        _
      %p177 = scmp.lt.s32.totalorder %s14, 2
      // Predicated region
      $region29: #{residual_block_forward.1} parent=5 // pred_check
        %p178 = pneg %p177
      $region30: #{residual_block_forward.1} parent=5 // pred_check_branch
        %180 = sbr.rel (%p178) target = $region32
      $region31: #{residual_block_forward.1} parent=5 // pred_region
        // Predicated region
        $region33: #{residual_block_forward.1} parent=31 // pred_check
          %p181 = pneg %p34
        $region34: #{residual_block_forward.1} parent=31 // pred_check_branch
          %183 = sbr.rel (%p181) target = $region36
        $region35: #{residual_block_forward.1} parent=31 // pred_region
          %p184 = scmp.lt.s32.totalorder %s14, 1
          %s185 = scalar_select %p184, %s14, 1
          %s186 = smul.addr %s185, 32
          %s187 = smul.addr %s186, 8
          %s188 = scalar_lea.vmem %s0, %s187
        $region36: #{residual_block_forward.1} parent=31 // pred_fallthru
          _
      $region32: #{residual_block_forward.1} parent=5 // pred_fallthru
        _
      %p189 = scmp.le.s32.totalorder 1, %s14
      %p190 = scmp.lt.s32.totalorder %s14, 3
      %p191 = pnand %p189, %p190
      %p192 = pneg %p191
      // Predicated region
      $region37: #{residual_block_forward.1} parent=5 // pred_check
        _
      $region38: #{residual_block_forward.1} parent=5 // pred_check_branch
        %194 = sbr.rel (%p191) target = $region40
      $region39: #{residual_block_forward.1} parent=5 // pred_region
        %s195 = ssub.s32 %s14, 1
        %p196 = scmp.lt.s32.totalorder %s19, 1
        %s197 = scalar_select %p196, %s19, 1
        %s198 = smul.addr %s197, 32
        %s199 = smul.addr %s198, 8
        %s200 = scalar_lea.vmem %s0, %s199
        %p201 = pneg %p40
        %p202 = pneg %p37
        %p203 = pneg %p61
        %p204 = pneg %p58
        %p205 = pneg %p82
        %p206 = pneg %p79
        %p207 = pneg %p103
        %p208 = pneg %p100
        %p209 = pneg %p124
        %p210 = pneg %p121
        %p211 = pneg %p150
        %p212 = pneg %p147
        %s213 = sand.u32 %s137, 1
        %s214 = scalar_lea.sflag [#allocation5], %s213
        %s215 = sand.u32 %s137, 1
        %s216 = smul.addr %s215, 256
        %s217 = scalar_lea.vmem [#allocation4], %s216
        %p218 = scmp.lt.s32.totalorder %s19, 1
        %s219 = scalar_select %p218, %s19, 1
        %s220 = smul.addr %s219, 32
        %s221 = smul.addr %s220, 8
        %s222 = scalar_lea.vmem %s0, %s221
        %v223 = vld [vmem:[%s222] sm:$0xff]
        %v224 = vld [vmem:[%s222 + $0x8] sm:$0xff]
        %v225 = vld [vmem:[%s222 + $0x10] sm:$0xff]
        %v226 = vld [vmem:[%s222 + $0x18] sm:$0xff]
        %v227 = vld [vmem:[%s222 + $0x20] sm:$0xff]
        %v228 = vld [vmem:[%s222 + $0x28] sm:$0xff]
        %v229 = vld [vmem:[%s222 + $0x30] sm:$0xff]
        %v230 = vld [vmem:[%s222 + $0x38] sm:$0xff]
        %v231 = vld [vmem:[%s222 + $0x40] sm:$0xff]
        %v232 = vld [vmem:[%s222 + $0x48] sm:$0xff]
        %v233 = vld [vmem:[%s222 + $0x50] sm:$0xff]
        %v234 = vld [vmem:[%s222 + $0x58] sm:$0xff]
        %v235 = vld [vmem:[%s222 + $0x60] sm:$0xff]
        %v236 = vld [vmem:[%s222 + $0x68] sm:$0xff]
        %v237 = vld [vmem:[%s222 + $0x70] sm:$0xff]
        %v238 = vld [vmem:[%s222 + $0x78] sm:$0xff]
        %v239 = vld [vmem:[%s222 + $0x80] sm:$0xff]
        %v240 = vld [vmem:[%s222 + $0x88] sm:$0xff]
        %v241 = vld [vmem:[%s222 + $0x90] sm:$0xff]
        %v242 = vld [vmem:[%s222 + $0x98] sm:$0xff]
        %v243 = vld [vmem:[%s222 + $0xa0] sm:$0xff]
        %v244 = vld [vmem:[%s222 + $0xa8] sm:$0xff]
        %v245 = vld [vmem:[%s222 + $0xb0] sm:$0xff]
        %v246 = vld [vmem:[%s222 + $0xb8] sm:$0xff]
        %v247 = vld [vmem:[%s222 + $0xc0] sm:$0xff]
        %v248 = vld [vmem:[%s222 + $0xc8] sm:$0xff]
        %v249 = vld [vmem:[%s222 + $0xd0] sm:$0xff]
        %v250 = vld [vmem:[%s222 + $0xd8] sm:$0xff]
        %v251 = vld [vmem:[%s222 + $0xe0] sm:$0xff]
        %v252 = vld [vmem:[%s222 + $0xe8] sm:$0xff]
        %v253 = vld [vmem:[%s222 + $0xf0] sm:$0xff]
        %v254 = vld [vmem:[%s222 + $0xf8] sm:$0xff]
        %255 = vst [vmem:[#allocation2] sm:$0xff] 0.0
        %256 = vst [vmem:[#allocation2 + $0x8] sm:$0xff] 0.0
        %257 = vst [vmem:[#allocation2 + $0x10] sm:$0x3] 0.0
        %s258 = scalar_lea.vmem [#allocation2], 408
        %259 = vst [vmem:[%s258] sm:$0xff] 0.0
        %260 = vst [vmem:[%s258 + $0x8] sm:$0xff] 0.0
        %261 = vst [vmem:[%s258 + $0x10] sm:$0x3] 0.0
        %262 = vst [vmem:[#allocation2] sm:$0x1] 0.0
        %263 = vst [vmem:[#allocation2 + $0x18] sm:$0x1] 0.0
        %264 = vst [vmem:[#allocation2 + $0x30] sm:$0x1] 0.0
        %265 = vst [vmem:[#allocation2 + $0x48] sm:$0x1] 0.0
        %266 = vst [vmem:[#allocation2 + $0x60] sm:$0x1] 0.0
        %267 = vst [vmem:[#allocation2 + $0x78] sm:$0x1] 0.0
        %268 = vst [vmem:[#allocation2 + $0x90] sm:$0x1] 0.0
        %269 = vst [vmem:[#allocation2 + $0xa8] sm:$0x1] 0.0
        %270 = vst [vmem:[#allocation2 + $0xc0] sm:$0x1] 0.0
        %271 = vst [vmem:[#allocation2 + $0xd8] sm:$0x1] 0.0
        %272 = vst [vmem:[#allocation2 + $0xf0] sm:$0x1] 0.0
        %273 = vst [vmem:[#allocation2 + $0x108] sm:$0x1] 0.0
        %274 = vst [vmem:[#allocation2 + $0x120] sm:$0x1] 0.0
        %275 = vst [vmem:[#allocation2 + $0x138] sm:$0x1] 0.0
        %276 = vst [vmem:[#allocation2 + $0x150] sm:$0x1] 0.0
        %277 = vst [vmem:[#allocation2 + $0x168] sm:$0x1] 0.0
        %278 = vst [vmem:[#allocation2 + $0x180] sm:$0x1] 0.0
        %279 = vst [vmem:[#allocation2 + $0x198] sm:$0x1] 0.0
        %280 = vst [vmem:[#allocation2 + $0x11] sm:$0x1] 0.0
        %281 = vst [vmem:[#allocation2 + $0x29] sm:$0x1] 0.0
        %282 = vst [vmem:[#allocation2 + $0x41] sm:$0x1] 0.0
        %283 = vst [vmem:[#allocation2 + $0x59] sm:$0x1] 0.0
        %284 = vst [vmem:[#allocation2 + $0x71] sm:$0x1] 0.0
        %285 = vst [vmem:[#allocation2 + $0x89] sm:$0x1] 0.0
        %286 = vst [vmem:[#allocation2 + $0xa1] sm:$0x1] 0.0
        %287 = vst [vmem:[#allocation2 + $0xb9] sm:$0x1] 0.0
        %288 = vst [vmem:[#allocation2 + $0xd1] sm:$0x1] 0.0
        %289 = vst [vmem:[#allocation2 + $0xe9] sm:$0x1] 0.0
        %290 = vst [vmem:[#allocation2 + $0x101] sm:$0x1] 0.0
        %291 = vst [vmem:[#allocation2 + $0x119] sm:$0x1] 0.0
        %292 = vst [vmem:[#allocation2 + $0x131] sm:$0x1] 0.0
        %293 = vst [vmem:[#allocation2 + $0x149] sm:$0x1] 0.0
        %294 = vst [vmem:[#allocation2 + $0x161] sm:$0x1] 0.0
        %295 = vst [vmem:[#allocation2 + $0x179] sm:$0x1] 0.0
        %296 = vst [vmem:[#allocation2 + $0x191] sm:$0x1] 0.0
        %297 = vst [vmem:[#allocation2 + $0x1a9] sm:$0x1] 0.0
        %s298 = scalar_lea.vmem [#allocation2], 24
        %299 = vst [vmem:[%s298 + $0x1] sm:$0xff] %v223
        %300 = vst [vmem:[%s298 + $0x9] sm:$0xff] %v224
        %301 = vst [vmem:[%s298 + $0x19] sm:$0xff] %v225
        %302 = vst [vmem:[%s298 + $0x21] sm:$0xff] %v226
        %303 = vst [vmem:[%s298 + $0x31] sm:$0xff] %v227
        %304 = vst [vmem:[%s298 + $0x39] sm:$0xff] %v228
        %305 = vst [vmem:[%s298 + $0x49] sm:$0xff] %v229
        %306 = vst [vmem:[%s298 + $0x51] sm:$0xff] %v230
        %307 = vst [vmem:[%s298 + $0x61] sm:$0xff] %v231
        %308 = vst [vmem:[%s298 + $0x69] sm:$0xff] %v232
        %309 = vst [vmem:[%s298 + $0x79] sm:$0xff] %v233
        %310 = vst [vmem:[%s298 + $0x81] sm:$0xff] %v234
        %311 = vst [vmem:[%s298 + $0x91] sm:$0xff] %v235
        %312 = vst [vmem:[%s298 + $0x99] sm:$0xff] %v236
        %313 = vst [vmem:[%s298 + $0xa9] sm:$0xff] %v237
        %314 = vst [vmem:[%s298 + $0xb1] sm:$0xff] %v238
        %315 = vst [vmem:[%s298 + $0xc1] sm:$0xff] %v239
        %316 = vst [vmem:[%s298 + $0xc9] sm:$0xff] %v240
        %317 = vst [vmem:[%s298 + $0xd9] sm:$0xff] %v241
        %318 = vst [vmem:[%s298 + $0xe1] sm:$0xff] %v242
        %319 = vst [vmem:[%s298 + $0xf1] sm:$0xff] %v243
        %320 = vst [vmem:[%s298 + $0xf9] sm:$0xff] %v244
        %321 = vst [vmem:[%s298 + $0x109] sm:$0xff] %v245
        %322 = vst [vmem:[%s298 + $0x111] sm:$0xff] %v246
        %323 = vst [vmem:[%s298 + $0x121] sm:$0xff] %v247
        %324 = vst [vmem:[%s298 + $0x129] sm:$0xff] %v248
        %325 = vst [vmem:[%s298 + $0x139] sm:$0xff] %v249
        %326 = vst [vmem:[%s298 + $0x141] sm:$0xff] %v250
        %327 = vst [vmem:[%s298 + $0x151] sm:$0xff] %v251
        %328 = vst [vmem:[%s298 + $0x159] sm:$0xff] %v252
        %329 = vst [vmem:[%s298 + $0x169] sm:$0xff] %v253
        %330 = vst [vmem:[%s298 + $0x171] sm:$0xff] %v254
        %v331 = vld [vmem:[#allocation2] sm:$0xff]
        %v332 = vld [vmem:[#allocation2 + $0x8] sm:$0xff]
        %v333 = vld [vmem:[#allocation2 + $0x10] sm:$0x3]
        %v334 = vld [vmem:[#allocation2 + $0x18] sm:$0xff]
        %v335 = vld [vmem:[#allocation2 + $0x20] sm:$0xff]
        %v336 = vld [vmem:[#allocation2 + $0x28] sm:$0x3]
        %v337 = vld [vmem:[#allocation2 + $0x30] sm:$0xff]
        %v338 = vld [vmem:[#allocation2 + $0x38] sm:$0xff]
        %v339 = vld [vmem:[#allocation2 + $0x40] sm:$0x3]
        %v340 = vld [vmem:[#allocation2 + $0x48] sm:$0xff]
        %v341 = vld [vmem:[#allocation2 + $0x50] sm:$0xff]
        %v342 = vld [vmem:[#allocation2 + $0x58] sm:$0x3]
        %v343 = vld [vmem:[#allocation2 + $0x60] sm:$0xff]
        %v344 = vld [vmem:[#allocation2 + $0x68] sm:$0xff]
        %v345 = vld [vmem:[#allocation2 + $0x70] sm:$0x3]
        %v346 = vld [vmem:[#allocation2 + $0x78] sm:$0xff]
        %v347 = vld [vmem:[#allocation2 + $0x80] sm:$0xff]
        %v348 = vld [vmem:[#allocation2 + $0x88] sm:$0x3]
        %v349 = vld [vmem:[#allocation2 + $0x90] sm:$0xff]
        %v350 = vld [vmem:[#allocation2 + $0x98] sm:$0xff]
        %v351 = vld [vmem:[#allocation2 + $0xa0] sm:$0x3]
        %v352 = vld [vmem:[#allocation2 + $0xa8] sm:$0xff]
        %v353 = vld [vmem:[#allocation2 + $0xb0] sm:$0xff]
        %v354 = vld [vmem:[#allocation2 + $0xb8] sm:$0x3]
        %v355 = vld [vmem:[#allocation2 + $0xc0] sm:$0xff]
        %v356 = vld [vmem:[#allocation2 + $0xc8] sm:$0xff]
        %v357 = vld [vmem:[#allocation2 + $0xd0] sm:$0x3]
        %v358 = vld [vmem:[#allocation2 + $0xd8] sm:$0xff]
        %v359 = vld [vmem:[#allocation2 + $0xe0] sm:$0xff]
        %v360 = vld [vmem:[#allocation2 + $0xe8] sm:$0x3]
        %v361 = vld [vmem:[#allocation2 + $0xf0] sm:$0xff]
        %v362 = vld [vmem:[#allocation2 + $0xf8] sm:$0xff]
        %v363 = vld [vmem:[#allocation2 + $0x100] sm:$0x3]
        %v364 = vld [vmem:[#allocation2 + $0x108] sm:$0xff]
        %v365 = vld [vmem:[#allocation2 + $0x110] sm:$0xff]
        %v366 = vld [vmem:[#allocation2 + $0x118] sm:$0x3]
        %v367 = vld [vmem:[#allocation2 + $0x120] sm:$0xff]
        %v368 = vld [vmem:[#allocation2 + $0x128] sm:$0xff]
        %v369 = vld [vmem:[#allocation2 + $0x130] sm:$0x3]
        %v370 = vld [vmem:[#allocation2 + $0x138] sm:$0xff]
        %v371 = vld [vmem:[#allocation2 + $0x140] sm:$0xff]
        %v372 = vld [vmem:[#allocation2 + $0x148] sm:$0x3]
        %v373 = vld [vmem:[#allocation2 + $0x150] sm:$0xff]
        %v374 = vld [vmem:[#allocation2 + $0x158] sm:$0xff]
        %v375 = vld [vmem:[#allocation2 + $0x160] sm:$0x3]
        %v376 = vld [vmem:[#allocation2 + $0x168] sm:$0xff]
        %v377 = vld [vmem:[#allocation2 + $0x170] sm:$0xff]
        %v378 = vld [vmem:[#allocation2 + $0x178] sm:$0x3]
        %v379 = vld [vmem:[#allocation2 + $0x180] sm:$0xff]
        %v380 = vld [vmem:[#allocation2 + $0x188] sm:$0xff]
        %v381 = vld [vmem:[#allocation2 + $0x190] sm:$0x3]
        %v382 = vld [vmem:[#allocation2 + $0x198] sm:$0xff]
        %v383 = vld [vmem:[#allocation2 + $0x1a0] sm:$0xff]
        %v384 = vld [vmem:[#allocation2 + $0x1a8] sm:$0x3]
        %vm433 = vcmask 1046528
        %v434 = vrot.slane %v331, 1
        %v435 = vrot.slane %v332, 1
        %v436 = vsel %vm433, %v434, %v435
        %v437 = vrot.slane %v333, 1
        %v438 = vsel %vm433, %v435, %v437
        %v439 = vrot.slane %v334, 1
        %v440 = vrot.slane %v335, 1
        %v441 = vsel %vm433, %v439, %v440
        %v442 = vrot.slane %v336, 1
        %v443 = vsel %vm433, %v440, %v442
        %v444 = vrot.slane %v337, 1
        %v445 = vrot.slane %v338, 1
        %v446 = vsel %vm433, %v444, %v445
        %v447 = vrot.slane %v339, 1
        %v448 = vsel %vm433, %v445, %v447
        %v449 = vrot.slane %v340, 1
        %v450 = vrot.slane %v341, 1
        %v451 = vsel %vm433, %v449, %v450
        %v452 = vrot.slane %v342, 1
        %v453 = vsel %vm433, %v450, %v452
        %v454 = vrot.slane %v343, 1
        %v455 = vrot.slane %v344, 1
        %v456 = vsel %vm433, %v454, %v455
        %v457 = vrot.slane %v345, 1
        %v458 = vsel %vm433, %v455, %v457
        %v459 = vrot.slane %v346, 1
        %v460 = vrot.slane %v347, 1
        %v461 = vsel %vm433, %v459, %v460
        %v462 = vrot.slane %v348, 1
        %v463 = vsel %vm433, %v460, %v462
        %v464 = vrot.slane %v349, 1
        %v465 = vrot.slane %v350, 1
        %v466 = vsel %vm433, %v464, %v465
        %v467 = vrot.slane %v351, 1
        %v468 = vsel %vm433, %v465, %v467
        %v469 = vrot.slane %v352, 1
        %v470 = vrot.slane %v353, 1
        %v471 = vsel %vm433, %v469, %v470
        %v472 = vrot.slane %v354, 1
        %v473 = vsel %vm433, %v470, %v472
        %v474 = vrot.slane %v355, 1
        %v475 = vrot.slane %v356, 1
        %v476 = vsel %vm433, %v474, %v475
        %v477 = vrot.slane %v357, 1
        %v478 = vsel %vm433, %v475, %v477
        %v479 = vrot.slane %v358, 1
        %v480 = vrot.slane %v359, 1
        %v481 = vsel %vm433, %v479, %v480
        %v482 = vrot.slane %v360, 1
        %v483 = vsel %vm433, %v480, %v482
        %v484 = vrot.slane %v361, 1
        %v485 = vrot.slane %v362, 1
        %v486 = vsel %vm433, %v484, %v485
        %v487 = vrot.slane %v363, 1
        %v488 = vsel %vm433, %v485, %v487
        %v489 = vrot.slane %v364, 1
        %v490 = vrot.slane %v365, 1
        %v491 = vsel %vm433, %v489, %v490
        %v492 = vrot.slane %v366, 1
        %v493 = vsel %vm433, %v490, %v492
        %v494 = vrot.slane %v367, 1
        %v495 = vrot.slane %v368, 1
        %v496 = vsel %vm433, %v494, %v495
        %v497 = vrot.slane %v369, 1
        %v498 = vsel %vm433, %v495, %v497
        %v499 = vrot.slane %v370, 1
        %v500 = vrot.slane %v371, 1
        %v501 = vsel %vm433, %v499, %v500
        %v502 = vrot.slane %v372, 1
        %v503 = vsel %vm433, %v500, %v502
        %v504 = vrot.slane %v373, 1
        %v505 = vrot.slane %v374, 1
        %v506 = vsel %vm433, %v504, %v505
        %v507 = vrot.slane %v375, 1
        %v508 = vsel %vm433, %v505, %v507
        %v509 = vrot.slane %v376, 1
        %v510 = vrot.slane %v377, 1
        %v511 = vsel %vm433, %v509, %v510
        %v512 = vrot.slane %v378, 1
        %v513 = vsel %vm433, %v510, %v512
        %vm546 = vcmask 1045504
        %v547 = vrot.slane %v331, 2
        %v548 = vrot.slane %v332, 2
        %v549 = vsel %vm546, %v547, %v548
        %v550 = vrot.slane %v333, 2
        %v551 = vsel %vm546, %v548, %v550
        %v552 = vrot.slane %v334, 2
        %v553 = vrot.slane %v335, 2
        %v554 = vsel %vm546, %v552, %v553
        %v555 = vrot.slane %v336, 2
        %v556 = vsel %vm546, %v553, %v555
        %v557 = vrot.slane %v337, 2
        %v558 = vrot.slane %v338, 2
        %v559 = vsel %vm546, %v557, %v558
        %v560 = vrot.slane %v339, 2
        %v561 = vsel %vm546, %v558, %v560
        %v562 = vrot.slane %v340, 2
        %v563 = vrot.slane %v341, 2
        %v564 = vsel %vm546, %v562, %v563
        %v565 = vrot.slane %v342, 2
        %v566 = vsel %vm546, %v563, %v565
        %v567 = vrot.slane %v343, 2
        %v568 = vrot.slane %v344, 2
        %v569 = vsel %vm546, %v567, %v568
        %v570 = vrot.slane %v345, 2
        %v571 = vsel %vm546, %v568, %v570
        %v572 = vrot.slane %v346, 2
        %v573 = vrot.slane %v347, 2
        %v574 = vsel %vm546, %v572, %v573
        %v575 = vrot.slane %v348, 2
        %v576 = vsel %vm546, %v573, %v575
        %v577 = vrot.slane %v349, 2
        %v578 = vrot.slane %v350, 2
        %v579 = vsel %vm546, %v577, %v578
        %v580 = vrot.slane %v351, 2
        %v581 = vsel %vm546, %v578, %v580
        %v582 = vrot.slane %v352, 2
        %v583 = vrot.slane %v353, 2
        %v584 = vsel %vm546, %v582, %v583
        %v585 = vrot.slane %v354, 2
        %v586 = vsel %vm546, %v583, %v585
        %v587 = vrot.slane %v355, 2
        %v588 = vrot.slane %v356, 2
        %v589 = vsel %vm546, %v587, %v588
        %v590 = vrot.slane %v357, 2
        %v591 = vsel %vm546, %v588, %v590
        %v592 = vrot.slane %v358, 2
        %v593 = vrot.slane %v359, 2
        %v594 = vsel %vm546, %v592, %v593
        %v595 = vrot.slane %v360, 2
        %v596 = vsel %vm546, %v593, %v595
        %v597 = vrot.slane %v361, 2
        %v598 = vrot.slane %v362, 2
        %v599 = vsel %vm546, %v597, %v598
        %v600 = vrot.slane %v363, 2
        %v601 = vsel %vm546, %v598, %v600
        %v602 = vrot.slane %v364, 2
        %v603 = vrot.slane %v365, 2
        %v604 = vsel %vm546, %v602, %v603
        %v605 = vrot.slane %v366, 2
        %v606 = vsel %vm546, %v603, %v605
        %v607 = vrot.slane %v367, 2
        %v608 = vrot.slane %v368, 2
        %v609 = vsel %vm546, %v607, %v608
        %v610 = vrot.slane %v369, 2
        %v611 = vsel %vm546, %v608, %v610
        %v612 = vrot.slane %v370, 2
        %v613 = vrot.slane %v371, 2
        %v614 = vsel %vm546, %v612, %v613
        %v615 = vrot.slane %v372, 2
        %v616 = vsel %vm546, %v613, %v615
        %v617 = vrot.slane %v373, 2
        %v618 = vrot.slane %v374, 2
        %v619 = vsel %vm546, %v617, %v618
        %v620 = vrot.slane %v375, 2
        %v621 = vsel %vm546, %v618, %v620
        %v622 = vrot.slane %v376, 2
        %v623 = vrot.slane %v377, 2
        %v624 = vsel %vm546, %v622, %v623
        %v625 = vrot.slane %v378, 2
        %v626 = vsel %vm546, %v623, %v625
        %v662 = vrot.slane %v379, 1
        %v663 = vrot.slane %v380, 1
        %v664 = vsel %vm433, %v662, %v663
        %v665 = vrot.slane %v381, 1
        %v666 = vsel %vm433, %v663, %v665
        %v669 = vrot.slane %v379, 2
        %v670 = vrot.slane %v380, 2
        %v671 = vsel %vm546, %v669, %v670
        %v672 = vrot.slane %v381, 2
        %v673 = vsel %vm546, %v670, %v672
        %v679 = vrot.slane %v382, 1
        %v680 = vrot.slane %v383, 1
        %v681 = vsel %vm433, %v679, %v680
        %v682 = vrot.slane %v384, 1
        %v683 = vsel %vm433, %v680, %v682
        %v686 = vrot.slane %v382, 2
        %v687 = vrot.slane %v383, 2
        %v688 = vsel %vm546, %v686, %v687
        %v689 = vrot.slane %v384, 2
        %v690 = vsel %vm546, %v687, %v689
        %v693 = vld [vmem:[%s1] sm:$0xff]
        %v694 = vld [vmem:[%s1 + $0x8] sm:$0xff]
        %v695 = vld [vmem:[%s1 + $0x10] sm:$0xff]
        %v696 = vld [vmem:[%s1 + $0x18] sm:$0xff]
        %v697 = vld [vmem:[%s1 + $0x20] sm:$0xff]
        %v698 = vld [vmem:[%s1 + $0x28] sm:$0xff]
        %v699 = vld [vmem:[%s1 + $0x30] sm:$0xff]
        %v700 = vld [vmem:[%s1 + $0x38] sm:$0xff]
        %v701 = vld [vmem:[%s1 + $0x40] sm:$0xff]
        %v702 = vld [vmem:[%s1 + $0x48] sm:$0xff]
        %v703 = vld [vmem:[%s1 + $0x50] sm:$0xff]
        %v704 = vld [vmem:[%s1 + $0x58] sm:$0xff]
        %v705 = vld [vmem:[%s1 + $0x60] sm:$0xff]
        %v706 = vld [vmem:[%s1 + $0x68] sm:$0xff]
        %v707 = vld [vmem:[%s1 + $0x70] sm:$0xff]
        %v708 = vld [vmem:[%s1 + $0x78] sm:$0xff]
        %v709 = vld [vmem:[%s1 + $0x80] sm:$0xff]
        %v710 = vld [vmem:[%s1 + $0x88] sm:$0xff]
        %v711 = vld [vmem:[%s1 + $0x90] sm:$0xff]
        %v712 = vld [vmem:[%s1 + $0x98] sm:$0xff]
        %v713 = vld [vmem:[%s1 + $0xa0] sm:$0xff]
        %v714 = vld [vmem:[%s1 + $0xa8] sm:$0xff]
        %v715 = vld [vmem:[%s1 + $0xb0] sm:$0xff]
        %v716 = vld [vmem:[%s1 + $0xb8] sm:$0xff]
        %v717 = vld [vmem:[%s1 + $0xc0] sm:$0xff]
        %v718 = vld [vmem:[%s1 + $0xc8] sm:$0xff]
        %v719 = vld [vmem:[%s1 + $0xd0] sm:$0xff]
        %v720 = vld [vmem:[%s1 + $0xd8] sm:$0xff]
        %v721 = vld [vmem:[%s1 + $0xe0] sm:$0xff]
        %v722 = vld [vmem:[%s1 + $0xe8] sm:$0xff]
        %v723 = vld [vmem:[%s1 + $0xf0] sm:$0xff]
        %v724 = vld [vmem:[%s1 + $0xf8] sm:$0xff]
        %v725 = vld [vmem:[%s1 + $0x100] sm:$0xff]
        %v726 = vld [vmem:[%s1 + $0x108] sm:$0xff]
        %v727 = vld [vmem:[%s1 + $0x110] sm:$0xff]
        %v728 = vld [vmem:[%s1 + $0x118] sm:$0xff]
        %v729 = vld [vmem:[%s1 + $0x120] sm:$0xff]
        %v730 = vld [vmem:[%s1 + $0x128] sm:$0xff]
        %v731 = vld [vmem:[%s1 + $0x130] sm:$0xff]
        %v732 = vld [vmem:[%s1 + $0x138] sm:$0xff]
        %v733 = vld [vmem:[%s1 + $0x140] sm:$0xff]
        %v734 = vld [vmem:[%s1 + $0x148] sm:$0xff]
        %v735 = vld [vmem:[%s1 + $0x150] sm:$0xff]
        %v736 = vld [vmem:[%s1 + $0x158] sm:$0xff]
        %v737 = vld [vmem:[%s1 + $0x160] sm:$0xff]
        %v738 = vld [vmem:[%s1 + $0x168] sm:$0xff]
        %v739 = vld [vmem:[%s1 + $0x170] sm:$0xff]
        %v740 = vld [vmem:[%s1 + $0x178] sm:$0xff]
        %v741 = vld [vmem:[%s1 + $0x180] sm:$0xff]
        %v742 = vld [vmem:[%s1 + $0x188] sm:$0xff]
        %v743 = vld [vmem:[%s1 + $0x190] sm:$0xff]
        %v744 = vld [vmem:[%s1 + $0x198] sm:$0xff]
        %v745 = vld [vmem:[%s1 + $0x1a0] sm:$0xff]
        %v746 = vld [vmem:[%s1 + $0x1a8] sm:$0xff]
        %v747 = vld [vmem:[%s1 + $0x1b0] sm:$0xff]
        %v748 = vld [vmem:[%s1 + $0x1b8] sm:$0xff]
        %v749 = vld [vmem:[%s1 + $0x1c0] sm:$0xff]
        %v750 = vld [vmem:[%s1 + $0x1c8] sm:$0xff]
        %v751 = vld [vmem:[%s1 + $0x1d0] sm:$0xff]
        %v752 = vld [vmem:[%s1 + $0x1d8] sm:$0xff]
        %v753 = vld [vmem:[%s1 + $0x1e0] sm:$0xff]
        %v754 = vld [vmem:[%s1 + $0x1e8] sm:$0xff]
        %v755 = vld [vmem:[%s1 + $0x1f0] sm:$0xff]
        %v756 = vld [vmem:[%s1 + $0x1f8] sm:$0xff]
        %v757 = vld [vmem:[%s1 + $0x200] sm:$0xff]
        %v758 = vld [vmem:[%s1 + $0x208] sm:$0xff]
        %v759 = vld [vmem:[%s1 + $0x210] sm:$0xff]
        %v760 = vld [vmem:[%s1 + $0x218] sm:$0xff]
        %v761 = vld [vmem:[%s1 + $0x220] sm:$0xff]
        %v762 = vld [vmem:[%s1 + $0x228] sm:$0xff]
        %v763 = vld [vmem:[%s1 + $0x230] sm:$0xff]
        %v764 = vld [vmem:[%s1 + $0x238] sm:$0xff]
        %v765 = vld [vmem:[%s1 + $0x240] sm:$0xff]
        %v766 = vld [vmem:[%s1 + $0x248] sm:$0xff]
        %v767 = vld [vmem:[%s1 + $0x250] sm:$0xff]
        %v768 = vld [vmem:[%s1 + $0x258] sm:$0xff]
        %v769 = vld [vmem:[%s1 + $0x260] sm:$0xff]
        %v770 = vld [vmem:[%s1 + $0x268] sm:$0xff]
        %v771 = vld [vmem:[%s1 + $0x270] sm:$0xff]
        %v772 = vld [vmem:[%s1 + $0x278] sm:$0xff]
        %v773 = vld [vmem:[%s1 + $0x280] sm:$0xff]
        %v774 = vld [vmem:[%s1 + $0x288] sm:$0xff]
        %v775 = vld [vmem:[%s1 + $0x290] sm:$0xff]
        %v776 = vld [vmem:[%s1 + $0x298] sm:$0xff]
        %v777 = vld [vmem:[%s1 + $0x2a0] sm:$0xff]
        %v778 = vld [vmem:[%s1 + $0x2a8] sm:$0xff]
        %v779 = vld [vmem:[%s1 + $0x2b0] sm:$0xff]
        %v780 = vld [vmem:[%s1 + $0x2b8] sm:$0xff]
        %v781 = vld [vmem:[%s1 + $0x2c0] sm:$0xff]
        %v782 = vld [vmem:[%s1 + $0x2c8] sm:$0xff]
        %v783 = vld [vmem:[%s1 + $0x2d0] sm:$0xff]
        %v784 = vld [vmem:[%s1 + $0x2d8] sm:$0xff]
        %v785 = vld [vmem:[%s1 + $0x2e0] sm:$0xff]
        %v786 = vld [vmem:[%s1 + $0x2e8] sm:$0xff]
        %v787 = vld [vmem:[%s1 + $0x2f0] sm:$0xff]
        %v788 = vld [vmem:[%s1 + $0x2f8] sm:$0xff]
        %v789 = vld [vmem:[%s1 + $0x300] sm:$0xff]
        %v790 = vld [vmem:[%s1 + $0x308] sm:$0xff]
        %v791 = vld [vmem:[%s1 + $0x310] sm:$0xff]
        %v792 = vld [vmem:[%s1 + $0x318] sm:$0xff]
        %v793 = vld [vmem:[%s1 + $0x320] sm:$0xff]
        %v794 = vld [vmem:[%s1 + $0x328] sm:$0xff]
        %v795 = vld [vmem:[%s1 + $0x330] sm:$0xff]
        %v796 = vld [vmem:[%s1 + $0x338] sm:$0xff]
        %v797 = vld [vmem:[%s1 + $0x340] sm:$0xff]
        %v798 = vld [vmem:[%s1 + $0x348] sm:$0xff]
        %v799 = vld [vmem:[%s1 + $0x350] sm:$0xff]
        %v800 = vld [vmem:[%s1 + $0x358] sm:$0xff]
        %v801 = vld [vmem:[%s1 + $0x360] sm:$0xff]
        %v802 = vld [vmem:[%s1 + $0x368] sm:$0xff]
        %v803 = vld [vmem:[%s1 + $0x370] sm:$0xff]
        %v804 = vld [vmem:[%s1 + $0x378] sm:$0xff]
        %v805 = vld [vmem:[%s1 + $0x380] sm:$0xff]
        %v806 = vld [vmem:[%s1 + $0x388] sm:$0xff]
        %v807 = vld [vmem:[%s1 + $0x390] sm:$0xff]
        %v808 = vld [vmem:[%s1 + $0x398] sm:$0xff]
        %v809 = vld [vmem:[%s1 + $0x3a0] sm:$0xff]
        %v810 = vld [vmem:[%s1 + $0x3a8] sm:$0xff]
        %v811 = vld [vmem:[%s1 + $0x3b0] sm:$0xff]
        %v812 = vld [vmem:[%s1 + $0x3b8] sm:$0xff]
        %v813 = vld [vmem:[%s1 + $0x3c0] sm:$0xff]
        %v814 = vld [vmem:[%s1 + $0x3c8] sm:$0xff]
        %v815 = vld [vmem:[%s1 + $0x3d0] sm:$0xff]
        %v816 = vld [vmem:[%s1 + $0x3d8] sm:$0xff]
        %v817 = vld [vmem:[%s1 + $0x3e0] sm:$0xff]
        %v818 = vld [vmem:[%s1 + $0x3e8] sm:$0xff]
        %v819 = vld [vmem:[%s1 + $0x3f0] sm:$0xff]
        %v820 = vld [vmem:[%s1 + $0x3f8] sm:$0xff]
        %v821 = vld [vmem:[%s1 + $0x400] sm:$0xff]
        %v822 = vld [vmem:[%s1 + $0x408] sm:$0xff]
        %v823 = vld [vmem:[%s1 + $0x410] sm:$0xff]
        %v824 = vld [vmem:[%s1 + $0x418] sm:$0xff]
        %v825 = vld [vmem:[%s1 + $0x420] sm:$0xff]
        %v826 = vld [vmem:[%s1 + $0x428] sm:$0xff]
        %v827 = vld [vmem:[%s1 + $0x430] sm:$0xff]
        %v828 = vld [vmem:[%s1 + $0x438] sm:$0xff]
        %v829 = vld [vmem:[%s1 + $0x440] sm:$0xff]
        %v830 = vld [vmem:[%s1 + $0x448] sm:$0xff]
        %v831 = vld [vmem:[%s1 + $0x450] sm:$0xff]
        %v832 = vld [vmem:[%s1 + $0x458] sm:$0xff]
        %v833 = vld [vmem:[%s1 + $0x460] sm:$0xff]
        %v834 = vld [vmem:[%s1 + $0x468] sm:$0xff]
        %v835 = vld [vmem:[%s1 + $0x470] sm:$0xff]
        %v836 = vld [vmem:[%s1 + $0x478] sm:$0xff]
        %v837 = vld [vmem:[%s3] sm:$0x1]
        %v839 = vlaneseq
        %v840 = vshrl.u32 %v839, 7
        %v841 = vsub.s32 0, %v840
        %v842 = vrot.slane %v837, %v841
        %844 = vmatprep.subr.mxu0 0.0
        %845 = vmatpush1.msra.mxu0 %v693
        %846 = vmatprep.subr.mxu0 0.0
        %847 = vmatpush1.msra.mxu0 %v694
        %848 = vmatprep.subr.mxu0 0.0
        %849 = vmatpush1.msra.mxu0 %v695
        %850 = vmatprep.subr.mxu0 0.0
        %851 = vmatpush1.msra.mxu0 %v696
        %852 = vmatprep.subr.mxu0 0.0
        %853 = vmatpush1.msra.mxu0 %v697
        %854 = vmatprep.subr.mxu0 0.0
        %855 = vmatpush1.msra.mxu0 %v698
        %856 = vmatprep.subr.mxu0 0.0
        %857 = vmatpush1.msra.mxu0 %v699
        %858 = vmatprep.subr.mxu0 0.0
        %859 = vmatpush1.msra.mxu0 %v700
        %860 = vmatprep.subr.mxu0 0.0
        %861 = vmatpush1.msra.mxu0 %v701
        %862 = vmatprep.subr.mxu0 0.0
        %863 = vmatpush1.msra.mxu0 %v702
        %864 = vmatprep.subr.mxu0 0.0
        %865 = vmatpush1.msra.mxu0 %v703
        %866 = vmatprep.subr.mxu0 0.0
        %867 = vmatpush1.msra.mxu0 %v704
        %868 = vmatprep.subr.mxu0 0.0
        %869 = vmatpush1.msra.mxu0 %v705
        %870 = vmatprep.subr.mxu0 0.0
        %871 = vmatpush1.msra.mxu0 %v706
        %872 = vmatprep.subr.mxu0 0.0
        %873 = vmatpush1.msra.mxu0 %v707
        %874 = vmatprep.subr.mxu0 0.0
        %875 = vmatpush1.msra.mxu0 %v708
        %876 = vmatprep.subr.mxu0 0.0
        %877 = vmatpush1.msra.mxu0 %v709
        %878 = vmatprep.subr.mxu0 0.0
        %879 = vmatpush1.msra.mxu0 %v710
        %880 = vmatprep.subr.mxu0 0.0
        %881 = vmatpush1.msra.mxu0 %v711
        %882 = vmatprep.subr.mxu0 0.0
        %883 = vmatpush1.msra.mxu0 %v712
        %884 = vmatprep.subr.mxu0 0.0
        %885 = vmatpush1.msra.mxu0 %v713
        %886 = vmatprep.subr.mxu0 0.0
        %887 = vmatpush1.msra.mxu0 %v714
        %888 = vmatprep.subr.mxu0 0.0
        %889 = vmatpush1.msra.mxu0 %v715
        %890 = vmatprep.subr.mxu0 0.0
        %891 = vmatpush1.msra.mxu0 %v716
        %892 = vmatprep.subr.mxu0 0.0
        %893 = vmatpush1.msra.mxu0 %v717
        %894 = vmatprep.subr.mxu0 0.0
        %895 = vmatpush1.msra.mxu0 %v718
        %896 = vmatprep.subr.mxu0 0.0
        %897 = vmatpush1.msra.mxu0 %v719
        %898 = vmatprep.subr.mxu0 0.0
        %899 = vmatpush1.msra.mxu0 %v720
        %900 = vmatprep.subr.mxu0 0.0
        %901 = vmatpush1.msra.mxu0 %v721
        %902 = vmatprep.subr.mxu0 0.0
        %903 = vmatpush1.msra.mxu0 %v722
        %904 = vmatprep.subr.mxu0 0.0
        %905 = vmatpush1.msra.mxu0 %v723
        %906 = vmatprep.subr.mxu0 0.0
        %907 = vmatpush1.msra.mxu0 %v724
        %908 = vmatprep.mubr.f32.mxu0 %v436
        %909 = vmatmul.mubr.f32.gmra.mrb[0].mxu0 %v331
        %v910 = vpop.f32.mrb[0].mxu0
        %v911 = vadd.f32 %v842, %v910
        %v912 = vpop.f32.mrb[0].mxu0
        %913 = vmatprep.mubr.f32.mxu0 %v438
        %914 = vmatmul.mubr.f32.gmra.mrb[0].mxu0 %v332
        %v915 = vpop.f32.mrb[0].mxu0
        %v916 = vadd.f32 %v842, %v915
        %v917 = vpop.f32.mrb[0].mxu0
        %918 = vmatprep.mubr.f32.mxu0 %v441
        %919 = vmatmul.mubr.f32.gmra.mrb[0].mxu0 %v334
        %v920 = vpop.f32.mrb[0].mxu0
        %v921 = vadd.f32 %v842, %v920
        %v922 = vpop.f32.mrb[0].mxu0
        %923 = vmatprep.mubr.f32.mxu0 %v443
        %924 = vmatmul.mubr.f32.gmra.mrb[0].mxu0 %v335
        %v925 = vpop.f32.mrb[0].mxu0
        %v926 = vadd.f32 %v842, %v925
        %v927 = vpop.f32.mrb[0].mxu0
        %928 = vmatprep.mubr.f32.mxu0 %v446
        %929 = vmatmul.mubr.f32.gmra.mrb[0].mxu0 %v337
        %v930 = vpop.f32.mrb[0].mxu0
        %v931 = vadd.f32 %v842, %v930
        %v932 = vpop.f32.mrb[0].mxu0
        %933 = vmatprep.mubr.f32.mxu0 %v448
        %934 = vmatmul.mubr.f32.gmra.mrb[0].mxu0 %v338
        %v935 = vpop.f32.mrb[0].mxu0
        %v936 = vadd.f32 %v842, %v935
        %v937 = vpop.f32.mrb[0].mxu0
        %938 = vmatprep.mubr.f32.mxu0 %v451
        %939 = vmatmul.mubr.f32.gmra.mrb[0].mxu0 %v340
        %v940 = vpop.f32.mrb[0].mxu0
        %v941 = vadd.f32 %v842, %v940
        %v942 = vpop.f32.mrb[0].mxu0
        %943 = vmatprep.mubr.f32.mxu0 %v453
        %944 = vmatmul.mubr.f32.gmra.mrb[0].mxu0 %v341
        %v945 = vpop.f32.mrb[0].mxu0
        %v946 = vadd.f32 %v842, %v945
        %v947 = vpop.f32.mrb[0].mxu0
        %948 = vmatprep.mubr.f32.mxu0 %v456
        %949 = vmatmul.mubr.f32.gmra.mrb[0].mxu0 %v343
        %v950 = vpop.f32.mrb[0].mxu0
        %v951 = vadd.f32 %v842, %v950
        %v952 = vpop.f32.mrb[0].mxu0
        %953 = vmatprep.mubr.f32.mxu0 %v458
        %954 = vmatmul.mubr.f32.gmra.mrb[0].mxu0 %v344
        %v955 = vpop.f32.mrb[0].mxu0
        %v956 = vadd.f32 %v842, %v955
        %v957 = vpop.f32.mrb[0].mxu0
        %958 = vmatprep.mubr.f32.mxu0 %v461
        %959 = vmatmul.mubr.f32.gmra.mrb[0].mxu0 %v346
        %v960 = vpop.f32.mrb[0].mxu0
        %v961 = vadd.f32 %v842, %v960
        %v962 = vpop.f32.mrb[0].mxu0
        %963 = vmatprep.mubr.f32.mxu0 %v463
        %964 = vmatmul.mubr.f32.gmra.mrb[0].mxu0 %v347
        %v965 = vpop.f32.mrb[0].mxu0
        %v966 = vadd.f32 %v842, %v965
        %v967 = vpop.f32.mrb[0].mxu0
        %968 = vmatprep.mubr.f32.mxu0 %v466
        %969 = vmatmul.mubr.f32.gmra.mrb[0].mxu0 %v349
        %v970 = vpop.f32.mrb[0].mxu0
        %v971 = vadd.f32 %v842, %v970
        %v972 = vpop.f32.mrb[0].mxu0
        %973 = vmatprep.mubr.f32.mxu0 %v468
        %974 = vmatmul.mubr.f32.gmra.mrb[0].mxu0 %v350
        %v975 = vpop.f32.mrb[0].mxu0
        %v976 = vadd.f32 %v842, %v975
        %v977 = vpop.f32.mrb[0].mxu0
        %978 = vmatprep.mubr.f32.mxu0 %v471
        %979 = vmatmul.mubr.f32.gmra.mrb[0].mxu0 %v352
        %v980 = vpop.f32.mrb[0].mxu0
        %v981 = vadd.f32 %v842, %v980
        %v982 = vpop.f32.mrb[0].mxu0
        %983 = vmatprep.mubr.f32.mxu0 %v473
        %984 = vmatmul.mubr.f32.gmra.mrb[0].mxu0 %v353
        %v985 = vpop.f32.mrb[0].mxu0
        %v986 = vadd.f32 %v842, %v985
        %v987 = vpop.f32.mrb[0].mxu0
        %988 = vmatprep.mubr.f32.mxu0 %v476
        %989 = vmatmul.mubr.f32.gmra.mrb[0].mxu0 %v355
        %v990 = vpop.f32.mrb[0].mxu0
        %v991 = vadd.f32 %v842, %v990
        %v992 = vpop.f32.mrb[0].mxu0
        %993 = vmatprep.mubr.f32.mxu0 %v478
        %994 = vmatmul.mubr.f32.gmra.mrb[0].mxu0 %v356
        %v995 = vpop.f32.mrb[0].mxu0
        %v996 = vadd.f32 %v842, %v995
        %v997 = vpop.f32.mrb[0].mxu0
        %998 = vmatprep.mubr.f32.mxu0 %v481
        %999 = vmatmul.mubr.f32.gmra.mrb[0].mxu0 %v358
        %v1000 = vpop.f32.mrb[0].mxu0
        %v1001 = vadd.f32 %v842, %v1000
        %v1002 = vpop.f32.mrb[0].mxu0
        %1003 = vmatprep.mubr.f32.mxu0 %v483
        %1004 = vmatmul.mubr.f32.gmra.mrb[0].mxu0 %v359
        %v1005 = vpop.f32.mrb[0].mxu0
        %v1006 = vadd.f32 %v842, %v1005
        %v1007 = vpop.f32.mrb[0].mxu0
        %1008 = vmatprep.mubr.f32.mxu0 %v486
        %1009 = vmatmul.mubr.f32.gmra.mrb[0].mxu0 %v361
        %v1010 = vpop.f32.mrb[0].mxu0
        %v1011 = vadd.f32 %v842, %v1010
        %v1012 = vpop.f32.mrb[0].mxu0
        %1013 = vmatprep.mubr.f32.mxu0 %v488
        %1014 = vmatmul.mubr.f32.gmra.mrb[0].mxu0 %v362
        %v1015 = vpop.f32.mrb[0].mxu0
        %v1016 = vadd.f32 %v842, %v1015
        %v1017 = vpop.f32.mrb[0].mxu0
        %1018 = vmatprep.mubr.f32.mxu0 %v491
        %1019 = vmatmul.mubr.f32.gmra.mrb[0].mxu0 %v364
        %v1020 = vpop.f32.mrb[0].mxu0
        %v1021 = vadd.f32 %v842, %v1020
        %v1022 = vpop.f32.mrb[0].mxu0
        %1023 = vmatprep.mubr.f32.mxu0 %v493
        %1024 = vmatmul.mubr.f32.gmra.mrb[0].mxu0 %v365
        %v1025 = vpop.f32.mrb[0].mxu0
        %v1026 = vadd.f32 %v842, %v1025
        %v1027 = vpop.f32.mrb[0].mxu0
        %1028 = vmatprep.mubr.f32.mxu0 %v496
        %1029 = vmatmul.mubr.f32.gmra.mrb[0].mxu0 %v367
        %v1030 = vpop.f32.mrb[0].mxu0
        %v1031 = vadd.f32 %v842, %v1030
        %v1032 = vpop.f32.mrb[0].mxu0
        %1033 = vmatprep.mubr.f32.mxu0 %v498
        %1034 = vmatmul.mubr.f32.gmra.mrb[0].mxu0 %v368
        %v1035 = vpop.f32.mrb[0].mxu0
        %v1036 = vadd.f32 %v842, %v1035
        %v1037 = vpop.f32.mrb[0].mxu0
        %1038 = vmatprep.mubr.f32.mxu0 %v501
        %1039 = vmatmul.mubr.f32.gmra.mrb[0].mxu0 %v370
        %v1040 = vpop.f32.mrb[0].mxu0
        %v1041 = vadd.f32 %v842, %v1040
        %v1042 = vpop.f32.mrb[0].mxu0
        %1043 = vmatprep.mubr.f32.mxu0 %v503
        %1044 = vmatmul.mubr.f32.gmra.mrb[0].mxu0 %v371
        %v1045 = vpop.f32.mrb[0].mxu0
        %v1046 = vadd.f32 %v842, %v1045
        %v1047 = vpop.f32.mrb[0].mxu0
        %1048 = vmatprep.mubr.f32.mxu0 %v506
        %1049 = vmatmul.mubr.f32.gmra.mrb[0].mxu0 %v373
        %v1050 = vpop.f32.mrb[0].mxu0
        %v1051 = vadd.f32 %v842, %v1050
        %v1052 = vpop.f32.mrb[0].mxu0
        %1053 = vmatprep.mubr.f32.mxu0 %v508
        %1054 = vmatmul.mubr.f32.gmra.mrb[0].mxu0 %v374
        %v1055 = vpop.f32.mrb[0].mxu0
        %v1056 = vadd.f32 %v842, %v1055
        %v1057 = vpop.f32.mrb[0].mxu0
        %1058 = vmatprep.mubr.f32.mxu0 %v511
        %1059 = vmatmul.mubr.f32.gmra.mrb[0].mxu0 %v376
        %v1060 = vpop.f32.mrb[0].mxu0
        %v1061 = vadd.f32 %v842, %v1060
        %v1062 = vpop.f32.mrb[0].mxu0
        %1063 = vmatprep.mubr.f32.mxu0 %v513
        %1064 = vmatmul.mubr.f32.gmra.mrb[0].mxu0 %v377
        %v1065 = vpop.f32.mrb[0].mxu0
        %v1066 = vadd.f32 %v842, %v1065
        %v1067 = vpop.f32.mrb[0].mxu0
        %1068 = vdwg.mxu0
        %1069 = vmatprep.subr.mxu0 0.0
        %1070 = vmatpush1.msra.mxu0 %v725
        %1071 = vmatprep.subr.mxu0 0.0
        %1072 = vmatpush1.msra.mxu0 %v726
        %1073 = vmatprep.subr.mxu0 0.0
        %1074 = vmatpush1.msra.mxu0 %v727
        %1075 = vmatprep.subr.mxu0 0.0
        %1076 = vmatpush1.msra.mxu0 %v728
        %1077 = vmatprep.subr.mxu0 0.0
        %1078 = vmatpush1.msra.mxu0 %v729
        %1079 = vmatprep.subr.mxu0 0.0
        %1080 = vmatpush1.msra.mxu0 %v730
        %1081 = vmatprep.subr.mxu0 0.0
        %1082 = vmatpush1.msra.mxu0 %v731
        %1083 = vmatprep.subr.mxu0 0.0
        %1084 = vmatpush1.msra.mxu0 %v732
        %1085 = vmatprep.subr.mxu0 0.0
        %1086 = vmatpush1.msra.mxu0 %v733
        %1087 = vmatprep.subr.mxu0 0.0
        %1088 = vmatpush1.msra.mxu0 %v734
        %1089 = vmatprep.subr.mxu0 0.0
        %1090 = vmatpush1.msra.mxu0 %v735
        %1091 = vmatprep.subr.mxu0 0.0
        %1092 = vmatpush1.msra.mxu0 %v736
        %1093 = vmatprep.subr.mxu0 0.0
        %1094 = vmatpush1.msra.mxu0 %v737
        %1095 = vmatprep.subr.mxu0 0.0
        %1096 = vmatpush1.msra.mxu0 %v738
        %1097 = vmatprep.subr.mxu0 0.0
        %1098 = vmatpush1.msra.mxu0 %v739
        %1099 = vmatprep.subr.mxu0 0.0
        %1100 = vmatpush1.msra.mxu0 %v740
        %1101 = vmatprep.subr.mxu0 0.0
        %1102 = vmatpush1.msra.mxu0 %v741
        %1103 = vmatprep.subr.mxu0 0.0
        %1104 = vmatpush1.msra.mxu0 %v742
        %1105 = vmatprep.subr.mxu0 0.0
        %1106 = vmatpush1.msra.mxu0 %v743
        %1107 = vmatprep.subr.mxu0 0.0
        %1108 = vmatpush1.msra.mxu0 %v744
        %1109 = vmatprep.subr.mxu0 0.0
        %1110 = vmatpush1.msra.mxu0 %v745
        %1111 = vmatprep.subr.mxu0 0.0
        %1112 = vmatpush1.msra.mxu0 %v746
        %1113 = vmatprep.subr.mxu0 0.0
        %1114 = vmatpush1.msra.mxu0 %v747
        %1115 = vmatprep.subr.mxu0 0.0
        %1116 = vmatpush1.msra.mxu0 %v748
        %1117 = vmatprep.subr.mxu0 0.0
        %1118 = vmatpush1.msra.mxu0 %v749
        %1119 = vmatprep.subr.mxu0 0.0
        %1120 = vmatpush1.msra.mxu0 %v750
        %1121 = vmatprep.subr.mxu0 0.0
        %1122 = vmatpush1.msra.mxu0 %v751
        %1123 = vmatprep.subr.mxu0 0.0
        %1124 = vmatpush1.msra.mxu0 %v752
        %1125 = vmatprep.subr.mxu0 0.0
        %1126 = vmatpush1.msra.mxu0 %v753
        %1127 = vmatprep.subr.mxu0 0.0
        %1128 = vmatpush1.msra.mxu0 %v754
        %1129 = vmatprep.subr.mxu0 0.0
        %1130 = vmatpush1.msra.mxu0 %v755
        %1131 = vmatprep.subr.mxu0 0.0
        %1132 = vmatpush1.msra.mxu0 %v756
        %1133 = vmatprep.mubr.f32.mxu0 %v334
        %1134 = vmatmul.mubr.f32.gmra.mrb[0].mxu0 %v549
        %v1135 = vpop.f32.mrb[0].mxu0
        %v1136 = vadd.f32 %v911, %v1135
        %v1137 = vpop.f32.mrb[0].mxu0
        %1138 = vmatprep.mubr.f32.mxu0 %v335
        %1139 = vmatmul.mubr.f32.gmra.mrb[0].mxu0 %v551
        %v1140 = vpop.f32.mrb[0].mxu0
        %v1141 = vadd.f32 %v916, %v1140
        %v1142 = vpop.f32.mrb[0].mxu0
        %1143 = vmatprep.mubr.f32.mxu0 %v337
        %1144 = vmatmul.mubr.f32.gmra.mrb[0].mxu0 %v554
        %v1145 = vpop.f32.mrb[0].mxu0
        %v1146 = vadd.f32 %v921, %v1145
        %v1147 = vpop.f32.mrb[0].mxu0
        %1148 = vmatprep.mubr.f32.mxu0 %v338
        %1149 = vmatmul.mubr.f32.gmra.mrb[0].mxu0 %v556
        %v1150 = vpop.f32.mrb[0].mxu0
        %v1151 = vadd.f32 %v926, %v1150
        %v1152 = vpop.f32.mrb[0].mxu0
        %1153 = vmatprep.mubr.f32.mxu0 %v340
        %1154 = vmatmul.mubr.f32.gmra.mrb[0].mxu0 %v559
        %v1155 = vpop.f32.mrb[0].mxu0
        %v1156 = vadd.f32 %v931, %v1155
        %v1157 = vpop.f32.mrb[0].mxu0
        %1158 = vmatprep.mubr.f32.mxu0 %v341
        %1159 = vmatmul.mubr.f32.gmra.mrb[0].mxu0 %v561
        %v1160 = vpop.f32.mrb[0].mxu0
        %v1161 = vadd.f32 %v936, %v1160
        %v1162 = vpop.f32.mrb[0].mxu0
        %1163 = vmatprep.mubr.f32.mxu0 %v343
        %1164 = vmatmul.mubr.f32.gmra.mrb[0].mxu0 %v564
        %v1165 = vpop.f32.mrb[0].mxu0
        %v1166 = vadd.f32 %v941, %v1165
        %v1167 = vpop.f32.mrb[0].mxu0
        %1168 = vmatprep.mubr.f32.mxu0 %v344
        %1169 = vmatmul.mubr.f32.gmra.mrb[0].mxu0 %v566
        %v1170 = vpop.f32.mrb[0].mxu0
        %v1171 = vadd.f32 %v946, %v1170
        %v1172 = vpop.f32.mrb[0].mxu0
        %1173 = vmatprep.mubr.f32.mxu0 %v346
        %1174 = vmatmul.mubr.f32.gmra.mrb[0].mxu0 %v569
        %v1175 = vpop.f32.mrb[0].mxu0
        %v1176 = vadd.f32 %v951, %v1175
        %v1177 = vpop.f32.mrb[0].mxu0
        %1178 = vmatprep.mubr.f32.mxu0 %v347
        %1179 = vmatmul.mubr.f32.gmra.mrb[0].mxu0 %v571
        %v1180 = vpop.f32.mrb[0].mxu0
        %v1181 = vadd.f32 %v956, %v1180
        %v1182 = vpop.f32.mrb[0].mxu0
        %1183 = vmatprep.mubr.f32.mxu0 %v349
        %1184 = vmatmul.mubr.f32.gmra.mrb[0].mxu0 %v574
        %v1185 = vpop.f32.mrb[0].mxu0
        %v1186 = vadd.f32 %v961, %v1185
        %v1187 = vpop.f32.mrb[0].mxu0
        %1188 = vmatprep.mubr.f32.mxu0 %v350
        %1189 = vmatmul.mubr.f32.gmra.mrb[0].mxu0 %v576
        %v1190 = vpop.f32.mrb[0].mxu0
        %v1191 = vadd.f32 %v966, %v1190
        %v1192 = vpop.f32.mrb[0].mxu0
        %1193 = vmatprep.mubr.f32.mxu0 %v352
        %1194 = vmatmul.mubr.f32.gmra.mrb[0].mxu0 %v579
        %v1195 = vpop.f32.mrb[0].mxu0
        %v1196 = vadd.f32 %v971, %v1195
        %v1197 = vpop.f32.mrb[0].mxu0
        %1198 = vmatprep.mubr.f32.mxu0 %v353
        %1199 = vmatmul.mubr.f32.gmra.mrb[0].mxu0 %v581
        %v1200 = vpop.f32.mrb[0].mxu0
        %v1201 = vadd.f32 %v976, %v1200
        %v1202 = vpop.f32.mrb[0].mxu0
        %1203 = vmatprep.mubr.f32.mxu0 %v355
        %1204 = vmatmul.mubr.f32.gmra.mrb[0].mxu0 %v584
        %v1205 = vpop.f32.mrb[0].mxu0
        %v1206 = vadd.f32 %v981, %v1205
        %v1207 = vpop.f32.mrb[0].mxu0
        %1208 = vmatprep.mubr.f32.mxu0 %v356
        %1209 = vmatmul.mubr.f32.gmra.mrb[0].mxu0 %v586
        %v1210 = vpop.f32.mrb[0].mxu0
        %v1211 = vadd.f32 %v986, %v1210
        %v1212 = vpop.f32.mrb[0].mxu0
        %1213 = vmatprep.mubr.f32.mxu0 %v358
        %1214 = vmatmul.mubr.f32.gmra.mrb[0].mxu0 %v589
        %v1215 = vpop.f32.mrb[0].mxu0
        %v1216 = vadd.f32 %v991, %v1215
        %v1217 = vpop.f32.mrb[0].mxu0
        %1218 = vmatprep.mubr.f32.mxu0 %v359
        %1219 = vmatmul.mubr.f32.gmra.mrb[0].mxu0 %v591
        %v1220 = vpop.f32.mrb[0].mxu0
        %v1221 = vadd.f32 %v996, %v1220
        %v1222 = vpop.f32.mrb[0].mxu0
        %1223 = vmatprep.mubr.f32.mxu0 %v361
        %1224 = vmatmul.mubr.f32.gmra.mrb[0].mxu0 %v594
        %v1225 = vpop.f32.mrb[0].mxu0
        %v1226 = vadd.f32 %v1001, %v1225
        %v1227 = vpop.f32.mrb[0].mxu0
        %1228 = vmatprep.mubr.f32.mxu0 %v362
        %1229 = vmatmul.mubr.f32.gmra.mrb[0].mxu0 %v596
        %v1230 = vpop.f32.mrb[0].mxu0
        %v1231 = vadd.f32 %v1006, %v1230
        %v1232 = vpop.f32.mrb[0].mxu0
        %1233 = vmatprep.mubr.f32.mxu0 %v364
        %1234 = vmatmul.mubr.f32.gmra.mrb[0].mxu0 %v599
        %v1235 = vpop.f32.mrb[0].mxu0
        %v1236 = vadd.f32 %v1011, %v1235
        %v1237 = vpop.f32.mrb[0].mxu0
        %1238 = vmatprep.mubr.f32.mxu0 %v365
        %1239 = vmatmul.mubr.f32.gmra.mrb[0].mxu0 %v601
        %v1240 = vpop.f32.mrb[0].mxu0
        %v1241 = vadd.f32 %v1016, %v1240
        %v1242 = vpop.f32.mrb[0].mxu0
        %1243 = vmatprep.mubr.f32.mxu0 %v367
        %1244 = vmatmul.mubr.f32.gmra.mrb[0].mxu0 %v604
        %v1245 = vpop.f32.mrb[0].mxu0
        %v1246 = vadd.f32 %v1021, %v1245
        %v1247 = vpop.f32.mrb[0].mxu0
        %1248 = vmatprep.mubr.f32.mxu0 %v368
        %1249 = vmatmul.mubr.f32.gmra.mrb[0].mxu0 %v606
        %v1250 = vpop.f32.mrb[0].mxu0
        %v1251 = vadd.f32 %v1026, %v1250
        %v1252 = vpop.f32.mrb[0].mxu0
        %1253 = vmatprep.mubr.f32.mxu0 %v370
        %1254 = vmatmul.mubr.f32.gmra.mrb[0].mxu0 %v609
        %v1255 = vpop.f32.mrb[0].mxu0
        %v1256 = vadd.f32 %v1031, %v1255
        %v1257 = vpop.f32.mrb[0].mxu0
        %1258 = vmatprep.mubr.f32.mxu0 %v371
        %1259 = vmatmul.mubr.f32.gmra.mrb[0].mxu0 %v611
        %v1260 = vpop.f32.mrb[0].mxu0
        %v1261 = vadd.f32 %v1036, %v1260
        %v1262 = vpop.f32.mrb[0].mxu0
        %1263 = vmatprep.mubr.f32.mxu0 %v373
        %1264 = vmatmul.mubr.f32.gmra.mrb[0].mxu0 %v614
        %v1265 = vpop.f32.mrb[0].mxu0
        %v1266 = vadd.f32 %v1041, %v1265
        %v1267 = vpop.f32.mrb[0].mxu0
        %1268 = vmatprep.mubr.f32.mxu0 %v374
        %1269 = vmatmul.mubr.f32.gmra.mrb[0].mxu0 %v616
        %v1270 = vpop.f32.mrb[0].mxu0
        %v1271 = vadd.f32 %v1046, %v1270
        %v1272 = vpop.f32.mrb[0].mxu0
        %1273 = vmatprep.mubr.f32.mxu0 %v376
        %1274 = vmatmul.mubr.f32.gmra.mrb[0].mxu0 %v619
        %v1275 = vpop.f32.mrb[0].mxu0
        %v1276 = vadd.f32 %v1051, %v1275
        %v1277 = vpop.f32.mrb[0].mxu0
        %1278 = vmatprep.mubr.f32.mxu0 %v377
        %1279 = vmatmul.mubr.f32.gmra.mrb[0].mxu0 %v621
        %v1280 = vpop.f32.mrb[0].mxu0
        %v1281 = vadd.f32 %v1056, %v1280
        %v1282 = vpop.f32.mrb[0].mxu0
        %1283 = vmatprep.mubr.f32.mxu0 %v379
        %1284 = vmatmul.mubr.f32.gmra.mrb[0].mxu0 %v624
        %v1285 = vpop.f32.mrb[0].mxu0
        %v1286 = vadd.f32 %v1061, %v1285
        %v1287 = vpop.f32.mrb[0].mxu0
        %1288 = vmatprep.mubr.f32.mxu0 %v380
        %1289 = vmatmul.mubr.f32.gmra.mrb[0].mxu0 %v626
        %v1290 = vpop.f32.mrb[0].mxu0
        %v1291 = vadd.f32 %v1066, %v1290
        %v1292 = vpop.f32.mrb[0].mxu0
        %1293 = vdwg.mxu0
        %1294 = vmatprep.subr.mxu0 0.0
        %1295 = vmatpush1.msra.mxu0 %v757
        %1296 = vmatprep.subr.mxu0 0.0
        %1297 = vmatpush1.msra.mxu0 %v758
        %1298 = vmatprep.subr.mxu0 0.0
        %1299 = vmatpush1.msra.mxu0 %v759
        %1300 = vmatprep.subr.mxu0 0.0
        %1301 = vmatpush1.msra.mxu0 %v760
        %1302 = vmatprep.subr.mxu0 0.0
        %1303 = vmatpush1.msra.mxu0 %v761
        %1304 = vmatprep.subr.mxu0 0.0
        %1305 = vmatpush1.msra.mxu0 %v762
        %1306 = vmatprep.subr.mxu0 0.0
        %1307 = vmatpush1.msra.mxu0 %v763
        %1308 = vmatprep.subr.mxu0 0.0
        %1309 = vmatpush1.msra.mxu0 %v764
        %1310 = vmatprep.subr.mxu0 0.0
        %1311 = vmatpush1.msra.mxu0 %v765
        %1312 = vmatprep.subr.mxu0 0.0
        %1313 = vmatpush1.msra.mxu0 %v766
        %1314 = vmatprep.subr.mxu0 0.0
        %1315 = vmatpush1.msra.mxu0 %v767
        %1316 = vmatprep.subr.mxu0 0.0
        %1317 = vmatpush1.msra.mxu0 %v768
        %1318 = vmatprep.subr.mxu0 0.0
        %1319 = vmatpush1.msra.mxu0 %v769
        %1320 = vmatprep.subr.mxu0 0.0
        %1321 = vmatpush1.msra.mxu0 %v770
        %1322 = vmatprep.subr.mxu0 0.0
        %1323 = vmatpush1.msra.mxu0 %v771
        %1324 = vmatprep.subr.mxu0 0.0
        %1325 = vmatpush1.msra.mxu0 %v772
        %1326 = vmatprep.subr.mxu0 0.0
        %1327 = vmatpush1.msra.mxu0 %v773
        %1328 = vmatprep.subr.mxu0 0.0
        %1329 = vmatpush1.msra.mxu0 %v774
        %1330 = vmatprep.subr.mxu0 0.0
        %1331 = vmatpush1.msra.mxu0 %v775
        %1332 = vmatprep.subr.mxu0 0.0
        %1333 = vmatpush1.msra.mxu0 %v776
        %1334 = vmatprep.subr.mxu0 0.0
        %1335 = vmatpush1.msra.mxu0 %v777
        %1336 = vmatprep.subr.mxu0 0.0
        %1337 = vmatpush1.msra.mxu0 %v778
        %1338 = vmatprep.subr.mxu0 0.0
        %1339 = vmatpush1.msra.mxu0 %v779
        %1340 = vmatprep.subr.mxu0 0.0
        %1341 = vmatpush1.msra.mxu0 %v780
        %1342 = vmatprep.subr.mxu0 0.0
        %1343 = vmatpush1.msra.mxu0 %v781
        %1344 = vmatprep.subr.mxu0 0.0
        %1345 = vmatpush1.msra.mxu0 %v782
        %1346 = vmatprep.subr.mxu0 0.0
        %1347 = vmatpush1.msra.mxu0 %v783
        %1348 = vmatprep.subr.mxu0 0.0
        %1349 = vmatpush1.msra.mxu0 %v784
        %1350 = vmatprep.subr.mxu0 0.0
        %1351 = vmatpush1.msra.mxu0 %v785
        %1352 = vmatprep.subr.mxu0 0.0
        %1353 = vmatpush1.msra.mxu0 %v786
        %1354 = vmatprep.subr.mxu0 0.0
        %1355 = vmatpush1.msra.mxu0 %v787
        %1356 = vmatprep.subr.mxu0 0.0
        %1357 = vmatpush1.msra.mxu0 %v788
        %1358 = vmatprep.mubr.f32.mxu0 %v554
        %1359 = vmatmul.mubr.f32.gmra.mrb[0].mxu0 %v441
        %v1360 = vpop.f32.mrb[0].mxu0
        %v1361 = vadd.f32 %v1136, %v1360
        %v1362 = vpop.f32.mrb[0].mxu0
        %1363 = vmatprep.mubr.f32.mxu0 %v556
        %1364 = vmatmul.mubr.f32.gmra.mrb[0].mxu0 %v443
        %v1365 = vpop.f32.mrb[0].mxu0
        %v1366 = vadd.f32 %v1141, %v1365
        %v1367 = vpop.f32.mrb[0].mxu0
        %1368 = vmatprep.mubr.f32.mxu0 %v559
        %1369 = vmatmul.mubr.f32.gmra.mrb[0].mxu0 %v446
        %v1370 = vpop.f32.mrb[0].mxu0
        %v1371 = vadd.f32 %v1146, %v1370
        %v1372 = vpop.f32.mrb[0].mxu0
        %1373 = vmatprep.mubr.f32.mxu0 %v561
        %1374 = vmatmul.mubr.f32.gmra.mrb[0].mxu0 %v448
        %v1375 = vpop.f32.mrb[0].mxu0
        %v1376 = vadd.f32 %v1151, %v1375
        %v1377 = vpop.f32.mrb[0].mxu0
        %1378 = vmatprep.mubr.f32.mxu0 %v564
        %1379 = vmatmul.mubr.f32.gmra.mrb[0].mxu0 %v451
        %v1380 = vpop.f32.mrb[0].mxu0
        %v1381 = vadd.f32 %v1156, %v1380
        %v1382 = vpop.f32.mrb[0].mxu0
        %1383 = vmatprep.mubr.f32.mxu0 %v566
        %1384 = vmatmul.mubr.f32.gmra.mrb[0].mxu0 %v453
        %v1385 = vpop.f32.mrb[0].mxu0
        %v1386 = vadd.f32 %v1161, %v1385
        %v1387 = vpop.f32.mrb[0].mxu0
        %1388 = vmatprep.mubr.f32.mxu0 %v569
        %1389 = vmatmul.mubr.f32.gmra.mrb[0].mxu0 %v456
        %v1390 = vpop.f32.mrb[0].mxu0
        %v1391 = vadd.f32 %v1166, %v1390
        %v1392 = vpop.f32.mrb[0].mxu0
        %1393 = vmatprep.mubr.f32.mxu0 %v571
        %1394 = vmatmul.mubr.f32.gmra.mrb[0].mxu0 %v458
        %v1395 = vpop.f32.mrb[0].mxu0
        %v1396 = vadd.f32 %v1171, %v1395
        %v1397 = vpop.f32.mrb[0].mxu0
        %1398 = vmatprep.mubr.f32.mxu0 %v574
        %1399 = vmatmul.mubr.f32.gmra.mrb[0].mxu0 %v461
        %v1400 = vpop.f32.mrb[0].mxu0
        %v1401 = vadd.f32 %v1176, %v1400
        %v1402 = vpop.f32.mrb[0].mxu0
        %1403 = vmatprep.mubr.f32.mxu0 %v576
        %1404 = vmatmul.mubr.f32.gmra.mrb[0].mxu0 %v463
        %v1405 = vpop.f32.mrb[0].mxu0
        %v1406 = vadd.f32 %v1181, %v1405
        %v1407 = vpop.f32.mrb[0].mxu0
        %1408 = vmatprep.mubr.f32.mxu0 %v579
        %1409 = vmatmul.mubr.f32.gmra.mrb[0].mxu0 %v466
        %v1410 = vpop.f32.mrb[0].mxu0
        %v1411 = vadd.f32 %v1186, %v1410
        %v1412 = vpop.f32.mrb[0].mxu0
        %1413 = vmatprep.mubr.f32.mxu0 %v581
        %1414 = vmatmul.mubr.f32.gmra.mrb[0].mxu0 %v468
        %v1415 = vpop.f32.mrb[0].mxu0
        %v1416 = vadd.f32 %v1191, %v1415
        %v1417 = vpop.f32.mrb[0].mxu0
        %1418 = vmatprep.mubr.f32.mxu0 %v584
        %1419 = vmatmul.mubr.f32.gmra.mrb[0].mxu0 %v471
        %v1420 = vpop.f32.mrb[0].mxu0
        %v1421 = vadd.f32 %v1196, %v1420
        %v1422 = vpop.f32.mrb[0].mxu0
        %1423 = vmatprep.mubr.f32.mxu0 %v586
        %1424 = vmatmul.mubr.f32.gmra.mrb[0].mxu0 %v473
        %v1425 = vpop.f32.mrb[0].mxu0
        %v1426 = vadd.f32 %v1201, %v1425
        %v1427 = vpop.f32.mrb[0].mxu0
        %1428 = vmatprep.mubr.f32.mxu0 %v589
        %1429 = vmatmul.mubr.f32.gmra.mrb[0].mxu0 %v476
        %v1430 = vpop.f32.mrb[0].mxu0
        %v1431 = vadd.f32 %v1206, %v1430
        %v1432 = vpop.f32.mrb[0].mxu0
        %1433 = vmatprep.mubr.f32.mxu0 %v591
        %1434 = vmatmul.mubr.f32.gmra.mrb[0].mxu0 %v478
        %v1435 = vpop.f32.mrb[0].mxu0
        %v1436 = vadd.f32 %v1211, %v1435
        %v1437 = vpop.f32.mrb[0].mxu0
        %1438 = vmatprep.mubr.f32.mxu0 %v594
        %1439 = vmatmul.mubr.f32.gmra.mrb[0].mxu0 %v481
        %v1440 = vpop.f32.mrb[0].mxu0
        %v1441 = vadd.f32 %v1216, %v1440
        %v1442 = vpop.f32.mrb[0].mxu0
        %1443 = vmatprep.mubr.f32.mxu0 %v596
        %1444 = vmatmul.mubr.f32.gmra.mrb[0].mxu0 %v483
        %v1445 = vpop.f32.mrb[0].mxu0
        %v1446 = vadd.f32 %v1221, %v1445
        %v1447 = vpop.f32.mrb[0].mxu0
        %1448 = vmatprep.mubr.f32.mxu0 %v599
        %1449 = vmatmul.mubr.f32.gmra.mrb[0].mxu0 %v486
        %v1450 = vpop.f32.mrb[0].mxu0
        %v1451 = vadd.f32 %v1226, %v1450
        %v1452 = vpop.f32.mrb[0].mxu0
        %1453 = vmatprep.mubr.f32.mxu0 %v601
        %1454 = vmatmul.mubr.f32.gmra.mrb[0].mxu0 %v488
        %v1455 = vpop.f32.mrb[0].mxu0
        %v1456 = vadd.f32 %v1231, %v1455
        %v1457 = vpop.f32.mrb[0].mxu0
        %1458 = vmatprep.mubr.f32.mxu0 %v604
        %1459 = vmatmul.mubr.f32.gmra.mrb[0].mxu0 %v491
        %v1460 = vpop.f32.mrb[0].mxu0
        %v1461 = vadd.f32 %v1236, %v1460
        %v1462 = vpop.f32.mrb[0].mxu0
        %1463 = vmatprep.mubr.f32.mxu0 %v606
        %1464 = vmatmul.mubr.f32.gmra.mrb[0].mxu0 %v493
        %v1465 = vpop.f32.mrb[0].mxu0
        %v1466 = vadd.f32 %v1241, %v1465
        %v1467 = vpop.f32.mrb[0].mxu0
        %1468 = vmatprep.mubr.f32.mxu0 %v609
        %1469 = vmatmul.mubr.f32.gmra.mrb[0].mxu0 %v496
        %v1470 = vpop.f32.mrb[0].mxu0
        %v1471 = vadd.f32 %v1246, %v1470
        %v1472 = vpop.f32.mrb[0].mxu0
        %1473 = vmatprep.mubr.f32.mxu0 %v611
        %1474 = vmatmul.mubr.f32.gmra.mrb[0].mxu0 %v498
        %v1475 = vpop.f32.mrb[0].mxu0
        %v1476 = vadd.f32 %v1251, %v1475
        %v1477 = vpop.f32.mrb[0].mxu0
        %1478 = vmatprep.mubr.f32.mxu0 %v614
        %1479 = vmatmul.mubr.f32.gmra.mrb[0].mxu0 %v501
        %v1480 = vpop.f32.mrb[0].mxu0
        %v1481 = vadd.f32 %v1256, %v1480
        %v1482 = vpop.f32.mrb[0].mxu0
        %1483 = vmatprep.mubr.f32.mxu0 %v616
        %1484 = vmatmul.mubr.f32.gmra.mrb[0].mxu0 %v503
        %v1485 = vpop.f32.mrb[0].mxu0
        %v1486 = vadd.f32 %v1261, %v1485
        %v1487 = vpop.f32.mrb[0].mxu0
        %1488 = vmatprep.mubr.f32.mxu0 %v619
        %1489 = vmatmul.mubr.f32.gmra.mrb[0].mxu0 %v506
        %v1490 = vpop.f32.mrb[0].mxu0
        %v1491 = vadd.f32 %v1266, %v1490
        %v1492 = vpop.f32.mrb[0].mxu0
        %1493 = vmatprep.mubr.f32.mxu0 %v621
        %1494 = vmatmul.mubr.f32.gmra.mrb[0].mxu0 %v508
        %v1495 = vpop.f32.mrb[0].mxu0
        %v1496 = vadd.f32 %v1271, %v1495
        %v1497 = vpop.f32.mrb[0].mxu0
        %1498 = vmatprep.mubr.f32.mxu0 %v624
        %1499 = vmatmul.mubr.f32.gmra.mrb[0].mxu0 %v511
        %v1500 = vpop.f32.mrb[0].mxu0
        %v1501 = vadd.f32 %v1276, %v1500
        %v1502 = vpop.f32.mrb[0].mxu0
        %1503 = vmatprep.mubr.f32.mxu0 %v626
        %1504 = vmatmul.mubr.f32.gmra.mrb[0].mxu0 %v513
        %v1505 = vpop.f32.mrb[0].mxu0
        %v1506 = vadd.f32 %v1281, %v1505
        %v1507 = vpop.f32.mrb[0].mxu0
        %1508 = vmatprep.mubr.f32.mxu0 %v671
        %1509 = vmatmul.mubr.f32.gmra.mrb[0].mxu0 %v664
        %v1510 = vpop.f32.mrb[0].mxu0
        %v1511 = vadd.f32 %v1286, %v1510
        %v1512 = vpop.f32.mrb[0].mxu0
        %1513 = vmatprep.mubr.f32.mxu0 %v673
        %1514 = vmatmul.mubr.f32.gmra.mrb[0].mxu0 %v666
        %v1515 = vpop.f32.mrb[0].mxu0
        %v1516 = vadd.f32 %v1291, %v1515
        %v1517 = vpop.f32.mrb[0].mxu0
        %1518 = vdwg.mxu0
        %1519 = vmatprep.subr.mxu0 0.0
        %1520 = vmatpush1.msra.mxu0 %v789
        %1521 = vmatprep.subr.mxu0 0.0
        %1522 = vmatpush1.msra.mxu0 %v790
        %1523 = vmatprep.subr.mxu0 0.0
        %1524 = vmatpush1.msra.mxu0 %v791
        %1525 = vmatprep.subr.mxu0 0.0
        %1526 = vmatpush1.msra.mxu0 %v792
        %1527 = vmatprep.subr.mxu0 0.0
        %1528 = vmatpush1.msra.mxu0 %v793
        %1529 = vmatprep.subr.mxu0 0.0
        %1530 = vmatpush1.msra.mxu0 %v794
        %1531 = vmatprep.subr.mxu0 0.0
        %1532 = vmatpush1.msra.mxu0 %v795
        %1533 = vmatprep.subr.mxu0 0.0
        %1534 = vmatpush1.msra.mxu0 %v796
        %1535 = vmatprep.subr.mxu0 0.0
        %1536 = vmatpush1.msra.mxu0 %v797
        %1537 = vmatprep.subr.mxu0 0.0
        %1538 = vmatpush1.msra.mxu0 %v798
        %1539 = vmatprep.subr.mxu0 0.0
        %1540 = vmatpush1.msra.mxu0 %v799
        %1541 = vmatprep.subr.mxu0 0.0
        %1542 = vmatpush1.msra.mxu0 %v800
        %1543 = vmatprep.subr.mxu0 0.0
        %1544 = vmatpush1.msra.mxu0 %v801
        %1545 = vmatprep.subr.mxu0 0.0
        %1546 = vmatpush1.msra.mxu0 %v802
        %1547 = vmatprep.subr.mxu0 0.0
        %1548 = vmatpush1.msra.mxu0 %v803
        %1549 = vmatprep.subr.mxu0 0.0
        %1550 = vmatpush1.msra.mxu0 %v804
        %1551 = vmatprep.subr.mxu0 0.0
        %1552 = vmatpush1.msra.mxu0 %v805
        %1553 = vmatprep.subr.mxu0 0.0
        %1554 = vmatpush1.msra.mxu0 %v806
        %1555 = vmatprep.subr.mxu0 0.0
        %1556 = vmatpush1.msra.mxu0 %v807
        %1557 = vmatprep.subr.mxu0 0.0
        %1558 = vmatpush1.msra.mxu0 %v808
        %1559 = vmatprep.subr.mxu0 0.0
        %1560 = vmatpush1.msra.mxu0 %v809
        %1561 = vmatprep.subr.mxu0 0.0
        %1562 = vmatpush1.msra.mxu0 %v810
        %1563 = vmatprep.subr.mxu0 0.0
        %1564 = vmatpush1.msra.mxu0 %v811
        %1565 = vmatprep.subr.mxu0 0.0
        %1566 = vmatpush1.msra.mxu0 %v812
        %1567 = vmatprep.subr.mxu0 0.0
        %1568 = vmatpush1.msra.mxu0 %v813
        %1569 = vmatprep.subr.mxu0 0.0
        %1570 = vmatpush1.msra.mxu0 %v814
        %1571 = vmatprep.subr.mxu0 0.0
        %1572 = vmatpush1.msra.mxu0 %v815
        %1573 = vmatprep.subr.mxu0 0.0
        %1574 = vmatpush1.msra.mxu0 %v816
        %1575 = vmatprep.subr.mxu0 0.0
        %1576 = vmatpush1.msra.mxu0 %v817
        %1577 = vmatprep.subr.mxu0 0.0
        %1578 = vmatpush1.msra.mxu0 %v818
        %1579 = vmatprep.subr.mxu0 0.0
        %1580 = vmatpush1.msra.mxu0 %v819
        %1581 = vmatprep.subr.mxu0 0.0
        %1582 = vmatpush1.msra.mxu0 %v820
        %1583 = vmatprep.mubr.f32.mxu0 %v446
        %1584 = vmatmul.mubr.f32.gmra.mrb[0].mxu0 %v337
        %v1585 = vpop.f32.mrb[0].mxu0
        %v1586 = vadd.f32 %v1361, %v1585
        %v1587 = vpop.f32.mrb[0].mxu0
        %1588 = vmatprep.mubr.f32.mxu0 %v448
        %1589 = vmatmul.mubr.f32.gmra.mrb[0].mxu0 %v338
        %v1590 = vpop.f32.mrb[0].mxu0
        %v1591 = vadd.f32 %v1366, %v1590
        %v1592 = vpop.f32.mrb[0].mxu0
        %1593 = vmatprep.mubr.f32.mxu0 %v451
        %1594 = vmatmul.mubr.f32.gmra.mrb[0].mxu0 %v340
        %v1595 = vpop.f32.mrb[0].mxu0
        %v1596 = vadd.f32 %v1371, %v1595
        %v1597 = vpop.f32.mrb[0].mxu0
        %1598 = vmatprep.mubr.f32.mxu0 %v453
        %1599 = vmatmul.mubr.f32.gmra.mrb[0].mxu0 %v341
        %v1600 = vpop.f32.mrb[0].mxu0
        %v1601 = vadd.f32 %v1376, %v1600
        %v1602 = vpop.f32.mrb[0].mxu0
        %1603 = vmatprep.mubr.f32.mxu0 %v456
        %1604 = vmatmul.mubr.f32.gmra.mrb[0].mxu0 %v343
        %v1605 = vpop.f32.mrb[0].mxu0
        %v1606 = vadd.f32 %v1381, %v1605
        %v1607 = vpop.f32.mrb[0].mxu0
        %1608 = vmatprep.mubr.f32.mxu0 %v458
        %1609 = vmatmul.mubr.f32.gmra.mrb[0].mxu0 %v344
        %v1610 = vpop.f32.mrb[0].mxu0
        %v1611 = vadd.f32 %v1386, %v1610
        %v1612 = vpop.f32.mrb[0].mxu0
        %1613 = vmatprep.mubr.f32.mxu0 %v461
        %1614 = vmatmul.mubr.f32.gmra.mrb[0].mxu0 %v346
        %v1615 = vpop.f32.mrb[0].mxu0
        %v1616 = vadd.f32 %v1391, %v1615
        %v1617 = vpop.f32.mrb[0].mxu0
        %1618 = vmatprep.mubr.f32.mxu0 %v463
        %1619 = vmatmul.mubr.f32.gmra.mrb[0].mxu0 %v347
        %v1620 = vpop.f32.mrb[0].mxu0
        %v1621 = vadd.f32 %v1396, %v1620
        %v1622 = vpop.f32.mrb[0].mxu0
        %1623 = vmatprep.mubr.f32.mxu0 %v466
        %1624 = vmatmul.mubr.f32.gmra.mrb[0].mxu0 %v349
        %v1625 = vpop.f32.mrb[0].mxu0
        %v1626 = vadd.f32 %v1401, %v1625
        %v1627 = vpop.f32.mrb[0].mxu0
        %1628 = vmatprep.mubr.f32.mxu0 %v468
        %1629 = vmatmul.mubr.f32.gmra.mrb[0].mxu0 %v350
        %v1630 = vpop.f32.mrb[0].mxu0
        %v1631 = vadd.f32 %v1406, %v1630
        %v1632 = vpop.f32.mrb[0].mxu0
        %1633 = vmatprep.mubr.f32.mxu0 %v471
        %1634 = vmatmul.mubr.f32.gmra.mrb[0].mxu0 %v352
        %v1635 = vpop.f32.mrb[0].mxu0
        %v1636 = vadd.f32 %v1411, %v1635
        %v1637 = vpop.f32.mrb[0].mxu0
        %1638 = vmatprep.mubr.f32.mxu0 %v473
        %1639 = vmatmul.mubr.f32.gmra.mrb[0].mxu0 %v353
        %v1640 = vpop.f32.mrb[0].mxu0
        %v1641 = vadd.f32 %v1416, %v1640
        %v1642 = vpop.f32.mrb[0].mxu0
        %1643 = vmatprep.mubr.f32.mxu0 %v476
        %1644 = vmatmul.mubr.f32.gmra.mrb[0].mxu0 %v355
        %v1645 = vpop.f32.mrb[0].mxu0
        %v1646 = vadd.f32 %v1421, %v1645
        %v1647 = vpop.f32.mrb[0].mxu0
        %1648 = vmatprep.mubr.f32.mxu0 %v478
        %1649 = vmatmul.mubr.f32.gmra.mrb[0].mxu0 %v356
        %v1650 = vpop.f32.mrb[0].mxu0
        %v1651 = vadd.f32 %v1426, %v1650
        %v1652 = vpop.f32.mrb[0].mxu0
        %1653 = vmatprep.mubr.f32.mxu0 %v481
        %1654 = vmatmul.mubr.f32.gmra.mrb[0].mxu0 %v358
        %v1655 = vpop.f32.mrb[0].mxu0
        %v1656 = vadd.f32 %v1431, %v1655
        %v1657 = vpop.f32.mrb[0].mxu0
        %1658 = vmatprep.mubr.f32.mxu0 %v483
        %1659 = vmatmul.mubr.f32.gmra.mrb[0].mxu0 %v359
        %v1660 = vpop.f32.mrb[0].mxu0
        %v1661 = vadd.f32 %v1436, %v1660
        %v1662 = vpop.f32.mrb[0].mxu0
        %1663 = vmatprep.mubr.f32.mxu0 %v486
        %1664 = vmatmul.mubr.f32.gmra.mrb[0].mxu0 %v361
        %v1665 = vpop.f32.mrb[0].mxu0
        %v1666 = vadd.f32 %v1441, %v1665
        %v1667 = vpop.f32.mrb[0].mxu0
        %1668 = vmatprep.mubr.f32.mxu0 %v488
        %1669 = vmatmul.mubr.f32.gmra.mrb[0].mxu0 %v362
        %v1670 = vpop.f32.mrb[0].mxu0
        %v1671 = vadd.f32 %v1446, %v1670
        %v1672 = vpop.f32.mrb[0].mxu0
        %1673 = vmatprep.mubr.f32.mxu0 %v491
        %1674 = vmatmul.mubr.f32.gmra.mrb[0].mxu0 %v364
        %v1675 = vpop.f32.mrb[0].mxu0
        %v1676 = vadd.f32 %v1451, %v1675
        %v1677 = vpop.f32.mrb[0].mxu0
        %1678 = vmatprep.mubr.f32.mxu0 %v493
        %1679 = vmatmul.mubr.f32.gmra.mrb[0].mxu0 %v365
        %v1680 = vpop.f32.mrb[0].mxu0
        %v1681 = vadd.f32 %v1456, %v1680
        %v1682 = vpop.f32.mrb[0].mxu0
        %1683 = vmatprep.mubr.f32.mxu0 %v496
        %1684 = vmatmul.mubr.f32.gmra.mrb[0].mxu0 %v367
        %v1685 = vpop.f32.mrb[0].mxu0
        %v1686 = vadd.f32 %v1461, %v1685
        %v1687 = vpop.f32.mrb[0].mxu0
        %1688 = vmatprep.mubr.f32.mxu0 %v498
        %1689 = vmatmul.mubr.f32.gmra.mrb[0].mxu0 %v368
        %v1690 = vpop.f32.mrb[0].mxu0
        %v1691 = vadd.f32 %v1466, %v1690
        %v1692 = vpop.f32.mrb[0].mxu0
        %1693 = vmatprep.mubr.f32.mxu0 %v501
        %1694 = vmatmul.mubr.f32.gmra.mrb[0].mxu0 %v370
        %v1695 = vpop.f32.mrb[0].mxu0
        %v1696 = vadd.f32 %v1471, %v1695
        %v1697 = vpop.f32.mrb[0].mxu0
        %1698 = vmatprep.mubr.f32.mxu0 %v503
        %1699 = vmatmul.mubr.f32.gmra.mrb[0].mxu0 %v371
        %v1700 = vpop.f32.mrb[0].mxu0
        %v1701 = vadd.f32 %v1476, %v1700
        %v1702 = vpop.f32.mrb[0].mxu0
        %1703 = vmatprep.mubr.f32.mxu0 %v506
        %1704 = vmatmul.mubr.f32.gmra.mrb[0].mxu0 %v373
        %v1705 = vpop.f32.mrb[0].mxu0
        %v1706 = vadd.f32 %v1481, %v1705
        %v1707 = vpop.f32.mrb[0].mxu0
        %1708 = vmatprep.mubr.f32.mxu0 %v508
        %1709 = vmatmul.mubr.f32.gmra.mrb[0].mxu0 %v374
        %v1710 = vpop.f32.mrb[0].mxu0
        %v1711 = vadd.f32 %v1486, %v1710
        %v1712 = vpop.f32.mrb[0].mxu0
        %1713 = vmatprep.mubr.f32.mxu0 %v511
        %1714 = vmatmul.mubr.f32.gmra.mrb[0].mxu0 %v376
        %v1715 = vpop.f32.mrb[0].mxu0
        %v1716 = vadd.f32 %v1491, %v1715
        %v1717 = vpop.f32.mrb[0].mxu0
        %1718 = vmatprep.mubr.f32.mxu0 %v513
        %1719 = vmatmul.mubr.f32.gmra.mrb[0].mxu0 %v377
        %v1720 = vpop.f32.mrb[0].mxu0
        %v1721 = vadd.f32 %v1496, %v1720
        %v1722 = vpop.f32.mrb[0].mxu0
        %1723 = vmatprep.mubr.f32.mxu0 %v664
        %1724 = vmatmul.mubr.f32.gmra.mrb[0].mxu0 %v379
        %v1725 = vpop.f32.mrb[0].mxu0
        %v1726 = vadd.f32 %v1501, %v1725
        %v1727 = vpop.f32.mrb[0].mxu0
        %1728 = vmatprep.mubr.f32.mxu0 %v666
        %1729 = vmatmul.mubr.f32.gmra.mrb[0].mxu0 %v380
        %v1730 = vpop.f32.mrb[0].mxu0
        %v1731 = vadd.f32 %v1506, %v1730
        %v1732 = vpop.f32.mrb[0].mxu0
        %1733 = vmatprep.mubr.f32.mxu0 %v681
        %1734 = vmatmul.mubr.f32.gmra.mrb[0].mxu0 %v382
        %v1735 = vpop.f32.mrb[0].mxu0
        %v1736 = vadd.f32 %v1511, %v1735
        %v1737 = vpop.f32.mrb[0].mxu0
        %1738 = vmatprep.mubr.f32.mxu0 %v683
        %1739 = vmatmul.mubr.f32.gmra.mrb[0].mxu0 %v383
        %v1740 = vpop.f32.mrb[0].mxu0
        %v1741 = vadd.f32 %v1516, %v1740
        %v1742 = vpop.f32.mrb[0].mxu0
        %1743 = vdwg.mxu0
        %1744 = vmatprep.subr.mxu0 0.0
        %1745 = vmatpush1.msra.mxu0 %v821
        %1746 = vmatprep.subr.mxu0 0.0
        %1747 = vmatpush1.msra.mxu0 %v822
        %1748 = vmatprep.subr.mxu0 0.0
        %1749 = vmatpush1.msra.mxu0 %v823
        %1750 = vmatprep.subr.mxu0 0.0
        %1751 = vmatpush1.msra.mxu0 %v824
        %1752 = vmatprep.subr.mxu0 0.0
        %1753 = vmatpush1.msra.mxu0 %v825
        %1754 = vmatprep.subr.mxu0 0.0
        %1755 = vmatpush1.msra.mxu0 %v826
        %1756 = vmatprep.subr.mxu0 0.0
        %1757 = vmatpush1.msra.mxu0 %v827
        %1758 = vmatprep.subr.mxu0 0.0
        %1759 = vmatpush1.msra.mxu0 %v828
        %1760 = vmatprep.subr.mxu0 0.0
        %1761 = vmatpush1.msra.mxu0 %v829
        %1762 = vmatprep.subr.mxu0 0.0
        %1763 = vmatpush1.msra.mxu0 %v830
        %1764 = vmatprep.subr.mxu0 0.0
        %1765 = vmatpush1.msra.mxu0 %v831
        %1766 = vmatprep.subr.mxu0 0.0
        %1767 = vmatpush1.msra.mxu0 %v832
        %1768 = vmatprep.subr.mxu0 0.0
        %1769 = vmatpush1.msra.mxu0 %v833
        %1770 = vmatprep.subr.mxu0 0.0
        %1771 = vmatpush1.msra.mxu0 %v834
        %1772 = vmatprep.subr.mxu0 0.0
        %1773 = vmatpush1.msra.mxu0 %v835
        %1774 = vmatprep.subr.mxu0 0.0
        %1775 = vmatpush1.msra.mxu0 %v836
        %1776 = vmatprep.subr.mxu0 0.0
        %1777 = vmatpush1.msra.mxu0 0.0
        %1778 = vmatprep.subr.mxu0 0.0
        %1779 = vmatpush1.msra.mxu0 0.0
        %1780 = vmatprep.subr.mxu0 0.0
        %1781 = vmatpush1.msra.mxu0 0.0
        %1782 = vmatprep.subr.mxu0 0.0
        %1783 = vmatpush1.msra.mxu0 0.0
        %1784 = vmatprep.subr.mxu0 0.0
        %1785 = vmatpush1.msra.mxu0 0.0
        %1786 = vmatprep.subr.mxu0 0.0
        %1787 = vmatpush1.msra.mxu0 0.0
        %1788 = vmatprep.subr.mxu0 0.0
        %1789 = vmatpush1.msra.mxu0 0.0
        %1790 = vmatprep.subr.mxu0 0.0
        %1791 = vmatpush1.msra.mxu0 0.0
        %1792 = vmatprep.subr.mxu0 0.0
        %1793 = vmatpush1.msra.mxu0 0.0
        %1794 = vmatprep.subr.mxu0 0.0
        %1795 = vmatpush1.msra.mxu0 0.0
        %1796 = vmatprep.subr.mxu0 0.0
        %1797 = vmatpush1.msra.mxu0 0.0
        %1798 = vmatprep.subr.mxu0 0.0
        %1799 = vmatpush1.msra.mxu0 0.0
        %1800 = vmatprep.subr.mxu0 0.0
        %1801 = vmatpush1.msra.mxu0 0.0
        %1802 = vmatprep.subr.mxu0 0.0
        %1803 = vmatpush1.msra.mxu0 0.0
        %1804 = vmatprep.subr.mxu0 0.0
        %1805 = vmatpush1.msra.mxu0 0.0
        %1806 = vmatprep.subr.mxu0 0.0
        %1807 = vmatpush1.msra.mxu0 0.0
        %1808 = vmatprep.mubr.f32.mxu0 0.0
        %1809 = vmatmul.mubr.f32.gmra.mrb[0].mxu0 %v559
        %v1810 = vpop.f32.mrb[0].mxu0
        %v1811 = vadd.f32 %v1586, %v1810
        %v1812 = vpop.f32.mrb[0].mxu0
        %1813 = vmatprep.mubr.f32.mxu0 0.0
        %1814 = vmatmul.mubr.f32.gmra.mrb[0].mxu0 %v561
        %v1815 = vpop.f32.mrb[0].mxu0
        %v1816 = vadd.f32 %v1591, %v1815
        %v1817 = vpop.f32.mrb[0].mxu0
        %1818 = vmatprep.mubr.f32.mxu0 0.0
        %1819 = vmatmul.mubr.f32.gmra.mrb[0].mxu0 %v564
        %v1820 = vpop.f32.mrb[0].mxu0
        %v1821 = vadd.f32 %v1596, %v1820
        %v1822 = vpop.f32.mrb[0].mxu0
        %1823 = vmatprep.mubr.f32.mxu0 0.0
        %1824 = vmatmul.mubr.f32.gmra.mrb[0].mxu0 %v566
        %v1825 = vpop.f32.mrb[0].mxu0
        %v1826 = vadd.f32 %v1601, %v1825
        %v1827 = vpop.f32.mrb[0].mxu0
        %1828 = vmatprep.mubr.f32.mxu0 0.0
        %1829 = vmatmul.mubr.f32.gmra.mrb[0].mxu0 %v569
        %v1830 = vpop.f32.mrb[0].mxu0
        %v1831 = vadd.f32 %v1606, %v1830
        %v1832 = vpop.f32.mrb[0].mxu0
        %1833 = vmatprep.mubr.f32.mxu0 0.0
        %1834 = vmatmul.mubr.f32.gmra.mrb[0].mxu0 %v571
        %v1835 = vpop.f32.mrb[0].mxu0
        %v1836 = vadd.f32 %v1611, %v1835
        %v1837 = vpop.f32.mrb[0].mxu0
        %1838 = vmatprep.mubr.f32.mxu0 0.0
        %1839 = vmatmul.mubr.f32.gmra.mrb[0].mxu0 %v574
        %v1840 = vpop.f32.mrb[0].mxu0
        %v1841 = vadd.f32 %v1616, %v1840
        %v1842 = vpop.f32.mrb[0].mxu0
        %1843 = vmatprep.mubr.f32.mxu0 0.0
        %1844 = vmatmul.mubr.f32.gmra.mrb[0].mxu0 %v576
        %v1845 = vpop.f32.mrb[0].mxu0
        %v1846 = vadd.f32 %v1621, %v1845
        %v1847 = vpop.f32.mrb[0].mxu0
        %1848 = vmatprep.mubr.f32.mxu0 0.0
        %1849 = vmatmul.mubr.f32.gmra.mrb[0].mxu0 %v579
        %v1850 = vpop.f32.mrb[0].mxu0
        %v1851 = vadd.f32 %v1626, %v1850
        %v1852 = vpop.f32.mrb[0].mxu0
        %1853 = vmatprep.mubr.f32.mxu0 0.0
        %1854 = vmatmul.mubr.f32.gmra.mrb[0].mxu0 %v581
        %v1855 = vpop.f32.mrb[0].mxu0
        %v1856 = vadd.f32 %v1631, %v1855
        %v1857 = vpop.f32.mrb[0].mxu0
        %1858 = vmatprep.mubr.f32.mxu0 0.0
        %1859 = vmatmul.mubr.f32.gmra.mrb[0].mxu0 %v584
        %v1860 = vpop.f32.mrb[0].mxu0
        %v1861 = vadd.f32 %v1636, %v1860
        %v1862 = vpop.f32.mrb[0].mxu0
        %1863 = vmatprep.mubr.f32.mxu0 0.0
        %1864 = vmatmul.mubr.f32.gmra.mrb[0].mxu0 %v586
        %v1865 = vpop.f32.mrb[0].mxu0
        %v1866 = vadd.f32 %v1641, %v1865
        %v1867 = vpop.f32.mrb[0].mxu0
        %1868 = vmatprep.mubr.f32.mxu0 0.0
        %1869 = vmatmul.mubr.f32.gmra.mrb[0].mxu0 %v589
        %v1870 = vpop.f32.mrb[0].mxu0
        %v1871 = vadd.f32 %v1646, %v1870
        %v1872 = vpop.f32.mrb[0].mxu0
        %1873 = vmatprep.mubr.f32.mxu0 0.0
        %1874 = vmatmul.mubr.f32.gmra.mrb[0].mxu0 %v591
        %v1875 = vpop.f32.mrb[0].mxu0
        %v1876 = vadd.f32 %v1651, %v1875
        %v1877 = vpop.f32.mrb[0].mxu0
        %1878 = vmatprep.mubr.f32.mxu0 0.0
        %1879 = vmatmul.mubr.f32.gmra.mrb[0].mxu0 %v594
        %v1880 = vpop.f32.mrb[0].mxu0
        %v1881 = vadd.f32 %v1656, %v1880
        %v1882 = vpop.f32.mrb[0].mxu0
        %1883 = vmatprep.mubr.f32.mxu0 0.0
        %1884 = vmatmul.mubr.f32.gmra.mrb[0].mxu0 %v596
        %v1885 = vpop.f32.mrb[0].mxu0
        %v1886 = vadd.f32 %v1661, %v1885
        %v1887 = vpop.f32.mrb[0].mxu0
        %1888 = vmatprep.mubr.f32.mxu0 0.0
        %1889 = vmatmul.mubr.f32.gmra.mrb[0].mxu0 %v599
        %v1890 = vpop.f32.mrb[0].mxu0
        %v1891 = vadd.f32 %v1666, %v1890
        %v1892 = vpop.f32.mrb[0].mxu0
        %1893 = vmatprep.mubr.f32.mxu0 0.0
        %1894 = vmatmul.mubr.f32.gmra.mrb[0].mxu0 %v601
        %v1895 = vpop.f32.mrb[0].mxu0
        %v1896 = vadd.f32 %v1671, %v1895
        %v1897 = vpop.f32.mrb[0].mxu0
        %1898 = vmatprep.mubr.f32.mxu0 0.0
        %1899 = vmatmul.mubr.f32.gmra.mrb[0].mxu0 %v604
        %v1900 = vpop.f32.mrb[0].mxu0
        %v1901 = vadd.f32 %v1676, %v1900
        %v1902 = vpop.f32.mrb[0].mxu0
        %1903 = vmatprep.mubr.f32.mxu0 0.0
        %1904 = vmatmul.mubr.f32.gmra.mrb[0].mxu0 %v606
        %v1905 = vpop.f32.mrb[0].mxu0
        %v1906 = vadd.f32 %v1681, %v1905
        %v1907 = vpop.f32.mrb[0].mxu0
        %1908 = vmatprep.mubr.f32.mxu0 0.0
        %1909 = vmatmul.mubr.f32.gmra.mrb[0].mxu0 %v609
        %v1910 = vpop.f32.mrb[0].mxu0
        %v1911 = vadd.f32 %v1686, %v1910
        %v1912 = vpop.f32.mrb[0].mxu0
        %1913 = vmatprep.mubr.f32.mxu0 0.0
        %1914 = vmatmul.mubr.f32.gmra.mrb[0].mxu0 %v611
        %v1915 = vpop.f32.mrb[0].mxu0
        %v1916 = vadd.f32 %v1691, %v1915
        %v1917 = vpop.f32.mrb[0].mxu0
        %1918 = vmatprep.mubr.f32.mxu0 0.0
        %1919 = vmatmul.mubr.f32.gmra.mrb[0].mxu0 %v614
        %v1920 = vpop.f32.mrb[0].mxu0
        %v1921 = vadd.f32 %v1696, %v1920
        %v1922 = vpop.f32.mrb[0].mxu0
        %1923 = vmatprep.mubr.f32.mxu0 0.0
        %1924 = vmatmul.mubr.f32.gmra.mrb[0].mxu0 %v616
        %v1925 = vpop.f32.mrb[0].mxu0
        %v1926 = vadd.f32 %v1701, %v1925
        %v1927 = vpop.f32.mrb[0].mxu0
        %1928 = vmatprep.mubr.f32.mxu0 0.0
        %1929 = vmatmul.mubr.f32.gmra.mrb[0].mxu0 %v619
        %v1930 = vpop.f32.mrb[0].mxu0
        %v1931 = vadd.f32 %v1706, %v1930
        %v1932 = vpop.f32.mrb[0].mxu0
        %1933 = vmatprep.mubr.f32.mxu0 0.0
        %1934 = vmatmul.mubr.f32.gmra.mrb[0].mxu0 %v621
        %v1935 = vpop.f32.mrb[0].mxu0
        %v1936 = vadd.f32 %v1711, %v1935
        %v1937 = vpop.f32.mrb[0].mxu0
        %1938 = vmatprep.mubr.f32.mxu0 0.0
        %1939 = vmatmul.mubr.f32.gmra.mrb[0].mxu0 %v624
        %v1940 = vpop.f32.mrb[0].mxu0
        %v1941 = vadd.f32 %v1716, %v1940
        %v1942 = vpop.f32.mrb[0].mxu0
        %1943 = vmatprep.mubr.f32.mxu0 0.0
        %1944 = vmatmul.mubr.f32.gmra.mrb[0].mxu0 %v626
        %v1945 = vpop.f32.mrb[0].mxu0
        %v1946 = vadd.f32 %v1721, %v1945
        %v1947 = vpop.f32.mrb[0].mxu0
        %1948 = vmatprep.mubr.f32.mxu0 0.0
        %1949 = vmatmul.mubr.f32.gmra.mrb[0].mxu0 %v671
        %v1950 = vpop.f32.mrb[0].mxu0
        %v1951 = vadd.f32 %v1726, %v1950
        %v1952 = vpop.f32.mrb[0].mxu0
        %1953 = vmatprep.mubr.f32.mxu0 0.0
        %1954 = vmatmul.mubr.f32.gmra.mrb[0].mxu0 %v673
        %v1955 = vpop.f32.mrb[0].mxu0
        %v1956 = vadd.f32 %v1731, %v1955
        %v1957 = vpop.f32.mrb[0].mxu0
        %1958 = vmatprep.mubr.f32.mxu0 0.0
        %1959 = vmatmul.mubr.f32.gmra.mrb[0].mxu0 %v688
        %v1960 = vpop.f32.mrb[0].mxu0
        %v1961 = vadd.f32 %v1736, %v1960
        %v1962 = vpop.f32.mrb[0].mxu0
        %1963 = vmatprep.mubr.f32.mxu0 0.0
        %1964 = vmatmul.mubr.f32.gmra.mrb[0].mxu0 %v690
        %v1965 = vpop.f32.mrb[0].mxu0
        %v1966 = vadd.f32 %v1741, %v1965
        %v1967 = vpop.f32.mrb[0].mxu0
        %1968 = vdwg.mxu0
        %v1969 = vmax.f32 %v1811, 0.0
        %v1970 = vmax.f32 %v1816, 0.0
        %v1971 = vmax.f32 %v1821, 0.0
        %v1972 = vmax.f32 %v1826, 0.0
        %v1973 = vmax.f32 %v1831, 0.0
        %v1974 = vmax.f32 %v1836, 0.0
        %v1975 = vmax.f32 %v1841, 0.0
        %v1976 = vmax.f32 %v1846, 0.0
        %v1977 = vmax.f32 %v1851, 0.0
        %v1978 = vmax.f32 %v1856, 0.0
        %v1979 = vmax.f32 %v1861, 0.0
        %v1980 = vmax.f32 %v1866, 0.0
        %v1981 = vmax.f32 %v1871, 0.0
        %v1982 = vmax.f32 %v1876, 0.0
        %v1983 = vmax.f32 %v1881, 0.0
        %v1984 = vmax.f32 %v1886, 0.0
        %v1985 = vmax.f32 %v1891, 0.0
        %v1986 = vmax.f32 %v1896, 0.0
        %v1987 = vmax.f32 %v1901, 0.0
        %v1988 = vmax.f32 %v1906, 0.0
        %v1989 = vmax.f32 %v1911, 0.0
        %v1990 = vmax.f32 %v1916, 0.0
        %v1991 = vmax.f32 %v1921, 0.0
        %v1992 = vmax.f32 %v1926, 0.0
        %v1993 = vmax.f32 %v1931, 0.0
        %v1994 = vmax.f32 %v1936, 0.0
        %v1995 = vmax.f32 %v1941, 0.0
        %v1996 = vmax.f32 %v1946, 0.0
        %v1997 = vmax.f32 %v1951, 0.0
        %v1998 = vmax.f32 %v1956, 0.0
        %v1999 = vmax.f32 %v1961, 0.0
        %v2000 = vmax.f32 %v1966, 0.0
        %2001 = vst [vmem:[#allocation3] sm:$0xff] 0.0
        %2002 = vst [vmem:[#allocation3 + $0x8] sm:$0xff] 0.0
        %2003 = vst [vmem:[#allocation3 + $0x10] sm:$0x3] 0.0
        %s2004 = scalar_lea.vmem [#allocation3], 408
        %2005 = vst [vmem:[%s2004] sm:$0xff] 0.0
        %2006 = vst [vmem:[%s2004 + $0x8] sm:$0xff] 0.0
        %2007 = vst [vmem:[%s2004 + $0x10] sm:$0x3] 0.0
        %2008 = vst [vmem:[#allocation3] sm:$0x1] 0.0
        %2009 = vst [vmem:[#allocation3 + $0x18] sm:$0x1] 0.0
        %2010 = vst [vmem:[#allocation3 + $0x30] sm:$0x1] 0.0
        %2011 = vst [vmem:[#allocation3 + $0x48] sm:$0x1] 0.0
        %2012 = vst [vmem:[#allocation3 + $0x60] sm:$0x1] 0.0
        %2013 = vst [vmem:[#allocation3 + $0x78] sm:$0x1] 0.0
        %2014 = vst [vmem:[#allocation3 + $0x90] sm:$0x1] 0.0
        %2015 = vst [vmem:[#allocation3 + $0xa8] sm:$0x1] 0.0
        %2016 = vst [vmem:[#allocation3 + $0xc0] sm:$0x1] 0.0
        %2017 = vst [vmem:[#allocation3 + $0xd8] sm:$0x1] 0.0
        %2018 = vst [vmem:[#allocation3 + $0xf0] sm:$0x1] 0.0
        %2019 = vst [vmem:[#allocation3 + $0x108] sm:$0x1] 0.0
        %2020 = vst [vmem:[#allocation3 + $0x120] sm:$0x1] 0.0
        %2021 = vst [vmem:[#allocation3 + $0x138] sm:$0x1] 0.0
        %2022 = vst [vmem:[#allocation3 + $0x150] sm:$0x1] 0.0
        %2023 = vst [vmem:[#allocation3 + $0x168] sm:$0x1] 0.0
        %2024 = vst [vmem:[#allocation3 + $0x180] sm:$0x1] 0.0
        %2025 = vst [vmem:[#allocation3 + $0x198] sm:$0x1] 0.0
        %2026 = vst [vmem:[#allocation3 + $0x11] sm:$0x1] 0.0
        %2027 = vst [vmem:[#allocation3 + $0x29] sm:$0x1] 0.0
        %2028 = vst [vmem:[#allocation3 + $0x41] sm:$0x1] 0.0
        %2029 = vst [vmem:[#allocation3 + $0x59] sm:$0x1] 0.0
        %2030 = vst [vmem:[#allocation3 + $0x71] sm:$0x1] 0.0
        %2031 = vst [vmem:[#allocation3 + $0x89] sm:$0x1] 0.0
        %2032 = vst [vmem:[#allocation3 + $0xa1] sm:$0x1] 0.0
        %2033 = vst [vmem:[#allocation3 + $0xb9] sm:$0x1] 0.0
        %2034 = vst [vmem:[#allocation3 + $0xd1] sm:$0x1] 0.0
        %2035 = vst [vmem:[#allocation3 + $0xe9] sm:$0x1] 0.0
        %2036 = vst [vmem:[#allocation3 + $0x101] sm:$0x1] 0.0
        %2037 = vst [vmem:[#allocation3 + $0x119] sm:$0x1] 0.0
        %2038 = vst [vmem:[#allocation3 + $0x131] sm:$0x1] 0.0
        %2039 = vst [vmem:[#allocation3 + $0x149] sm:$0x1] 0.0
        %2040 = vst [vmem:[#allocation3 + $0x161] sm:$0x1] 0.0
        %2041 = vst [vmem:[#allocation3 + $0x179] sm:$0x1] 0.0
        %2042 = vst [vmem:[#allocation3 + $0x191] sm:$0x1] 0.0
        %2043 = vst [vmem:[#allocation3 + $0x1a9] sm:$0x1] 0.0
        %s2044 = scalar_lea.vmem [#allocation3], 24
        %2045 = vst [vmem:[%s2044 + $0x1] sm:$0xff] %v1969
        %2046 = vst [vmem:[%s2044 + $0x9] sm:$0xff] %v1970
        %2047 = vst [vmem:[%s2044 + $0x19] sm:$0xff] %v1971
        %2048 = vst [vmem:[%s2044 + $0x21] sm:$0xff] %v1972
        %2049 = vst [vmem:[%s2044 + $0x31] sm:$0xff] %v1973
        %2050 = vst [vmem:[%s2044 + $0x39] sm:$0xff] %v1974
        %2051 = vst [vmem:[%s2044 + $0x49] sm:$0xff] %v1975
        %2052 = vst [vmem:[%s2044 + $0x51] sm:$0xff] %v1976
        %2053 = vst [vmem:[%s2044 + $0x61] sm:$0xff] %v1977
        %2054 = vst [vmem:[%s2044 + $0x69] sm:$0xff] %v1978
        %2055 = vst [vmem:[%s2044 + $0x79] sm:$0xff] %v1979
        %2056 = vst [vmem:[%s2044 + $0x81] sm:$0xff] %v1980
        %2057 = vst [vmem:[%s2044 + $0x91] sm:$0xff] %v1981
        %2058 = vst [vmem:[%s2044 + $0x99] sm:$0xff] %v1982
        %2059 = vst [vmem:[%s2044 + $0xa9] sm:$0xff] %v1983
        %2060 = vst [vmem:[%s2044 + $0xb1] sm:$0xff] %v1984
        %2061 = vst [vmem:[%s2044 + $0xc1] sm:$0xff] %v1985
        %2062 = vst [vmem:[%s2044 + $0xc9] sm:$0xff] %v1986
        %2063 = vst [vmem:[%s2044 + $0xd9] sm:$0xff] %v1987
        %2064 = vst [vmem:[%s2044 + $0xe1] sm:$0xff] %v1988
        %2065 = vst [vmem:[%s2044 + $0xf1] sm:$0xff] %v1989
        %2066 = vst [vmem:[%s2044 + $0xf9] sm:$0xff] %v1990
        %2067 = vst [vmem:[%s2044 + $0x109] sm:$0xff] %v1991
        %2068 = vst [vmem:[%s2044 + $0x111] sm:$0xff] %v1992
        %2069 = vst [vmem:[%s2044 + $0x121] sm:$0xff] %v1993
        %2070 = vst [vmem:[%s2044 + $0x129] sm:$0xff] %v1994
        %2071 = vst [vmem:[%s2044 + $0x139] sm:$0xff] %v1995
        %2072 = vst [vmem:[%s2044 + $0x141] sm:$0xff] %v1996
        %2073 = vst [vmem:[%s2044 + $0x151] sm:$0xff] %v1997
        %2074 = vst [vmem:[%s2044 + $0x159] sm:$0xff] %v1998
        %2075 = vst [vmem:[%s2044 + $0x169] sm:$0xff] %v1999
        %2076 = vst [vmem:[%s2044 + $0x171] sm:$0xff] %v2000
        %v2077 = vld [vmem:[#allocation3] sm:$0xff]
        %v2078 = vld [vmem:[#allocation3 + $0x8] sm:$0xff]
        %v2079 = vld [vmem:[#allocation3 + $0x10] sm:$0x3]
        %v2080 = vld [vmem:[#allocation3 + $0x18] sm:$0xff]
        %v2081 = vld [vmem:[#allocation3 + $0x20] sm:$0xff]
        %v2082 = vld [vmem:[#allocation3 + $0x28] sm:$0x3]
        %v2083 = vld [vmem:[#allocation3 + $0x30] sm:$0xff]
        %v2084 = vld [vmem:[#allocation3 + $0x38] sm:$0xff]
        %v2085 = vld [vmem:[#allocation3 + $0x40] sm:$0x3]
        %v2086 = vld [vmem:[#allocation3 + $0x48] sm:$0xff]
        %v2087 = vld [vmem:[#allocation3 + $0x50] sm:$0xff]
        %v2088 = vld [vmem:[#allocation3 + $0x58] sm:$0x3]
        %v2089 = vld [vmem:[#allocation3 + $0x60] sm:$0xff]
        %v2090 = vld [vmem:[#allocation3 + $0x68] sm:$0xff]
        %v2091 = vld [vmem:[#allocation3 + $0x70] sm:$0x3]
        %v2092 = vld [vmem:[#allocation3 + $0x78] sm:$0xff]
        %v2093 = vld [vmem:[#allocation3 + $0x80] sm:$0xff]
        %v2094 = vld [vmem:[#allocation3 + $0x88] sm:$0x3]
        %v2095 = vld [vmem:[#allocation3 + $0x90] sm:$0xff]
        %v2096 = vld [vmem:[#allocation3 + $0x98] sm:$0xff]
        %v2097 = vld [vmem:[#allocation3 + $0xa0] sm:$0x3]
        %v2098 = vld [vmem:[#allocation3 + $0xa8] sm:$0xff]
        %v2099 = vld [vmem:[#allocation3 + $0xb0] sm:$0xff]
        %v2100 = vld [vmem:[#allocation3 + $0xb8] sm:$0x3]
        %v2101 = vld [vmem:[#allocation3 + $0xc0] sm:$0xff]
        %v2102 = vld [vmem:[#allocation3 + $0xc8] sm:$0xff]
        %v2103 = vld [vmem:[#allocation3 + $0xd0] sm:$0x3]
        %v2104 = vld [vmem:[#allocation3 + $0xd8] sm:$0xff]
        %v2105 = vld [vmem:[#allocation3 + $0xe0] sm:$0xff]
        %v2106 = vld [vmem:[#allocation3 + $0xe8] sm:$0x3]
        %v2107 = vld [vmem:[#allocation3 + $0xf0] sm:$0xff]
        %v2108 = vld [vmem:[#allocation3 + $0xf8] sm:$0xff]
        %v2109 = vld [vmem:[#allocation3 + $0x100] sm:$0x3]
        %v2110 = vld [vmem:[#allocation3 + $0x108] sm:$0xff]
        %v2111 = vld [vmem:[#allocation3 + $0x110] sm:$0xff]
        %v2112 = vld [vmem:[#allocation3 + $0x118] sm:$0x3]
        %v2113 = vld [vmem:[#allocation3 + $0x120] sm:$0xff]
        %v2114 = vld [vmem:[#allocation3 + $0x128] sm:$0xff]
        %v2115 = vld [vmem:[#allocation3 + $0x130] sm:$0x3]
        %v2116 = vld [vmem:[#allocation3 + $0x138] sm:$0xff]
        %v2117 = vld [vmem:[#allocation3 + $0x140] sm:$0xff]
        %v2118 = vld [vmem:[#allocation3 + $0x148] sm:$0x3]
        %v2119 = vld [vmem:[#allocation3 + $0x150] sm:$0xff]
        %v2120 = vld [vmem:[#allocation3 + $0x158] sm:$0xff]
        %v2121 = vld [vmem:[#allocation3 + $0x160] sm:$0x3]
        %v2122 = vld [vmem:[#allocation3 + $0x168] sm:$0xff]
        %v2123 = vld [vmem:[#allocation3 + $0x170] sm:$0xff]
        %v2124 = vld [vmem:[#allocation3 + $0x178] sm:$0x3]
        %v2125 = vld [vmem:[#allocation3 + $0x180] sm:$0xff]
        %v2126 = vld [vmem:[#allocation3 + $0x188] sm:$0xff]
        %v2127 = vld [vmem:[#allocation3 + $0x190] sm:$0x3]
        %v2128 = vld [vmem:[#allocation3 + $0x198] sm:$0xff]
        %v2129 = vld [vmem:[#allocation3 + $0x1a0] sm:$0xff]
        %v2130 = vld [vmem:[#allocation3 + $0x1a8] sm:$0x3]
        %v2179 = vrot.slane %v2077, 1
        %v2180 = vrot.slane %v2078, 1
        %v2181 = vsel %vm433, %v2179, %v2180
        %v2182 = vrot.slane %v2079, 1
        %v2183 = vsel %vm433, %v2180, %v2182
        %v2184 = vrot.slane %v2080, 1
        %v2185 = vrot.slane %v2081, 1
        %v2186 = vsel %vm433, %v2184, %v2185
        %v2187 = vrot.slane %v2082, 1
        %v2188 = vsel %vm433, %v2185, %v2187
        %v2189 = vrot.slane %v2083, 1
        %v2190 = vrot.slane %v2084, 1
        %v2191 = vsel %vm433, %v2189, %v2190
        %v2192 = vrot.slane %v2085, 1
        %v2193 = vsel %vm433, %v2190, %v2192
        %v2194 = vrot.slane %v2086, 1
        %v2195 = vrot.slane %v2087, 1
        %v2196 = vsel %vm433, %v2194, %v2195
        %v2197 = vrot.slane %v2088, 1
        %v2198 = vsel %vm433, %v2195, %v2197
        %v2199 = vrot.slane %v2089, 1
        %v2200 = vrot.slane %v2090, 1
        %v2201 = vsel %vm433, %v2199, %v2200
        %v2202 = vrot.slane %v2091, 1
        %v2203 = vsel %vm433, %v2200, %v2202
        %v2204 = vrot.slane %v2092, 1
        %v2205 = vrot.slane %v2093, 1
        %v2206 = vsel %vm433, %v2204, %v2205
        %v2207 = vrot.slane %v2094, 1
        %v2208 = vsel %vm433, %v2205, %v2207
        %v2209 = vrot.slane %v2095, 1
        %v2210 = vrot.slane %v2096, 1
        %v2211 = vsel %vm433, %v2209, %v2210
        %v2212 = vrot.slane %v2097, 1
        %v2213 = vsel %vm433, %v2210, %v2212
        %v2214 = vrot.slane %v2098, 1
        %v2215 = vrot.slane %v2099, 1
        %v2216 = vsel %vm433, %v2214, %v2215
        %v2217 = vrot.slane %v2100, 1
        %v2218 = vsel %vm433, %v2215, %v2217
        %v2219 = vrot.slane %v2101, 1
        %v2220 = vrot.slane %v2102, 1
        %v2221 = vsel %vm433, %v2219, %v2220
        %v2222 = vrot.slane %v2103, 1
        %v2223 = vsel %vm433, %v2220, %v2222
        %v2224 = vrot.slane %v2104, 1
        %v2225 = vrot.slane %v2105, 1
        %v2226 = vsel %vm433, %v2224, %v2225
        %v2227 = vrot.slane %v2106, 1
        %v2228 = vsel %vm433, %v2225, %v2227
        %v2229 = vrot.slane %v2107, 1
        %v2230 = vrot.slane %v2108, 1
        %v2231 = vsel %vm433, %v2229, %v2230
        %v2232 = vrot.slane %v2109, 1
        %v2233 = vsel %vm433, %v2230, %v2232
        %v2234 = vrot.slane %v2110, 1
        %v2235 = vrot.slane %v2111, 1
        %v2236 = vsel %vm433, %v2234, %v2235
        %v2237 = vrot.slane %v2112, 1
        %v2238 = vsel %vm433, %v2235, %v2237
        %v2239 = vrot.slane %v2113, 1
        %v2240 = vrot.slane %v2114, 1
        %v2241 = vsel %vm433, %v2239, %v2240
        %v2242 = vrot.slane %v2115, 1
        %v2243 = vsel %vm433, %v2240, %v2242
        %v2244 = vrot.slane %v2116, 1
        %v2245 = vrot.slane %v2117, 1
        %v2246 = vsel %vm433, %v2244, %v2245
        %v2247 = vrot.slane %v2118, 1
        %v2248 = vsel %vm433, %v2245, %v2247
        %v2249 = vrot.slane %v2119, 1
        %v2250 = vrot.slane %v2120, 1
        %v2251 = vsel %vm433, %v2249, %v2250
        %v2252 = vrot.slane %v2121, 1
        %v2253 = vsel %vm433, %v2250, %v2252
        %v2254 = vrot.slane %v2122, 1
        %v2255 = vrot.slane %v2123, 1
        %v2256 = vsel %vm433, %v2254, %v2255
        %v2257 = vrot.slane %v2124, 1
        %v2258 = vsel %vm433, %v2255, %v2257
        %v2291 = vrot.slane %v2077, 2
        %v2292 = vrot.slane %v2078, 2
        %v2293 = vsel %vm546, %v2291, %v2292
        %v2294 = vrot.slane %v2079, 2
        %v2295 = vsel %vm546, %v2292, %v2294
        %v2296 = vrot.slane %v2080, 2
        %v2297 = vrot.slane %v2081, 2
        %v2298 = vsel %vm546, %v2296, %v2297
        %v2299 = vrot.slane %v2082, 2
        %v2300 = vsel %vm546, %v2297, %v2299
        %v2301 = vrot.slane %v2083, 2
        %v2302 = vrot.slane %v2084, 2
        %v2303 = vsel %vm546, %v2301, %v2302
        %v2304 = vrot.slane %v2085, 2
        %v2305 = vsel %vm546, %v2302, %v2304
        %v2306 = vrot.slane %v2086, 2
        %v2307 = vrot.slane %v2087, 2
        %v2308 = vsel %vm546, %v2306, %v2307
        %v2309 = vrot.slane %v2088, 2
        %v2310 = vsel %vm546, %v2307, %v2309
        %v2311 = vrot.slane %v2089, 2
        %v2312 = vrot.slane %v2090, 2
        %v2313 = vsel %vm546, %v2311, %v2312
        %v2314 = vrot.slane %v2091, 2
        %v2315 = vsel %vm546, %v2312, %v2314
        %v2316 = vrot.slane %v2092, 2
        %v2317 = vrot.slane %v2093, 2
        %v2318 = vsel %vm546, %v2316, %v2317
        %v2319 = vrot.slane %v2094, 2
        %v2320 = vsel %vm546, %v2317, %v2319
        %v2321 = vrot.slane %v2095, 2
        %v2322 = vrot.slane %v2096, 2
        %v2323 = vsel %vm546, %v2321, %v2322
        %v2324 = vrot.slane %v2097, 2
        %v2325 = vsel %vm546, %v2322, %v2324
        %v2326 = vrot.slane %v2098, 2
        %v2327 = vrot.slane %v2099, 2
        %v2328 = vsel %vm546, %v2326, %v2327
        %v2329 = vrot.slane %v2100, 2
        %v2330 = vsel %vm546, %v2327, %v2329
        %v2331 = vrot.slane %v2101, 2
        %v2332 = vrot.slane %v2102, 2
        %v2333 = vsel %vm546, %v2331, %v2332
        %v2334 = vrot.slane %v2103, 2
        %v2335 = vsel %vm546, %v2332, %v2334
        %v2336 = vrot.slane %v2104, 2
        %v2337 = vrot.slane %v2105, 2
        %v2338 = vsel %vm546, %v2336, %v2337
        %v2339 = vrot.slane %v2106, 2
        %v2340 = vsel %vm546, %v2337, %v2339
        %v2341 = vrot.slane %v2107, 2
        %v2342 = vrot.slane %v2108, 2
        %v2343 = vsel %vm546, %v2341, %v2342
        %v2344 = vrot.slane %v2109, 2
        %v2345 = vsel %vm546, %v2342, %v2344
        %v2346 = vrot.slane %v2110, 2
        %v2347 = vrot.slane %v2111, 2
        %v2348 = vsel %vm546, %v2346, %v2347
        %v2349 = vrot.slane %v2112, 2
        %v2350 = vsel %vm546, %v2347, %v2349
        %v2351 = vrot.slane %v2113, 2
        %v2352 = vrot.slane %v2114, 2
        %v2353 = vsel %vm546, %v2351, %v2352
        %v2354 = vrot.slane %v2115, 2
        %v2355 = vsel %vm546, %v2352, %v2354
        %v2356 = vrot.slane %v2116, 2
        %v2357 = vrot.slane %v2117, 2
        %v2358 = vsel %vm546, %v2356, %v2357
        %v2359 = vrot.slane %v2118, 2
        %v2360 = vsel %vm546, %v2357, %v2359
        %v2361 = vrot.slane %v2119, 2
        %v2362 = vrot.slane %v2120, 2
        %v2363 = vsel %vm546, %v2361, %v2362
        %v2364 = vrot.slane %v2121, 2
        %v2365 = vsel %vm546, %v2362, %v2364
        %v2366 = vrot.slane %v2122, 2
        %v2367 = vrot.slane %v2123, 2
        %v2368 = vsel %vm546, %v2366, %v2367
        %v2369 = vrot.slane %v2124, 2
        %v2370 = vsel %vm546, %v2367, %v2369
        %v2406 = vrot.slane %v2125, 1
        %v2407 = vrot.slane %v2126, 1
        %v2408 = vsel %vm433, %v2406, %v2407
        %v2409 = vrot.slane %v2127, 1
        %v2410 = vsel %vm433, %v2407, %v2409
        %v2413 = vrot.slane %v2125, 2
        %v2414 = vrot.slane %v2126, 2
        %v2415 = vsel %vm546, %v2413, %v2414
        %v2416 = vrot.slane %v2127, 2
        %v2417 = vsel %vm546, %v2414, %v2416
        %v2423 = vrot.slane %v2128, 1
        %v2424 = vrot.slane %v2129, 1
        %v2425 = vsel %vm433, %v2423, %v2424
        %v2426 = vrot.slane %v2130, 1
        %v2427 = vsel %vm433, %v2424, %v2426
        %v2430 = vrot.slane %v2128, 2
        %v2431 = vrot.slane %v2129, 2
        %v2432 = vsel %vm546, %v2430, %v2431
        %v2433 = vrot.slane %v2130, 2
        %v2434 = vsel %vm546, %v2431, %v2433
        %v2437 = vld [vmem:[%s2] sm:$0xff]
        %v2438 = vld [vmem:[%s2 + $0x8] sm:$0xff]
        %v2439 = vld [vmem:[%s2 + $0x10] sm:$0xff]
        %v2440 = vld [vmem:[%s2 + $0x18] sm:$0xff]
        %v2441 = vld [vmem:[%s2 + $0x20] sm:$0xff]
        %v2442 = vld [vmem:[%s2 + $0x28] sm:$0xff]
        %v2443 = vld [vmem:[%s2 + $0x30] sm:$0xff]
        %v2444 = vld [vmem:[%s2 + $0x38] sm:$0xff]
        %v2445 = vld [vmem:[%s2 + $0x40] sm:$0xff]
        %v2446 = vld [vmem:[%s2 + $0x48] sm:$0xff]
        %v2447 = vld [vmem:[%s2 + $0x50] sm:$0xff]
        %v2448 = vld [vmem:[%s2 + $0x58] sm:$0xff]
        %v2449 = vld [vmem:[%s2 + $0x60] sm:$0xff]
        %v2450 = vld [vmem:[%s2 + $0x68] sm:$0xff]
        %v2451 = vld [vmem:[%s2 + $0x70] sm:$0xff]
        %v2452 = vld [vmem:[%s2 + $0x78] sm:$0xff]
        %v2453 = vld [vmem:[%s2 + $0x80] sm:$0xff]
        %v2454 = vld [vmem:[%s2 + $0x88] sm:$0xff]
        %v2455 = vld [vmem:[%s2 + $0x90] sm:$0xff]
        %v2456 = vld [vmem:[%s2 + $0x98] sm:$0xff]
        %v2457 = vld [vmem:[%s2 + $0xa0] sm:$0xff]
        %v2458 = vld [vmem:[%s2 + $0xa8] sm:$0xff]
        %v2459 = vld [vmem:[%s2 + $0xb0] sm:$0xff]
        %v2460 = vld [vmem:[%s2 + $0xb8] sm:$0xff]
        %v2461 = vld [vmem:[%s2 + $0xc0] sm:$0xff]
        %v2462 = vld [vmem:[%s2 + $0xc8] sm:$0xff]
        %v2463 = vld [vmem:[%s2 + $0xd0] sm:$0xff]
        %v2464 = vld [vmem:[%s2 + $0xd8] sm:$0xff]
        %v2465 = vld [vmem:[%s2 + $0xe0] sm:$0xff]
        %v2466 = vld [vmem:[%s2 + $0xe8] sm:$0xff]
        %v2467 = vld [vmem:[%s2 + $0xf0] sm:$0xff]
        %v2468 = vld [vmem:[%s2 + $0xf8] sm:$0xff]
        %v2469 = vld [vmem:[%s2 + $0x100] sm:$0xff]
        %v2470 = vld [vmem:[%s2 + $0x108] sm:$0xff]
        %v2471 = vld [vmem:[%s2 + $0x110] sm:$0xff]
        %v2472 = vld [vmem:[%s2 + $0x118] sm:$0xff]
        %v2473 = vld [vmem:[%s2 + $0x120] sm:$0xff]
        %v2474 = vld [vmem:[%s2 + $0x128] sm:$0xff]
        %v2475 = vld [vmem:[%s2 + $0x130] sm:$0xff]
        %v2476 = vld [vmem:[%s2 + $0x138] sm:$0xff]
        %v2477 = vld [vmem:[%s2 + $0x140] sm:$0xff]
        %v2478 = vld [vmem:[%s2 + $0x148] sm:$0xff]
        %v2479 = vld [vmem:[%s2 + $0x150] sm:$0xff]
        %v2480 = vld [vmem:[%s2 + $0x158] sm:$0xff]
        %v2481 = vld [vmem:[%s2 + $0x160] sm:$0xff]
        %v2482 = vld [vmem:[%s2 + $0x168] sm:$0xff]
        %v2483 = vld [vmem:[%s2 + $0x170] sm:$0xff]
        %v2484 = vld [vmem:[%s2 + $0x178] sm:$0xff]
        %v2485 = vld [vmem:[%s2 + $0x180] sm:$0xff]
        %v2486 = vld [vmem:[%s2 + $0x188] sm:$0xff]
        %v2487 = vld [vmem:[%s2 + $0x190] sm:$0xff]
        %v2488 = vld [vmem:[%s2 + $0x198] sm:$0xff]
        %v2489 = vld [vmem:[%s2 + $0x1a0] sm:$0xff]
        %v2490 = vld [vmem:[%s2 + $0x1a8] sm:$0xff]
        %v2491 = vld [vmem:[%s2 + $0x1b0] sm:$0xff]
        %v2492 = vld [vmem:[%s2 + $0x1b8] sm:$0xff]
        %v2493 = vld [vmem:[%s2 + $0x1c0] sm:$0xff]
        %v2494 = vld [vmem:[%s2 + $0x1c8] sm:$0xff]
        %v2495 = vld [vmem:[%s2 + $0x1d0] sm:$0xff]
        %v2496 = vld [vmem:[%s2 + $0x1d8] sm:$0xff]
        %v2497 = vld [vmem:[%s2 + $0x1e0] sm:$0xff]
        %v2498 = vld [vmem:[%s2 + $0x1e8] sm:$0xff]
        %v2499 = vld [vmem:[%s2 + $0x1f0] sm:$0xff]
        %v2500 = vld [vmem:[%s2 + $0x1f8] sm:$0xff]
        %v2501 = vld [vmem:[%s2 + $0x200] sm:$0xff]
        %v2502 = vld [vmem:[%s2 + $0x208] sm:$0xff]
        %v2503 = vld [vmem:[%s2 + $0x210] sm:$0xff]
        %v2504 = vld [vmem:[%s2 + $0x218] sm:$0xff]
        %v2505 = vld [vmem:[%s2 + $0x220] sm:$0xff]
        %v2506 = vld [vmem:[%s2 + $0x228] sm:$0xff]
        %v2507 = vld [vmem:[%s2 + $0x230] sm:$0xff]
        %v2508 = vld [vmem:[%s2 + $0x238] sm:$0xff]
        %v2509 = vld [vmem:[%s2 + $0x240] sm:$0xff]
        %v2510 = vld [vmem:[%s2 + $0x248] sm:$0xff]
        %v2511 = vld [vmem:[%s2 + $0x250] sm:$0xff]
        %v2512 = vld [vmem:[%s2 + $0x258] sm:$0xff]
        %v2513 = vld [vmem:[%s2 + $0x260] sm:$0xff]
        %v2514 = vld [vmem:[%s2 + $0x268] sm:$0xff]
        %v2515 = vld [vmem:[%s2 + $0x270] sm:$0xff]
        %v2516 = vld [vmem:[%s2 + $0x278] sm:$0xff]
        %v2517 = vld [vmem:[%s2 + $0x280] sm:$0xff]
        %v2518 = vld [vmem:[%s2 + $0x288] sm:$0xff]
        %v2519 = vld [vmem:[%s2 + $0x290] sm:$0xff]
        %v2520 = vld [vmem:[%s2 + $0x298] sm:$0xff]
        %v2521 = vld [vmem:[%s2 + $0x2a0] sm:$0xff]
        %v2522 = vld [vmem:[%s2 + $0x2a8] sm:$0xff]
        %v2523 = vld [vmem:[%s2 + $0x2b0] sm:$0xff]
        %v2524 = vld [vmem:[%s2 + $0x2b8] sm:$0xff]
        %v2525 = vld [vmem:[%s2 + $0x2c0] sm:$0xff]
        %v2526 = vld [vmem:[%s2 + $0x2c8] sm:$0xff]
        %v2527 = vld [vmem:[%s2 + $0x2d0] sm:$0xff]
        %v2528 = vld [vmem:[%s2 + $0x2d8] sm:$0xff]
        %v2529 = vld [vmem:[%s2 + $0x2e0] sm:$0xff]
        %v2530 = vld [vmem:[%s2 + $0x2e8] sm:$0xff]
        %v2531 = vld [vmem:[%s2 + $0x2f0] sm:$0xff]
        %v2532 = vld [vmem:[%s2 + $0x2f8] sm:$0xff]
        %v2533 = vld [vmem:[%s2 + $0x300] sm:$0xff]
        %v2534 = vld [vmem:[%s2 + $0x308] sm:$0xff]
        %v2535 = vld [vmem:[%s2 + $0x310] sm:$0xff]
        %v2536 = vld [vmem:[%s2 + $0x318] sm:$0xff]
        %v2537 = vld [vmem:[%s2 + $0x320] sm:$0xff]
        %v2538 = vld [vmem:[%s2 + $0x328] sm:$0xff]
        %v2539 = vld [vmem:[%s2 + $0x330] sm:$0xff]
        %v2540 = vld [vmem:[%s2 + $0x338] sm:$0xff]
        %v2541 = vld [vmem:[%s2 + $0x340] sm:$0xff]
        %v2542 = vld [vmem:[%s2 + $0x348] sm:$0xff]
        %v2543 = vld [vmem:[%s2 + $0x350] sm:$0xff]
        %v2544 = vld [vmem:[%s2 + $0x358] sm:$0xff]
        %v2545 = vld [vmem:[%s2 + $0x360] sm:$0xff]
        %v2546 = vld [vmem:[%s2 + $0x368] sm:$0xff]
        %v2547 = vld [vmem:[%s2 + $0x370] sm:$0xff]
        %v2548 = vld [vmem:[%s2 + $0x378] sm:$0xff]
        %v2549 = vld [vmem:[%s2 + $0x380] sm:$0xff]
        %v2550 = vld [vmem:[%s2 + $0x388] sm:$0xff]
        %v2551 = vld [vmem:[%s2 + $0x390] sm:$0xff]
        %v2552 = vld [vmem:[%s2 + $0x398] sm:$0xff]
        %v2553 = vld [vmem:[%s2 + $0x3a0] sm:$0xff]
        %v2554 = vld [vmem:[%s2 + $0x3a8] sm:$0xff]
        %v2555 = vld [vmem:[%s2 + $0x3b0] sm:$0xff]
        %v2556 = vld [vmem:[%s2 + $0x3b8] sm:$0xff]
        %v2557 = vld [vmem:[%s2 + $0x3c0] sm:$0xff]
        %v2558 = vld [vmem:[%s2 + $0x3c8] sm:$0xff]
        %v2559 = vld [vmem:[%s2 + $0x3d0] sm:$0xff]
        %v2560 = vld [vmem:[%s2 + $0x3d8] sm:$0xff]
        %v2561 = vld [vmem:[%s2 + $0x3e0] sm:$0xff]
        %v2562 = vld [vmem:[%s2 + $0x3e8] sm:$0xff]
        %v2563 = vld [vmem:[%s2 + $0x3f0] sm:$0xff]
        %v2564 = vld [vmem:[%s2 + $0x3f8] sm:$0xff]
        %v2565 = vld [vmem:[%s2 + $0x400] sm:$0xff]
        %v2566 = vld [vmem:[%s2 + $0x408] sm:$0xff]
        %v2567 = vld [vmem:[%s2 + $0x410] sm:$0xff]
        %v2568 = vld [vmem:[%s2 + $0x418] sm:$0xff]
        %v2569 = vld [vmem:[%s2 + $0x420] sm:$0xff]
        %v2570 = vld [vmem:[%s2 + $0x428] sm:$0xff]
        %v2571 = vld [vmem:[%s2 + $0x430] sm:$0xff]
        %v2572 = vld [vmem:[%s2 + $0x438] sm:$0xff]
        %v2573 = vld [vmem:[%s2 + $0x440] sm:$0xff]
        %v2574 = vld [vmem:[%s2 + $0x448] sm:$0xff]
        %v2575 = vld [vmem:[%s2 + $0x450] sm:$0xff]
        %v2576 = vld [vmem:[%s2 + $0x458] sm:$0xff]
        %v2577 = vld [vmem:[%s2 + $0x460] sm:$0xff]
        %v2578 = vld [vmem:[%s2 + $0x468] sm:$0xff]
        %v2579 = vld [vmem:[%s2 + $0x470] sm:$0xff]
        %v2580 = vld [vmem:[%s2 + $0x478] sm:$0xff]
        %v2581 = vld [vmem:[%s4] sm:$0x1]
        %v2583 = vlaneseq
        %v2584 = vshrl.u32 %v2583, 7
        %v2585 = vsub.s32 0, %v2584
        %v2586 = vrot.slane %v2581, %v2585
        %2588 = vmatprep.subr.mxu0 0.0
        %2589 = vmatpush1.msra.mxu0 %v2437
        %2590 = vmatprep.subr.mxu0 0.0
        %2591 = vmatpush1.msra.mxu0 %v2438
        %2592 = vmatprep.subr.mxu0 0.0
        %2593 = vmatpush1.msra.mxu0 %v2439
        %2594 = vmatprep.subr.mxu0 0.0
        %2595 = vmatpush1.msra.mxu0 %v2440
        %2596 = vmatprep.subr.mxu0 0.0
        %2597 = vmatpush1.msra.mxu0 %v2441
        %2598 = vmatprep.subr.mxu0 0.0
        %2599 = vmatpush1.msra.mxu0 %v2442
        %2600 = vmatprep.subr.mxu0 0.0
        %2601 = vmatpush1.msra.mxu0 %v2443
        %2602 = vmatprep.subr.mxu0 0.0
        %2603 = vmatpush1.msra.mxu0 %v2444
        %2604 = vmatprep.subr.mxu0 0.0
        %2605 = vmatpush1.msra.mxu0 %v2445
        %2606 = vmatprep.subr.mxu0 0.0
        %2607 = vmatpush1.msra.mxu0 %v2446
        %2608 = vmatprep.subr.mxu0 0.0
        %2609 = vmatpush1.msra.mxu0 %v2447
        %2610 = vmatprep.subr.mxu0 0.0
        %2611 = vmatpush1.msra.mxu0 %v2448
        %2612 = vmatprep.subr.mxu0 0.0
        %2613 = vmatpush1.msra.mxu0 %v2449
        %2614 = vmatprep.subr.mxu0 0.0
        %2615 = vmatpush1.msra.mxu0 %v2450
        %2616 = vmatprep.subr.mxu0 0.0
        %2617 = vmatpush1.msra.mxu0 %v2451
        %2618 = vmatprep.subr.mxu0 0.0
        %2619 = vmatpush1.msra.mxu0 %v2452
        %2620 = vmatprep.subr.mxu0 0.0
        %2621 = vmatpush1.msra.mxu0 %v2453
        %2622 = vmatprep.subr.mxu0 0.0
        %2623 = vmatpush1.msra.mxu0 %v2454
        %2624 = vmatprep.subr.mxu0 0.0
        %2625 = vmatpush1.msra.mxu0 %v2455
        %2626 = vmatprep.subr.mxu0 0.0
        %2627 = vmatpush1.msra.mxu0 %v2456
        %2628 = vmatprep.subr.mxu0 0.0
        %2629 = vmatpush1.msra.mxu0 %v2457
        %2630 = vmatprep.subr.mxu0 0.0
        %2631 = vmatpush1.msra.mxu0 %v2458
        %2632 = vmatprep.subr.mxu0 0.0
        %2633 = vmatpush1.msra.mxu0 %v2459
        %2634 = vmatprep.subr.mxu0 0.0
        %2635 = vmatpush1.msra.mxu0 %v2460
        %2636 = vmatprep.subr.mxu0 0.0
        %2637 = vmatpush1.msra.mxu0 %v2461
        %2638 = vmatprep.subr.mxu0 0.0
        %2639 = vmatpush1.msra.mxu0 %v2462
        %2640 = vmatprep.subr.mxu0 0.0
        %2641 = vmatpush1.msra.mxu0 %v2463
        %2642 = vmatprep.subr.mxu0 0.0
        %2643 = vmatpush1.msra.mxu0 %v2464
        %2644 = vmatprep.subr.mxu0 0.0
        %2645 = vmatpush1.msra.mxu0 %v2465
        %2646 = vmatprep.subr.mxu0 0.0
        %2647 = vmatpush1.msra.mxu0 %v2466
        %2648 = vmatprep.subr.mxu0 0.0
        %2649 = vmatpush1.msra.mxu0 %v2467
        %2650 = vmatprep.subr.mxu0 0.0
        %2651 = vmatpush1.msra.mxu0 %v2468
        %2652 = vmatprep.mubr.f32.mxu0 %v2181
        %2653 = vmatmul.mubr.f32.gmra.mrb[0].mxu0 %v2077
        %v2654 = vpop.f32.mrb[0].mxu0
        %v2655 = vadd.f32 %v2586, %v2654
        %v2656 = vpop.f32.mrb[0].mxu0
        %2657 = vmatprep.mubr.f32.mxu0 %v2183
        %2658 = vmatmul.mubr.f32.gmra.mrb[0].mxu0 %v2078
        %v2659 = vpop.f32.mrb[0].mxu0
        %v2660 = vadd.f32 %v2586, %v2659
        %v2661 = vpop.f32.mrb[0].mxu0
        %2662 = vmatprep.mubr.f32.mxu0 %v2186
        %2663 = vmatmul.mubr.f32.gmra.mrb[0].mxu0 %v2080
        %v2664 = vpop.f32.mrb[0].mxu0
        %v2665 = vadd.f32 %v2586, %v2664
        %v2666 = vpop.f32.mrb[0].mxu0
        %2667 = vmatprep.mubr.f32.mxu0 %v2188
        %2668 = vmatmul.mubr.f32.gmra.mrb[0].mxu0 %v2081
        %v2669 = vpop.f32.mrb[0].mxu0
        %v2670 = vadd.f32 %v2586, %v2669
        %v2671 = vpop.f32.mrb[0].mxu0
        %2672 = vmatprep.mubr.f32.mxu0 %v2191
        %2673 = vmatmul.mubr.f32.gmra.mrb[0].mxu0 %v2083
        %v2674 = vpop.f32.mrb[0].mxu0
        %v2675 = vadd.f32 %v2586, %v2674
        %v2676 = vpop.f32.mrb[0].mxu0
        %2677 = vmatprep.mubr.f32.mxu0 %v2193
        %2678 = vmatmul.mubr.f32.gmra.mrb[0].mxu0 %v2084
        %v2679 = vpop.f32.mrb[0].mxu0
        %v2680 = vadd.f32 %v2586, %v2679
        %v2681 = vpop.f32.mrb[0].mxu0
        %2682 = vmatprep.mubr.f32.mxu0 %v2196
        %2683 = vmatmul.mubr.f32.gmra.mrb[0].mxu0 %v2086
        %v2684 = vpop.f32.mrb[0].mxu0
        %v2685 = vadd.f32 %v2586, %v2684
        %v2686 = vpop.f32.mrb[0].mxu0
        %2687 = vmatprep.mubr.f32.mxu0 %v2198
        %2688 = vmatmul.mubr.f32.gmra.mrb[0].mxu0 %v2087
        %v2689 = vpop.f32.mrb[0].mxu0
        %v2690 = vadd.f32 %v2586, %v2689
        %v2691 = vpop.f32.mrb[0].mxu0
        %2692 = vmatprep.mubr.f32.mxu0 %v2201
        %2693 = vmatmul.mubr.f32.gmra.mrb[0].mxu0 %v2089
        %v2694 = vpop.f32.mrb[0].mxu0
        %v2695 = vadd.f32 %v2586, %v2694
        %v2696 = vpop.f32.mrb[0].mxu0
        %2697 = vmatprep.mubr.f32.mxu0 %v2203
        %2698 = vmatmul.mubr.f32.gmra.mrb[0].mxu0 %v2090
        %v2699 = vpop.f32.mrb[0].mxu0
        %v2700 = vadd.f32 %v2586, %v2699
        %v2701 = vpop.f32.mrb[0].mxu0
        %2702 = vmatprep.mubr.f32.mxu0 %v2206
        %2703 = vmatmul.mubr.f32.gmra.mrb[0].mxu0 %v2092
        %v2704 = vpop.f32.mrb[0].mxu0
        %v2705 = vadd.f32 %v2586, %v2704
        %v2706 = vpop.f32.mrb[0].mxu0
        %2707 = vmatprep.mubr.f32.mxu0 %v2208
        %2708 = vmatmul.mubr.f32.gmra.mrb[0].mxu0 %v2093
        %v2709 = vpop.f32.mrb[0].mxu0
        %v2710 = vadd.f32 %v2586, %v2709
        %v2711 = vpop.f32.mrb[0].mxu0
        %2712 = vmatprep.mubr.f32.mxu0 %v2211
        %2713 = vmatmul.mubr.f32.gmra.mrb[0].mxu0 %v2095
        %v2714 = vpop.f32.mrb[0].mxu0
        %v2715 = vadd.f32 %v2586, %v2714
        %v2716 = vpop.f32.mrb[0].mxu0
        %2717 = vmatprep.mubr.f32.mxu0 %v2213
        %2718 = vmatmul.mubr.f32.gmra.mrb[0].mxu0 %v2096
        %v2719 = vpop.f32.mrb[0].mxu0
        %v2720 = vadd.f32 %v2586, %v2719
        %v2721 = vpop.f32.mrb[0].mxu0
        %2722 = vmatprep.mubr.f32.mxu0 %v2216
        %2723 = vmatmul.mubr.f32.gmra.mrb[0].mxu0 %v2098
        %v2724 = vpop.f32.mrb[0].mxu0
        %v2725 = vadd.f32 %v2586, %v2724
        %v2726 = vpop.f32.mrb[0].mxu0
        %2727 = vmatprep.mubr.f32.mxu0 %v2218
        %2728 = vmatmul.mubr.f32.gmra.mrb[0].mxu0 %v2099
        %v2729 = vpop.f32.mrb[0].mxu0
        %v2730 = vadd.f32 %v2586, %v2729
        %v2731 = vpop.f32.mrb[0].mxu0
        %2732 = vmatprep.mubr.f32.mxu0 %v2221
        %2733 = vmatmul.mubr.f32.gmra.mrb[0].mxu0 %v2101
        %v2734 = vpop.f32.mrb[0].mxu0
        %v2735 = vadd.f32 %v2586, %v2734
        %v2736 = vpop.f32.mrb[0].mxu0
        %2737 = vmatprep.mubr.f32.mxu0 %v2223
        %2738 = vmatmul.mubr.f32.gmra.mrb[0].mxu0 %v2102
        %v2739 = vpop.f32.mrb[0].mxu0
        %v2740 = vadd.f32 %v2586, %v2739
        %v2741 = vpop.f32.mrb[0].mxu0
        %2742 = vmatprep.mubr.f32.mxu0 %v2226
        %2743 = vmatmul.mubr.f32.gmra.mrb[0].mxu0 %v2104
        %v2744 = vpop.f32.mrb[0].mxu0
        %v2745 = vadd.f32 %v2586, %v2744
        %v2746 = vpop.f32.mrb[0].mxu0
        %2747 = vmatprep.mubr.f32.mxu0 %v2228
        %2748 = vmatmul.mubr.f32.gmra.mrb[0].mxu0 %v2105
        %v2749 = vpop.f32.mrb[0].mxu0
        %v2750 = vadd.f32 %v2586, %v2749
        %v2751 = vpop.f32.mrb[0].mxu0
        %2752 = vmatprep.mubr.f32.mxu0 %v2231
        %2753 = vmatmul.mubr.f32.gmra.mrb[0].mxu0 %v2107
        %v2754 = vpop.f32.mrb[0].mxu0
        %v2755 = vadd.f32 %v2586, %v2754
        %v2756 = vpop.f32.mrb[0].mxu0
        %2757 = vmatprep.mubr.f32.mxu0 %v2233
        %2758 = vmatmul.mubr.f32.gmra.mrb[0].mxu0 %v2108
        %v2759 = vpop.f32.mrb[0].mxu0
        %v2760 = vadd.f32 %v2586, %v2759
        %v2761 = vpop.f32.mrb[0].mxu0
        %2762 = vmatprep.mubr.f32.mxu0 %v2236
        %2763 = vmatmul.mubr.f32.gmra.mrb[0].mxu0 %v2110
        %v2764 = vpop.f32.mrb[0].mxu0
        %v2765 = vadd.f32 %v2586, %v2764
        %v2766 = vpop.f32.mrb[0].mxu0
        %2767 = vmatprep.mubr.f32.mxu0 %v2238
        %2768 = vmatmul.mubr.f32.gmra.mrb[0].mxu0 %v2111
        %v2769 = vpop.f32.mrb[0].mxu0
        %v2770 = vadd.f32 %v2586, %v2769
        %v2771 = vpop.f32.mrb[0].mxu0
        %2772 = vmatprep.mubr.f32.mxu0 %v2241
        %2773 = vmatmul.mubr.f32.gmra.mrb[0].mxu0 %v2113
        %v2774 = vpop.f32.mrb[0].mxu0
        %v2775 = vadd.f32 %v2586, %v2774
        %v2776 = vpop.f32.mrb[0].mxu0
        %2777 = vmatprep.mubr.f32.mxu0 %v2243
        %2778 = vmatmul.mubr.f32.gmra.mrb[0].mxu0 %v2114
        %v2779 = vpop.f32.mrb[0].mxu0
        %v2780 = vadd.f32 %v2586, %v2779
        %v2781 = vpop.f32.mrb[0].mxu0
        %2782 = vmatprep.mubr.f32.mxu0 %v2246
        %2783 = vmatmul.mubr.f32.gmra.mrb[0].mxu0 %v2116
        %v2784 = vpop.f32.mrb[0].mxu0
        %v2785 = vadd.f32 %v2586, %v2784
        %v2786 = vpop.f32.mrb[0].mxu0
        %2787 = vmatprep.mubr.f32.mxu0 %v2248
        %2788 = vmatmul.mubr.f32.gmra.mrb[0].mxu0 %v2117
        %v2789 = vpop.f32.mrb[0].mxu0
        %v2790 = vadd.f32 %v2586, %v2789
        %v2791 = vpop.f32.mrb[0].mxu0
        %2792 = vmatprep.mubr.f32.mxu0 %v2251
        %2793 = vmatmul.mubr.f32.gmra.mrb[0].mxu0 %v2119
        %v2794 = vpop.f32.mrb[0].mxu0
        %v2795 = vadd.f32 %v2586, %v2794
        %v2796 = vpop.f32.mrb[0].mxu0
        %2797 = vmatprep.mubr.f32.mxu0 %v2253
        %2798 = vmatmul.mubr.f32.gmra.mrb[0].mxu0 %v2120
        %v2799 = vpop.f32.mrb[0].mxu0
        %v2800 = vadd.f32 %v2586, %v2799
        %v2801 = vpop.f32.mrb[0].mxu0
        %2802 = vmatprep.mubr.f32.mxu0 %v2256
        %2803 = vmatmul.mubr.f32.gmra.mrb[0].mxu0 %v2122
        %v2804 = vpop.f32.mrb[0].mxu0
        %v2805 = vadd.f32 %v2586, %v2804
        %v2806 = vpop.f32.mrb[0].mxu0
        %2807 = vmatprep.mubr.f32.mxu0 %v2258
        %2808 = vmatmul.mubr.f32.gmra.mrb[0].mxu0 %v2123
        %v2809 = vpop.f32.mrb[0].mxu0
        %v2810 = vadd.f32 %v2586, %v2809
        %v2811 = vpop.f32.mrb[0].mxu0
        %2812 = vdwg.mxu0
        %2813 = vmatprep.subr.mxu0 0.0
        %2814 = vmatpush1.msra.mxu0 %v2469
        %2815 = vmatprep.subr.mxu0 0.0
        %2816 = vmatpush1.msra.mxu0 %v2470
        %2817 = vmatprep.subr.mxu0 0.0
        %2818 = vmatpush1.msra.mxu0 %v2471
        %2819 = vmatprep.subr.mxu0 0.0
        %2820 = vmatpush1.msra.mxu0 %v2472
        %2821 = vmatprep.subr.mxu0 0.0
        %2822 = vmatpush1.msra.mxu0 %v2473
        %2823 = vmatprep.subr.mxu0 0.0
        %2824 = vmatpush1.msra.mxu0 %v2474
        %2825 = vmatprep.subr.mxu0 0.0
        %2826 = vmatpush1.msra.mxu0 %v2475
        %2827 = vmatprep.subr.mxu0 0.0
        %2828 = vmatpush1.msra.mxu0 %v2476
        %2829 = vmatprep.subr.mxu0 0.0
        %2830 = vmatpush1.msra.mxu0 %v2477
        %2831 = vmatprep.subr.mxu0 0.0
        %2832 = vmatpush1.msra.mxu0 %v2478
        %2833 = vmatprep.subr.mxu0 0.0
        %2834 = vmatpush1.msra.mxu0 %v2479
        %2835 = vmatprep.subr.mxu0 0.0
        %2836 = vmatpush1.msra.mxu0 %v2480
        %2837 = vmatprep.subr.mxu0 0.0
        %2838 = vmatpush1.msra.mxu0 %v2481
        %2839 = vmatprep.subr.mxu0 0.0
        %2840 = vmatpush1.msra.mxu0 %v2482
        %2841 = vmatprep.subr.mxu0 0.0
        %2842 = vmatpush1.msra.mxu0 %v2483
        %2843 = vmatprep.subr.mxu0 0.0
        %2844 = vmatpush1.msra.mxu0 %v2484
        %2845 = vmatprep.subr.mxu0 0.0
        %2846 = vmatpush1.msra.mxu0 %v2485
        %2847 = vmatprep.subr.mxu0 0.0
        %2848 = vmatpush1.msra.mxu0 %v2486
        %2849 = vmatprep.subr.mxu0 0.0
        %2850 = vmatpush1.msra.mxu0 %v2487
        %2851 = vmatprep.subr.mxu0 0.0
        %2852 = vmatpush1.msra.mxu0 %v2488
        %2853 = vmatprep.subr.mxu0 0.0
        %2854 = vmatpush1.msra.mxu0 %v2489
        %2855 = vmatprep.subr.mxu0 0.0
        %2856 = vmatpush1.msra.mxu0 %v2490
        %2857 = vmatprep.subr.mxu0 0.0
        %2858 = vmatpush1.msra.mxu0 %v2491
        %2859 = vmatprep.subr.mxu0 0.0
        %2860 = vmatpush1.msra.mxu0 %v2492
        %2861 = vmatprep.subr.mxu0 0.0
        %2862 = vmatpush1.msra.mxu0 %v2493
        %2863 = vmatprep.subr.mxu0 0.0
        %2864 = vmatpush1.msra.mxu0 %v2494
        %2865 = vmatprep.subr.mxu0 0.0
        %2866 = vmatpush1.msra.mxu0 %v2495
        %2867 = vmatprep.subr.mxu0 0.0
        %2868 = vmatpush1.msra.mxu0 %v2496
        %2869 = vmatprep.subr.mxu0 0.0
        %2870 = vmatpush1.msra.mxu0 %v2497
        %2871 = vmatprep.subr.mxu0 0.0
        %2872 = vmatpush1.msra.mxu0 %v2498
        %2873 = vmatprep.subr.mxu0 0.0
        %2874 = vmatpush1.msra.mxu0 %v2499
        %2875 = vmatprep.subr.mxu0 0.0
        %2876 = vmatpush1.msra.mxu0 %v2500
        %2877 = vmatprep.mubr.f32.mxu0 %v2080
        %2878 = vmatmul.mubr.f32.gmra.mrb[0].mxu0 %v2293
        %v2879 = vpop.f32.mrb[0].mxu0
        %v2880 = vadd.f32 %v2655, %v2879
        %v2881 = vpop.f32.mrb[0].mxu0
        %2882 = vmatprep.mubr.f32.mxu0 %v2081
        %2883 = vmatmul.mubr.f32.gmra.mrb[0].mxu0 %v2295
        %v2884 = vpop.f32.mrb[0].mxu0
        %v2885 = vadd.f32 %v2660, %v2884
        %v2886 = vpop.f32.mrb[0].mxu0
        %2887 = vmatprep.mubr.f32.mxu0 %v2083
        %2888 = vmatmul.mubr.f32.gmra.mrb[0].mxu0 %v2298
        %v2889 = vpop.f32.mrb[0].mxu0
        %v2890 = vadd.f32 %v2665, %v2889
        %v2891 = vpop.f32.mrb[0].mxu0
        %2892 = vmatprep.mubr.f32.mxu0 %v2084
        %2893 = vmatmul.mubr.f32.gmra.mrb[0].mxu0 %v2300
        %v2894 = vpop.f32.mrb[0].mxu0
        %v2895 = vadd.f32 %v2670, %v2894
        %v2896 = vpop.f32.mrb[0].mxu0
        %2897 = vmatprep.mubr.f32.mxu0 %v2086
        %2898 = vmatmul.mubr.f32.gmra.mrb[0].mxu0 %v2303
        %v2899 = vpop.f32.mrb[0].mxu0
        %v2900 = vadd.f32 %v2675, %v2899
        %v2901 = vpop.f32.mrb[0].mxu0
        %2902 = vmatprep.mubr.f32.mxu0 %v2087
        %2903 = vmatmul.mubr.f32.gmra.mrb[0].mxu0 %v2305
        %v2904 = vpop.f32.mrb[0].mxu0
        %v2905 = vadd.f32 %v2680, %v2904
        %v2906 = vpop.f32.mrb[0].mxu0
        %2907 = vmatprep.mubr.f32.mxu0 %v2089
        %2908 = vmatmul.mubr.f32.gmra.mrb[0].mxu0 %v2308
        %v2909 = vpop.f32.mrb[0].mxu0
        %v2910 = vadd.f32 %v2685, %v2909
        %v2911 = vpop.f32.mrb[0].mxu0
        %2912 = vmatprep.mubr.f32.mxu0 %v2090
        %2913 = vmatmul.mubr.f32.gmra.mrb[0].mxu0 %v2310
        %v2914 = vpop.f32.mrb[0].mxu0
        %v2915 = vadd.f32 %v2690, %v2914
        %v2916 = vpop.f32.mrb[0].mxu0
        %2917 = vmatprep.mubr.f32.mxu0 %v2092
        %2918 = vmatmul.mubr.f32.gmra.mrb[0].mxu0 %v2313
        %v2919 = vpop.f32.mrb[0].mxu0
        %v2920 = vadd.f32 %v2695, %v2919
        %v2921 = vpop.f32.mrb[0].mxu0
        %2922 = vmatprep.mubr.f32.mxu0 %v2093
        %2923 = vmatmul.mubr.f32.gmra.mrb[0].mxu0 %v2315
        %v2924 = vpop.f32.mrb[0].mxu0
        %v2925 = vadd.f32 %v2700, %v2924
        %v2926 = vpop.f32.mrb[0].mxu0
        %2927 = vmatprep.mubr.f32.mxu0 %v2095
        %2928 = vmatmul.mubr.f32.gmra.mrb[0].mxu0 %v2318
        %v2929 = vpop.f32.mrb[0].mxu0
        %v2930 = vadd.f32 %v2705, %v2929
        %v2931 = vpop.f32.mrb[0].mxu0
        %2932 = vmatprep.mubr.f32.mxu0 %v2096
        %2933 = vmatmul.mubr.f32.gmra.mrb[0].mxu0 %v2320
        %v2934 = vpop.f32.mrb[0].mxu0
        %v2935 = vadd.f32 %v2710, %v2934
        %v2936 = vpop.f32.mrb[0].mxu0
        %2937 = vmatprep.mubr.f32.mxu0 %v2098
        %2938 = vmatmul.mubr.f32.gmra.mrb[0].mxu0 %v2323
        %v2939 = vpop.f32.mrb[0].mxu0
        %v2940 = vadd.f32 %v2715, %v2939
        %v2941 = vpop.f32.mrb[0].mxu0
        %2942 = vmatprep.mubr.f32.mxu0 %v2099
        %2943 = vmatmul.mubr.f32.gmra.mrb[0].mxu0 %v2325
        %v2944 = vpop.f32.mrb[0].mxu0
        %v2945 = vadd.f32 %v2720, %v2944
        %v2946 = vpop.f32.mrb[0].mxu0
        %2947 = vmatprep.mubr.f32.mxu0 %v2101
        %2948 = vmatmul.mubr.f32.gmra.mrb[0].mxu0 %v2328
        %v2949 = vpop.f32.mrb[0].mxu0
        %v2950 = vadd.f32 %v2725, %v2949
        %v2951 = vpop.f32.mrb[0].mxu0
        %2952 = vmatprep.mubr.f32.mxu0 %v2102
        %2953 = vmatmul.mubr.f32.gmra.mrb[0].mxu0 %v2330
        %v2954 = vpop.f32.mrb[0].mxu0
        %v2955 = vadd.f32 %v2730, %v2954
        %v2956 = vpop.f32.mrb[0].mxu0
        %2957 = vmatprep.mubr.f32.mxu0 %v2104
        %2958 = vmatmul.mubr.f32.gmra.mrb[0].mxu0 %v2333
        %v2959 = vpop.f32.mrb[0].mxu0
        %v2960 = vadd.f32 %v2735, %v2959
        %v2961 = vpop.f32.mrb[0].mxu0
        %2962 = vmatprep.mubr.f32.mxu0 %v2105
        %2963 = vmatmul.mubr.f32.gmra.mrb[0].mxu0 %v2335
        %v2964 = vpop.f32.mrb[0].mxu0
        %v2965 = vadd.f32 %v2740, %v2964
        %v2966 = vpop.f32.mrb[0].mxu0
        %2967 = vmatprep.mubr.f32.mxu0 %v2107
        %2968 = vmatmul.mubr.f32.gmra.mrb[0].mxu0 %v2338
        %v2969 = vpop.f32.mrb[0].mxu0
        %v2970 = vadd.f32 %v2745, %v2969
        %v2971 = vpop.f32.mrb[0].mxu0
        %2972 = vmatprep.mubr.f32.mxu0 %v2108
        %2973 = vmatmul.mubr.f32.gmra.mrb[0].mxu0 %v2340
        %v2974 = vpop.f32.mrb[0].mxu0
        %v2975 = vadd.f32 %v2750, %v2974
        %v2976 = vpop.f32.mrb[0].mxu0
        %2977 = vmatprep.mubr.f32.mxu0 %v2110
        %2978 = vmatmul.mubr.f32.gmra.mrb[0].mxu0 %v2343
        %v2979 = vpop.f32.mrb[0].mxu0
        %v2980 = vadd.f32 %v2755, %v2979
        %v2981 = vpop.f32.mrb[0].mxu0
        %2982 = vmatprep.mubr.f32.mxu0 %v2111
        %2983 = vmatmul.mubr.f32.gmra.mrb[0].mxu0 %v2345
        %v2984 = vpop.f32.mrb[0].mxu0
        %v2985 = vadd.f32 %v2760, %v2984
        %v2986 = vpop.f32.mrb[0].mxu0
        %2987 = vmatprep.mubr.f32.mxu0 %v2113
        %2988 = vmatmul.mubr.f32.gmra.mrb[0].mxu0 %v2348
        %v2989 = vpop.f32.mrb[0].mxu0
        %v2990 = vadd.f32 %v2765, %v2989
        %v2991 = vpop.f32.mrb[0].mxu0
        %2992 = vmatprep.mubr.f32.mxu0 %v2114
        %2993 = vmatmul.mubr.f32.gmra.mrb[0].mxu0 %v2350
        %v2994 = vpop.f32.mrb[0].mxu0
        %v2995 = vadd.f32 %v2770, %v2994
        %v2996 = vpop.f32.mrb[0].mxu0
        %2997 = vmatprep.mubr.f32.mxu0 %v2116
        %2998 = vmatmul.mubr.f32.gmra.mrb[0].mxu0 %v2353
        %v2999 = vpop.f32.mrb[0].mxu0
        %v3000 = vadd.f32 %v2775, %v2999
        %v3001 = vpop.f32.mrb[0].mxu0
        %3002 = vmatprep.mubr.f32.mxu0 %v2117
        %3003 = vmatmul.mubr.f32.gmra.mrb[0].mxu0 %v2355
        %v3004 = vpop.f32.mrb[0].mxu0
        %v3005 = vadd.f32 %v2780, %v3004
        %v3006 = vpop.f32.mrb[0].mxu0
        %3007 = vmatprep.mubr.f32.mxu0 %v2119
        %3008 = vmatmul.mubr.f32.gmra.mrb[0].mxu0 %v2358
        %v3009 = vpop.f32.mrb[0].mxu0
        %v3010 = vadd.f32 %v2785, %v3009
        %v3011 = vpop.f32.mrb[0].mxu0
        %3012 = vmatprep.mubr.f32.mxu0 %v2120
        %3013 = vmatmul.mubr.f32.gmra.mrb[0].mxu0 %v2360
        %v3014 = vpop.f32.mrb[0].mxu0
        %v3015 = vadd.f32 %v2790, %v3014
        %v3016 = vpop.f32.mrb[0].mxu0
        %3017 = vmatprep.mubr.f32.mxu0 %v2122
        %3018 = vmatmul.mubr.f32.gmra.mrb[0].mxu0 %v2363
        %v3019 = vpop.f32.mrb[0].mxu0
        %v3020 = vadd.f32 %v2795, %v3019
        %v3021 = vpop.f32.mrb[0].mxu0
        %3022 = vmatprep.mubr.f32.mxu0 %v2123
        %3023 = vmatmul.mubr.f32.gmra.mrb[0].mxu0 %v2365
        %v3024 = vpop.f32.mrb[0].mxu0
        %v3025 = vadd.f32 %v2800, %v3024
        %v3026 = vpop.f32.mrb[0].mxu0
        %3027 = vmatprep.mubr.f32.mxu0 %v2125
        %3028 = vmatmul.mubr.f32.gmra.mrb[0].mxu0 %v2368
        %v3029 = vpop.f32.mrb[0].mxu0
        %v3030 = vadd.f32 %v2805, %v3029
        %v3031 = vpop.f32.mrb[0].mxu0
        %3032 = vmatprep.mubr.f32.mxu0 %v2126
        %3033 = vmatmul.mubr.f32.gmra.mrb[0].mxu0 %v2370
        %v3034 = vpop.f32.mrb[0].mxu0
        %v3035 = vadd.f32 %v2810, %v3034
        %v3036 = vpop.f32.mrb[0].mxu0
        %3037 = vdwg.mxu0
        %3038 = vmatprep.subr.mxu0 0.0
        %3039 = vmatpush1.msra.mxu0 %v2501
        %3040 = vmatprep.subr.mxu0 0.0
        %3041 = vmatpush1.msra.mxu0 %v2502
        %3042 = vmatprep.subr.mxu0 0.0
        %3043 = vmatpush1.msra.mxu0 %v2503
        %3044 = vmatprep.subr.mxu0 0.0
        %3045 = vmatpush1.msra.mxu0 %v2504
        %3046 = vmatprep.subr.mxu0 0.0
        %3047 = vmatpush1.msra.mxu0 %v2505
        %3048 = vmatprep.subr.mxu0 0.0
        %3049 = vmatpush1.msra.mxu0 %v2506
        %3050 = vmatprep.subr.mxu0 0.0
        %3051 = vmatpush1.msra.mxu0 %v2507
        %3052 = vmatprep.subr.mxu0 0.0
        %3053 = vmatpush1.msra.mxu0 %v2508
        %3054 = vmatprep.subr.mxu0 0.0
        %3055 = vmatpush1.msra.mxu0 %v2509
        %3056 = vmatprep.subr.mxu0 0.0
        %3057 = vmatpush1.msra.mxu0 %v2510
        %3058 = vmatprep.subr.mxu0 0.0
        %3059 = vmatpush1.msra.mxu0 %v2511
        %3060 = vmatprep.subr.mxu0 0.0
        %3061 = vmatpush1.msra.mxu0 %v2512
        %3062 = vmatprep.subr.mxu0 0.0
        %3063 = vmatpush1.msra.mxu0 %v2513
        %3064 = vmatprep.subr.mxu0 0.0
        %3065 = vmatpush1.msra.mxu0 %v2514
        %3066 = vmatprep.subr.mxu0 0.0
        %3067 = vmatpush1.msra.mxu0 %v2515
        %3068 = vmatprep.subr.mxu0 0.0
        %3069 = vmatpush1.msra.mxu0 %v2516
        %3070 = vmatprep.subr.mxu0 0.0
        %3071 = vmatpush1.msra.mxu0 %v2517
        %3072 = vmatprep.subr.mxu0 0.0
        %3073 = vmatpush1.msra.mxu0 %v2518
        %3074 = vmatprep.subr.mxu0 0.0
        %3075 = vmatpush1.msra.mxu0 %v2519
        %3076 = vmatprep.subr.mxu0 0.0
        %3077 = vmatpush1.msra.mxu0 %v2520
        %3078 = vmatprep.subr.mxu0 0.0
        %3079 = vmatpush1.msra.mxu0 %v2521
        %3080 = vmatprep.subr.mxu0 0.0
        %3081 = vmatpush1.msra.mxu0 %v2522
        %3082 = vmatprep.subr.mxu0 0.0
        %3083 = vmatpush1.msra.mxu0 %v2523
        %3084 = vmatprep.subr.mxu0 0.0
        %3085 = vmatpush1.msra.mxu0 %v2524
        %3086 = vmatprep.subr.mxu0 0.0
        %3087 = vmatpush1.msra.mxu0 %v2525
        %3088 = vmatprep.subr.mxu0 0.0
        %3089 = vmatpush1.msra.mxu0 %v2526
        %3090 = vmatprep.subr.mxu0 0.0
        %3091 = vmatpush1.msra.mxu0 %v2527
        %3092 = vmatprep.subr.mxu0 0.0
        %3093 = vmatpush1.msra.mxu0 %v2528
        %3094 = vmatprep.subr.mxu0 0.0
        %3095 = vmatpush1.msra.mxu0 %v2529
        %3096 = vmatprep.subr.mxu0 0.0
        %3097 = vmatpush1.msra.mxu0 %v2530
        %3098 = vmatprep.subr.mxu0 0.0
        %3099 = vmatpush1.msra.mxu0 %v2531
        %3100 = vmatprep.subr.mxu0 0.0
        %3101 = vmatpush1.msra.mxu0 %v2532
        %3102 = vmatprep.mubr.f32.mxu0 %v2298
        %3103 = vmatmul.mubr.f32.gmra.mrb[0].mxu0 %v2186
        %v3104 = vpop.f32.mrb[0].mxu0
        %v3105 = vadd.f32 %v2880, %v3104
        %v3106 = vpop.f32.mrb[0].mxu0
        %3107 = vmatprep.mubr.f32.mxu0 %v2300
        %3108 = vmatmul.mubr.f32.gmra.mrb[0].mxu0 %v2188
        %v3109 = vpop.f32.mrb[0].mxu0
        %v3110 = vadd.f32 %v2885, %v3109
        %v3111 = vpop.f32.mrb[0].mxu0
        %3112 = vmatprep.mubr.f32.mxu0 %v2303
        %3113 = vmatmul.mubr.f32.gmra.mrb[0].mxu0 %v2191
        %v3114 = vpop.f32.mrb[0].mxu0
        %v3115 = vadd.f32 %v2890, %v3114
        %v3116 = vpop.f32.mrb[0].mxu0
        %3117 = vmatprep.mubr.f32.mxu0 %v2305
        %3118 = vmatmul.mubr.f32.gmra.mrb[0].mxu0 %v2193
        %v3119 = vpop.f32.mrb[0].mxu0
        %v3120 = vadd.f32 %v2895, %v3119
        %v3121 = vpop.f32.mrb[0].mxu0
        %3122 = vmatprep.mubr.f32.mxu0 %v2308
        %3123 = vmatmul.mubr.f32.gmra.mrb[0].mxu0 %v2196
        %v3124 = vpop.f32.mrb[0].mxu0
        %v3125 = vadd.f32 %v2900, %v3124
        %v3126 = vpop.f32.mrb[0].mxu0
        %3127 = vmatprep.mubr.f32.mxu0 %v2310
        %3128 = vmatmul.mubr.f32.gmra.mrb[0].mxu0 %v2198
        %v3129 = vpop.f32.mrb[0].mxu0
        %v3130 = vadd.f32 %v2905, %v3129
        %v3131 = vpop.f32.mrb[0].mxu0
        %3132 = vmatprep.mubr.f32.mxu0 %v2313
        %3133 = vmatmul.mubr.f32.gmra.mrb[0].mxu0 %v2201
        %v3134 = vpop.f32.mrb[0].mxu0
        %v3135 = vadd.f32 %v2910, %v3134
        %v3136 = vpop.f32.mrb[0].mxu0
        %3137 = vmatprep.mubr.f32.mxu0 %v2315
        %3138 = vmatmul.mubr.f32.gmra.mrb[0].mxu0 %v2203
        %v3139 = vpop.f32.mrb[0].mxu0
        %v3140 = vadd.f32 %v2915, %v3139
        %v3141 = vpop.f32.mrb[0].mxu0
        %3142 = vmatprep.mubr.f32.mxu0 %v2318
        %3143 = vmatmul.mubr.f32.gmra.mrb[0].mxu0 %v2206
        %v3144 = vpop.f32.mrb[0].mxu0
        %v3145 = vadd.f32 %v2920, %v3144
        %v3146 = vpop.f32.mrb[0].mxu0
        %3147 = vmatprep.mubr.f32.mxu0 %v2320
        %3148 = vmatmul.mubr.f32.gmra.mrb[0].mxu0 %v2208
        %v3149 = vpop.f32.mrb[0].mxu0
        %v3150 = vadd.f32 %v2925, %v3149
        %v3151 = vpop.f32.mrb[0].mxu0
        %3152 = vmatprep.mubr.f32.mxu0 %v2323
        %3153 = vmatmul.mubr.f32.gmra.mrb[0].mxu0 %v2211
        %v3154 = vpop.f32.mrb[0].mxu0
        %v3155 = vadd.f32 %v2930, %v3154
        %v3156 = vpop.f32.mrb[0].mxu0
        %3157 = vmatprep.mubr.f32.mxu0 %v2325
        %3158 = vmatmul.mubr.f32.gmra.mrb[0].mxu0 %v2213
        %v3159 = vpop.f32.mrb[0].mxu0
        %v3160 = vadd.f32 %v2935, %v3159
        %v3161 = vpop.f32.mrb[0].mxu0
        %3162 = vmatprep.mubr.f32.mxu0 %v2328
        %3163 = vmatmul.mubr.f32.gmra.mrb[0].mxu0 %v2216
        %v3164 = vpop.f32.mrb[0].mxu0
        %v3165 = vadd.f32 %v2940, %v3164
        %v3166 = vpop.f32.mrb[0].mxu0
        %3167 = vmatprep.mubr.f32.mxu0 %v2330
        %3168 = vmatmul.mubr.f32.gmra.mrb[0].mxu0 %v2218
        %v3169 = vpop.f32.mrb[0].mxu0
        %v3170 = vadd.f32 %v2945, %v3169
        %v3171 = vpop.f32.mrb[0].mxu0
        %3172 = vmatprep.mubr.f32.mxu0 %v2333
        %3173 = vmatmul.mubr.f32.gmra.mrb[0].mxu0 %v2221
        %v3174 = vpop.f32.mrb[0].mxu0
        %v3175 = vadd.f32 %v2950, %v3174
        %v3176 = vpop.f32.mrb[0].mxu0
        %3177 = vmatprep.mubr.f32.mxu0 %v2335
        %3178 = vmatmul.mubr.f32.gmra.mrb[0].mxu0 %v2223
        %v3179 = vpop.f32.mrb[0].mxu0
        %v3180 = vadd.f32 %v2955, %v3179
        %v3181 = vpop.f32.mrb[0].mxu0
        %3182 = vmatprep.mubr.f32.mxu0 %v2338
        %3183 = vmatmul.mubr.f32.gmra.mrb[0].mxu0 %v2226
        %v3184 = vpop.f32.mrb[0].mxu0
        %v3185 = vadd.f32 %v2960, %v3184
        %v3186 = vpop.f32.mrb[0].mxu0
        %3187 = vmatprep.mubr.f32.mxu0 %v2340
        %3188 = vmatmul.mubr.f32.gmra.mrb[0].mxu0 %v2228
        %v3189 = vpop.f32.mrb[0].mxu0
        %v3190 = vadd.f32 %v2965, %v3189
        %v3191 = vpop.f32.mrb[0].mxu0
        %3192 = vmatprep.mubr.f32.mxu0 %v2343
        %3193 = vmatmul.mubr.f32.gmra.mrb[0].mxu0 %v2231
        %v3194 = vpop.f32.mrb[0].mxu0
        %v3195 = vadd.f32 %v2970, %v3194
        %v3196 = vpop.f32.mrb[0].mxu0
        %3197 = vmatprep.mubr.f32.mxu0 %v2345
        %3198 = vmatmul.mubr.f32.gmra.mrb[0].mxu0 %v2233
        %v3199 = vpop.f32.mrb[0].mxu0
        %v3200 = vadd.f32 %v2975, %v3199
        %v3201 = vpop.f32.mrb[0].mxu0
        %3202 = vmatprep.mubr.f32.mxu0 %v2348
        %3203 = vmatmul.mubr.f32.gmra.mrb[0].mxu0 %v2236
        %v3204 = vpop.f32.mrb[0].mxu0
        %v3205 = vadd.f32 %v2980, %v3204
        %v3206 = vpop.f32.mrb[0].mxu0
        %3207 = vmatprep.mubr.f32.mxu0 %v2350
        %3208 = vmatmul.mubr.f32.gmra.mrb[0].mxu0 %v2238
        %v3209 = vpop.f32.mrb[0].mxu0
        %v3210 = vadd.f32 %v2985, %v3209
        %v3211 = vpop.f32.mrb[0].mxu0
        %3212 = vmatprep.mubr.f32.mxu0 %v2353
        %3213 = vmatmul.mubr.f32.gmra.mrb[0].mxu0 %v2241
        %v3214 = vpop.f32.mrb[0].mxu0
        %v3215 = vadd.f32 %v2990, %v3214
        %v3216 = vpop.f32.mrb[0].mxu0
        %3217 = vmatprep.mubr.f32.mxu0 %v2355
        %3218 = vmatmul.mubr.f32.gmra.mrb[0].mxu0 %v2243
        %v3219 = vpop.f32.mrb[0].mxu0
        %v3220 = vadd.f32 %v2995, %v3219
        %v3221 = vpop.f32.mrb[0].mxu0
        %3222 = vmatprep.mubr.f32.mxu0 %v2358
        %3223 = vmatmul.mubr.f32.gmra.mrb[0].mxu0 %v2246
        %v3224 = vpop.f32.mrb[0].mxu0
        %v3225 = vadd.f32 %v3000, %v3224
        %v3226 = vpop.f32.mrb[0].mxu0
        %3227 = vmatprep.mubr.f32.mxu0 %v2360
        %3228 = vmatmul.mubr.f32.gmra.mrb[0].mxu0 %v2248
        %v3229 = vpop.f32.mrb[0].mxu0
        %v3230 = vadd.f32 %v3005, %v3229
        %v3231 = vpop.f32.mrb[0].mxu0
        %3232 = vmatprep.mubr.f32.mxu0 %v2363
        %3233 = vmatmul.mubr.f32.gmra.mrb[0].mxu0 %v2251
        %v3234 = vpop.f32.mrb[0].mxu0
        %v3235 = vadd.f32 %v3010, %v3234
        %v3236 = vpop.f32.mrb[0].mxu0
        %3237 = vmatprep.mubr.f32.mxu0 %v2365
        %3238 = vmatmul.mubr.f32.gmra.mrb[0].mxu0 %v2253
        %v3239 = vpop.f32.mrb[0].mxu0
        %v3240 = vadd.f32 %v3015, %v3239
        %v3241 = vpop.f32.mrb[0].mxu0
        %3242 = vmatprep.mubr.f32.mxu0 %v2368
        %3243 = vmatmul.mubr.f32.gmra.mrb[0].mxu0 %v2256
        %v3244 = vpop.f32.mrb[0].mxu0
        %v3245 = vadd.f32 %v3020, %v3244
        %v3246 = vpop.f32.mrb[0].mxu0
        %3247 = vmatprep.mubr.f32.mxu0 %v2370
        %3248 = vmatmul.mubr.f32.gmra.mrb[0].mxu0 %v2258
        %v3249 = vpop.f32.mrb[0].mxu0
        %v3250 = vadd.f32 %v3025, %v3249
        %v3251 = vpop.f32.mrb[0].mxu0
        %3252 = vmatprep.mubr.f32.mxu0 %v2415
        %3253 = vmatmul.mubr.f32.gmra.mrb[0].mxu0 %v2408
        %v3254 = vpop.f32.mrb[0].mxu0
        %v3255 = vadd.f32 %v3030, %v3254
        %v3256 = vpop.f32.mrb[0].mxu0
        %3257 = vmatprep.mubr.f32.mxu0 %v2417
        %3258 = vmatmul.mubr.f32.gmra.mrb[0].mxu0 %v2410
        %v3259 = vpop.f32.mrb[0].mxu0
        %v3260 = vadd.f32 %v3035, %v3259
        %v3261 = vpop.f32.mrb[0].mxu0
        %3262 = vdwg.mxu0
        %3263 = vmatprep.subr.mxu0 0.0
        %3264 = vmatpush1.msra.mxu0 %v2533
        %3265 = vmatprep.subr.mxu0 0.0
        %3266 = vmatpush1.msra.mxu0 %v2534
        %3267 = vmatprep.subr.mxu0 0.0
        %3268 = vmatpush1.msra.mxu0 %v2535
        %3269 = vmatprep.subr.mxu0 0.0
        %3270 = vmatpush1.msra.mxu0 %v2536
        %3271 = vmatprep.subr.mxu0 0.0
        %3272 = vmatpush1.msra.mxu0 %v2537
        %3273 = vmatprep.subr.mxu0 0.0
        %3274 = vmatpush1.msra.mxu0 %v2538
        %3275 = vmatprep.subr.mxu0 0.0
        %3276 = vmatpush1.msra.mxu0 %v2539
        %3277 = vmatprep.subr.mxu0 0.0
        %3278 = vmatpush1.msra.mxu0 %v2540
        %3279 = vmatprep.subr.mxu0 0.0
        %3280 = vmatpush1.msra.mxu0 %v2541
        %3281 = vmatprep.subr.mxu0 0.0
        %3282 = vmatpush1.msra.mxu0 %v2542
        %3283 = vmatprep.subr.mxu0 0.0
        %3284 = vmatpush1.msra.mxu0 %v2543
        %3285 = vmatprep.subr.mxu0 0.0
        %3286 = vmatpush1.msra.mxu0 %v2544
        %3287 = vmatprep.subr.mxu0 0.0
        %3288 = vmatpush1.msra.mxu0 %v2545
        %3289 = vmatprep.subr.mxu0 0.0
        %3290 = vmatpush1.msra.mxu0 %v2546
        %3291 = vmatprep.subr.mxu0 0.0
        %3292 = vmatpush1.msra.mxu0 %v2547
        %3293 = vmatprep.subr.mxu0 0.0
        %3294 = vmatpush1.msra.mxu0 %v2548
        %3295 = vmatprep.subr.mxu0 0.0
        %3296 = vmatpush1.msra.mxu0 %v2549
        %3297 = vmatprep.subr.mxu0 0.0
        %3298 = vmatpush1.msra.mxu0 %v2550
        %3299 = vmatprep.subr.mxu0 0.0
        %3300 = vmatpush1.msra.mxu0 %v2551
        %3301 = vmatprep.subr.mxu0 0.0
        %3302 = vmatpush1.msra.mxu0 %v2552
        %3303 = vmatprep.subr.mxu0 0.0
        %3304 = vmatpush1.msra.mxu0 %v2553
        %3305 = vmatprep.subr.mxu0 0.0
        %3306 = vmatpush1.msra.mxu0 %v2554
        %3307 = vmatprep.subr.mxu0 0.0
        %3308 = vmatpush1.msra.mxu0 %v2555
        %3309 = vmatprep.subr.mxu0 0.0
        %3310 = vmatpush1.msra.mxu0 %v2556
        %3311 = vmatprep.subr.mxu0 0.0
        %3312 = vmatpush1.msra.mxu0 %v2557
        %3313 = vmatprep.subr.mxu0 0.0
        %3314 = vmatpush1.msra.mxu0 %v2558
        %3315 = vmatprep.subr.mxu0 0.0
        %3316 = vmatpush1.msra.mxu0 %v2559
        %3317 = vmatprep.subr.mxu0 0.0
        %3318 = vmatpush1.msra.mxu0 %v2560
        %3319 = vmatprep.subr.mxu0 0.0
        %3320 = vmatpush1.msra.mxu0 %v2561
        %3321 = vmatprep.subr.mxu0 0.0
        %3322 = vmatpush1.msra.mxu0 %v2562
        %3323 = vmatprep.subr.mxu0 0.0
        %3324 = vmatpush1.msra.mxu0 %v2563
        %3325 = vmatprep.subr.mxu0 0.0
        %3326 = vmatpush1.msra.mxu0 %v2564
        %3327 = vmatprep.mubr.f32.mxu0 %v2191
        %3328 = vmatmul.mubr.f32.gmra.mrb[0].mxu0 %v2083
        %v3329 = vpop.f32.mrb[0].mxu0
        %v3330 = vadd.f32 %v3105, %v3329
        %v3331 = vpop.f32.mrb[0].mxu0
        %3332 = vmatprep.mubr.f32.mxu0 %v2193
        %3333 = vmatmul.mubr.f32.gmra.mrb[0].mxu0 %v2084
        %v3334 = vpop.f32.mrb[0].mxu0
        %v3335 = vadd.f32 %v3110, %v3334
        %v3336 = vpop.f32.mrb[0].mxu0
        %3337 = vmatprep.mubr.f32.mxu0 %v2196
        %3338 = vmatmul.mubr.f32.gmra.mrb[0].mxu0 %v2086
        %v3339 = vpop.f32.mrb[0].mxu0
        %v3340 = vadd.f32 %v3115, %v3339
        %v3341 = vpop.f32.mrb[0].mxu0
        %3342 = vmatprep.mubr.f32.mxu0 %v2198
        %3343 = vmatmul.mubr.f32.gmra.mrb[0].mxu0 %v2087
        %v3344 = vpop.f32.mrb[0].mxu0
        %v3345 = vadd.f32 %v3120, %v3344
        %v3346 = vpop.f32.mrb[0].mxu0
        %3347 = vmatprep.mubr.f32.mxu0 %v2201
        %3348 = vmatmul.mubr.f32.gmra.mrb[0].mxu0 %v2089
        %v3349 = vpop.f32.mrb[0].mxu0
        %v3350 = vadd.f32 %v3125, %v3349
        %v3351 = vpop.f32.mrb[0].mxu0
        %3352 = vmatprep.mubr.f32.mxu0 %v2203
        %3353 = vmatmul.mubr.f32.gmra.mrb[0].mxu0 %v2090
        %v3354 = vpop.f32.mrb[0].mxu0
        %v3355 = vadd.f32 %v3130, %v3354
        %v3356 = vpop.f32.mrb[0].mxu0
        %3357 = vmatprep.mubr.f32.mxu0 %v2206
        %3358 = vmatmul.mubr.f32.gmra.mrb[0].mxu0 %v2092
        %v3359 = vpop.f32.mrb[0].mxu0
        %v3360 = vadd.f32 %v3135, %v3359
        %v3361 = vpop.f32.mrb[0].mxu0
        %3362 = vmatprep.mubr.f32.mxu0 %v2208
        %3363 = vmatmul.mubr.f32.gmra.mrb[0].mxu0 %v2093
        %v3364 = vpop.f32.mrb[0].mxu0
        %v3365 = vadd.f32 %v3140, %v3364
        %v3366 = vpop.f32.mrb[0].mxu0
        %3367 = vmatprep.mubr.f32.mxu0 %v2211
        %3368 = vmatmul.mubr.f32.gmra.mrb[0].mxu0 %v2095
        %v3369 = vpop.f32.mrb[0].mxu0
        %v3370 = vadd.f32 %v3145, %v3369
        %v3371 = vpop.f32.mrb[0].mxu0
        %3372 = vmatprep.mubr.f32.mxu0 %v2213
        %3373 = vmatmul.mubr.f32.gmra.mrb[0].mxu0 %v2096
        %v3374 = vpop.f32.mrb[0].mxu0
        %v3375 = vadd.f32 %v3150, %v3374
        %v3376 = vpop.f32.mrb[0].mxu0
        %3377 = vmatprep.mubr.f32.mxu0 %v2216
        %3378 = vmatmul.mubr.f32.gmra.mrb[0].mxu0 %v2098
        %v3379 = vpop.f32.mrb[0].mxu0
        %v3380 = vadd.f32 %v3155, %v3379
        %v3381 = vpop.f32.mrb[0].mxu0
        %3382 = vmatprep.mubr.f32.mxu0 %v2218
        %3383 = vmatmul.mubr.f32.gmra.mrb[0].mxu0 %v2099
        %v3384 = vpop.f32.mrb[0].mxu0
        %v3385 = vadd.f32 %v3160, %v3384
        %v3386 = vpop.f32.mrb[0].mxu0
        %3387 = vmatprep.mubr.f32.mxu0 %v2221
        %3388 = vmatmul.mubr.f32.gmra.mrb[0].mxu0 %v2101
        %v3389 = vpop.f32.mrb[0].mxu0
        %v3390 = vadd.f32 %v3165, %v3389
        %v3391 = vpop.f32.mrb[0].mxu0
        %3392 = vmatprep.mubr.f32.mxu0 %v2223
        %3393 = vmatmul.mubr.f32.gmra.mrb[0].mxu0 %v2102
        %v3394 = vpop.f32.mrb[0].mxu0
        %v3395 = vadd.f32 %v3170, %v3394
        %v3396 = vpop.f32.mrb[0].mxu0
        %3397 = vmatprep.mubr.f32.mxu0 %v2226
        %3398 = vmatmul.mubr.f32.gmra.mrb[0].mxu0 %v2104
        %v3399 = vpop.f32.mrb[0].mxu0
        %v3400 = vadd.f32 %v3175, %v3399
        %v3401 = vpop.f32.mrb[0].mxu0
        %3402 = vmatprep.mubr.f32.mxu0 %v2228
        %3403 = vmatmul.mubr.f32.gmra.mrb[0].mxu0 %v2105
        %v3404 = vpop.f32.mrb[0].mxu0
        %v3405 = vadd.f32 %v3180, %v3404
        %v3406 = vpop.f32.mrb[0].mxu0
        %3407 = vmatprep.mubr.f32.mxu0 %v2231
        %3408 = vmatmul.mubr.f32.gmra.mrb[0].mxu0 %v2107
        %v3409 = vpop.f32.mrb[0].mxu0
        %v3410 = vadd.f32 %v3185, %v3409
        %v3411 = vpop.f32.mrb[0].mxu0
        %3412 = vmatprep.mubr.f32.mxu0 %v2233
        %3413 = vmatmul.mubr.f32.gmra.mrb[0].mxu0 %v2108
        %v3414 = vpop.f32.mrb[0].mxu0
        %v3415 = vadd.f32 %v3190, %v3414
        %v3416 = vpop.f32.mrb[0].mxu0
        %3417 = vmatprep.mubr.f32.mxu0 %v2236
        %3418 = vmatmul.mubr.f32.gmra.mrb[0].mxu0 %v2110
        %v3419 = vpop.f32.mrb[0].mxu0
        %v3420 = vadd.f32 %v3195, %v3419
        %v3421 = vpop.f32.mrb[0].mxu0
        %3422 = vmatprep.mubr.f32.mxu0 %v2238
        %3423 = vmatmul.mubr.f32.gmra.mrb[0].mxu0 %v2111
        %v3424 = vpop.f32.mrb[0].mxu0
        %v3425 = vadd.f32 %v3200, %v3424
        %v3426 = vpop.f32.mrb[0].mxu0
        %3427 = vmatprep.mubr.f32.mxu0 %v2241
        %3428 = vmatmul.mubr.f32.gmra.mrb[0].mxu0 %v2113
        %v3429 = vpop.f32.mrb[0].mxu0
        %v3430 = vadd.f32 %v3205, %v3429
        %v3431 = vpop.f32.mrb[0].mxu0
        %3432 = vmatprep.mubr.f32.mxu0 %v2243
        %3433 = vmatmul.mubr.f32.gmra.mrb[0].mxu0 %v2114
        %v3434 = vpop.f32.mrb[0].mxu0
        %v3435 = vadd.f32 %v3210, %v3434
        %v3436 = vpop.f32.mrb[0].mxu0
        %3437 = vmatprep.mubr.f32.mxu0 %v2246
        %3438 = vmatmul.mubr.f32.gmra.mrb[0].mxu0 %v2116
        %v3439 = vpop.f32.mrb[0].mxu0
        %v3440 = vadd.f32 %v3215, %v3439
        %v3441 = vpop.f32.mrb[0].mxu0
        %3442 = vmatprep.mubr.f32.mxu0 %v2248
        %3443 = vmatmul.mubr.f32.gmra.mrb[0].mxu0 %v2117
        %v3444 = vpop.f32.mrb[0].mxu0
        %v3445 = vadd.f32 %v3220, %v3444
        %v3446 = vpop.f32.mrb[0].mxu0
        %3447 = vmatprep.mubr.f32.mxu0 %v2251
        %3448 = vmatmul.mubr.f32.gmra.mrb[0].mxu0 %v2119
        %v3449 = vpop.f32.mrb[0].mxu0
        %v3450 = vadd.f32 %v3225, %v3449
        %v3451 = vpop.f32.mrb[0].mxu0
        %3452 = vmatprep.mubr.f32.mxu0 %v2253
        %3453 = vmatmul.mubr.f32.gmra.mrb[0].mxu0 %v2120
        %v3454 = vpop.f32.mrb[0].mxu0
        %v3455 = vadd.f32 %v3230, %v3454
        %v3456 = vpop.f32.mrb[0].mxu0
        %3457 = vmatprep.mubr.f32.mxu0 %v2256
        %3458 = vmatmul.mubr.f32.gmra.mrb[0].mxu0 %v2122
        %v3459 = vpop.f32.mrb[0].mxu0
        %v3460 = vadd.f32 %v3235, %v3459
        %v3461 = vpop.f32.mrb[0].mxu0
        %3462 = vmatprep.mubr.f32.mxu0 %v2258
        %3463 = vmatmul.mubr.f32.gmra.mrb[0].mxu0 %v2123
        %v3464 = vpop.f32.mrb[0].mxu0
        %v3465 = vadd.f32 %v3240, %v3464
        %v3466 = vpop.f32.mrb[0].mxu0
        %3467 = vmatprep.mubr.f32.mxu0 %v2408
        %3468 = vmatmul.mubr.f32.gmra.mrb[0].mxu0 %v2125
        %v3469 = vpop.f32.mrb[0].mxu0
        %v3470 = vadd.f32 %v3245, %v3469
        %v3471 = vpop.f32.mrb[0].mxu0
        %3472 = vmatprep.mubr.f32.mxu0 %v2410
        %3473 = vmatmul.mubr.f32.gmra.mrb[0].mxu0 %v2126
        %v3474 = vpop.f32.mrb[0].mxu0
        %v3475 = vadd.f32 %v3250, %v3474
        %v3476 = vpop.f32.mrb[0].mxu0
        %3477 = vmatprep.mubr.f32.mxu0 %v2425
        %3478 = vmatmul.mubr.f32.gmra.mrb[0].mxu0 %v2128
        %v3479 = vpop.f32.mrb[0].mxu0
        %v3480 = vadd.f32 %v3255, %v3479
        %v3481 = vpop.f32.mrb[0].mxu0
        %3482 = vmatprep.mubr.f32.mxu0 %v2427
        %3483 = vmatmul.mubr.f32.gmra.mrb[0].mxu0 %v2129
        %v3484 = vpop.f32.mrb[0].mxu0
        %v3485 = vadd.f32 %v3260, %v3484
        %v3486 = vpop.f32.mrb[0].mxu0
        %3487 = vdwg.mxu0
        %3488 = vmatprep.subr.mxu0 0.0
        %3489 = vmatpush1.msra.mxu0 %v2565
        %3490 = vmatprep.subr.mxu0 0.0
        %3491 = vmatpush1.msra.mxu0 %v2566
        %3492 = vmatprep.subr.mxu0 0.0
        %3493 = vmatpush1.msra.mxu0 %v2567
        %3494 = vmatprep.subr.mxu0 0.0
        %3495 = vmatpush1.msra.mxu0 %v2568
        %3496 = vmatprep.subr.mxu0 0.0
        %3497 = vmatpush1.msra.mxu0 %v2569
        %3498 = vmatprep.subr.mxu0 0.0
        %3499 = vmatpush1.msra.mxu0 %v2570
        %3500 = vmatprep.subr.mxu0 0.0
        %3501 = vmatpush1.msra.mxu0 %v2571
        %3502 = vmatprep.subr.mxu0 0.0
        %3503 = vmatpush1.msra.mxu0 %v2572
        %3504 = vmatprep.subr.mxu0 0.0
        %3505 = vmatpush1.msra.mxu0 %v2573
        %3506 = vmatprep.subr.mxu0 0.0
        %3507 = vmatpush1.msra.mxu0 %v2574
        %3508 = vmatprep.subr.mxu0 0.0
        %3509 = vmatpush1.msra.mxu0 %v2575
        %3510 = vmatprep.subr.mxu0 0.0
        %3511 = vmatpush1.msra.mxu0 %v2576
        %3512 = vmatprep.subr.mxu0 0.0
        %3513 = vmatpush1.msra.mxu0 %v2577
        %3514 = vmatprep.subr.mxu0 0.0
        %3515 = vmatpush1.msra.mxu0 %v2578
        %3516 = vmatprep.subr.mxu0 0.0
        %3517 = vmatpush1.msra.mxu0 %v2579
        %3518 = vmatprep.subr.mxu0 0.0
        %3519 = vmatpush1.msra.mxu0 %v2580
        %3520 = vmatprep.subr.mxu0 0.0
        %3521 = vmatpush1.msra.mxu0 0.0
        %3522 = vmatprep.subr.mxu0 0.0
        %3523 = vmatpush1.msra.mxu0 0.0
        %3524 = vmatprep.subr.mxu0 0.0
        %3525 = vmatpush1.msra.mxu0 0.0
        %3526 = vmatprep.subr.mxu0 0.0
        %3527 = vmatpush1.msra.mxu0 0.0
        %3528 = vmatprep.subr.mxu0 0.0
        %3529 = vmatpush1.msra.mxu0 0.0
        %3530 = vmatprep.subr.mxu0 0.0
        %3531 = vmatpush1.msra.mxu0 0.0
        %3532 = vmatprep.subr.mxu0 0.0
        %3533 = vmatpush1.msra.mxu0 0.0
        %3534 = vmatprep.subr.mxu0 0.0
        %3535 = vmatpush1.msra.mxu0 0.0
        %3536 = vmatprep.subr.mxu0 0.0
        %3537 = vmatpush1.msra.mxu0 0.0
        %3538 = vmatprep.subr.mxu0 0.0
        %3539 = vmatpush1.msra.mxu0 0.0
        %3540 = vmatprep.subr.mxu0 0.0
        %3541 = vmatpush1.msra.mxu0 0.0
        %3542 = vmatprep.subr.mxu0 0.0
        %3543 = vmatpush1.msra.mxu0 0.0
        %3544 = vmatprep.subr.mxu0 0.0
        %3545 = vmatpush1.msra.mxu0 0.0
        %3546 = vmatprep.subr.mxu0 0.0
        %3547 = vmatpush1.msra.mxu0 0.0
        %3548 = vmatprep.subr.mxu0 0.0
        %3549 = vmatpush1.msra.mxu0 0.0
        %3550 = vmatprep.subr.mxu0 0.0
        %3551 = vmatpush1.msra.mxu0 0.0
        %3552 = vmatprep.mubr.f32.mxu0 0.0
        %3553 = vmatmul.mubr.f32.gmra.mrb[0].mxu0 %v2303
        %v3554 = vpop.f32.mrb[0].mxu0
        %v3555 = vadd.f32 %v3330, %v3554
        %v3556 = vpop.f32.mrb[0].mxu0
        %3557 = vmatprep.mubr.f32.mxu0 0.0
        %3558 = vmatmul.mubr.f32.gmra.mrb[0].mxu0 %v2305
        %v3559 = vpop.f32.mrb[0].mxu0
        %v3560 = vadd.f32 %v3335, %v3559
        %v3561 = vpop.f32.mrb[0].mxu0
        %3562 = vmatprep.mubr.f32.mxu0 0.0
        %3563 = vmatmul.mubr.f32.gmra.mrb[0].mxu0 %v2308
        %v3564 = vpop.f32.mrb[0].mxu0
        %v3565 = vadd.f32 %v3340, %v3564
        %v3566 = vpop.f32.mrb[0].mxu0
        %3567 = vmatprep.mubr.f32.mxu0 0.0
        %3568 = vmatmul.mubr.f32.gmra.mrb[0].mxu0 %v2310
        %v3569 = vpop.f32.mrb[0].mxu0
        %v3570 = vadd.f32 %v3345, %v3569
        %v3571 = vpop.f32.mrb[0].mxu0
        %3572 = vmatprep.mubr.f32.mxu0 0.0
        %3573 = vmatmul.mubr.f32.gmra.mrb[0].mxu0 %v2313
        %v3574 = vpop.f32.mrb[0].mxu0
        %v3575 = vadd.f32 %v3350, %v3574
        %v3576 = vpop.f32.mrb[0].mxu0
        %3577 = vmatprep.mubr.f32.mxu0 0.0
        %3578 = vmatmul.mubr.f32.gmra.mrb[0].mxu0 %v2315
        %v3579 = vpop.f32.mrb[0].mxu0
        %v3580 = vadd.f32 %v3355, %v3579
        %v3581 = vpop.f32.mrb[0].mxu0
        %3582 = vmatprep.mubr.f32.mxu0 0.0
        %3583 = vmatmul.mubr.f32.gmra.mrb[0].mxu0 %v2318
        %v3584 = vpop.f32.mrb[0].mxu0
        %v3585 = vadd.f32 %v3360, %v3584
        %v3586 = vpop.f32.mrb[0].mxu0
        %3587 = vmatprep.mubr.f32.mxu0 0.0
        %3588 = vmatmul.mubr.f32.gmra.mrb[0].mxu0 %v2320
        %v3589 = vpop.f32.mrb[0].mxu0
        %v3590 = vadd.f32 %v3365, %v3589
        %v3591 = vpop.f32.mrb[0].mxu0
        %3592 = vmatprep.mubr.f32.mxu0 0.0
        %3593 = vmatmul.mubr.f32.gmra.mrb[0].mxu0 %v2323
        %v3594 = vpop.f32.mrb[0].mxu0
        %v3595 = vadd.f32 %v3370, %v3594
        %v3596 = vpop.f32.mrb[0].mxu0
        %3597 = vmatprep.mubr.f32.mxu0 0.0
        %3598 = vmatmul.mubr.f32.gmra.mrb[0].mxu0 %v2325
        %v3599 = vpop.f32.mrb[0].mxu0
        %v3600 = vadd.f32 %v3375, %v3599
        %v3601 = vpop.f32.mrb[0].mxu0
        %3602 = vmatprep.mubr.f32.mxu0 0.0
        %3603 = vmatmul.mubr.f32.gmra.mrb[0].mxu0 %v2328
        %v3604 = vpop.f32.mrb[0].mxu0
        %v3605 = vadd.f32 %v3380, %v3604
        %v3606 = vpop.f32.mrb[0].mxu0
        %3607 = vmatprep.mubr.f32.mxu0 0.0
        %3608 = vmatmul.mubr.f32.gmra.mrb[0].mxu0 %v2330
        %v3609 = vpop.f32.mrb[0].mxu0
        %v3610 = vadd.f32 %v3385, %v3609
        %v3611 = vpop.f32.mrb[0].mxu0
        %3612 = vmatprep.mubr.f32.mxu0 0.0
        %3613 = vmatmul.mubr.f32.gmra.mrb[0].mxu0 %v2333
        %v3614 = vpop.f32.mrb[0].mxu0
        %v3615 = vadd.f32 %v3390, %v3614
        %v3616 = vpop.f32.mrb[0].mxu0
        %3617 = vmatprep.mubr.f32.mxu0 0.0
        %3618 = vmatmul.mubr.f32.gmra.mrb[0].mxu0 %v2335
        %v3619 = vpop.f32.mrb[0].mxu0
        %v3620 = vadd.f32 %v3395, %v3619
        %v3621 = vpop.f32.mrb[0].mxu0
        %3622 = vmatprep.mubr.f32.mxu0 0.0
        %3623 = vmatmul.mubr.f32.gmra.mrb[0].mxu0 %v2338
        %v3624 = vpop.f32.mrb[0].mxu0
        %v3625 = vadd.f32 %v3400, %v3624
        %v3626 = vpop.f32.mrb[0].mxu0
        %3627 = vmatprep.mubr.f32.mxu0 0.0
        %3628 = vmatmul.mubr.f32.gmra.mrb[0].mxu0 %v2340
        %v3629 = vpop.f32.mrb[0].mxu0
        %v3630 = vadd.f32 %v3405, %v3629
        %v3631 = vpop.f32.mrb[0].mxu0
        %3632 = vmatprep.mubr.f32.mxu0 0.0
        %3633 = vmatmul.mubr.f32.gmra.mrb[0].mxu0 %v2343
        %v3634 = vpop.f32.mrb[0].mxu0
        %v3635 = vadd.f32 %v3410, %v3634
        %v3636 = vpop.f32.mrb[0].mxu0
        %3637 = vmatprep.mubr.f32.mxu0 0.0
        %3638 = vmatmul.mubr.f32.gmra.mrb[0].mxu0 %v2345
        %v3639 = vpop.f32.mrb[0].mxu0
        %v3640 = vadd.f32 %v3415, %v3639
        %v3641 = vpop.f32.mrb[0].mxu0
        %3642 = vmatprep.mubr.f32.mxu0 0.0
        %3643 = vmatmul.mubr.f32.gmra.mrb[0].mxu0 %v2348
        %v3644 = vpop.f32.mrb[0].mxu0
        %v3645 = vadd.f32 %v3420, %v3644
        %v3646 = vpop.f32.mrb[0].mxu0
        %3647 = vmatprep.mubr.f32.mxu0 0.0
        %3648 = vmatmul.mubr.f32.gmra.mrb[0].mxu0 %v2350
        %v3649 = vpop.f32.mrb[0].mxu0
        %v3650 = vadd.f32 %v3425, %v3649
        %v3651 = vpop.f32.mrb[0].mxu0
        %3652 = vmatprep.mubr.f32.mxu0 0.0
        %3653 = vmatmul.mubr.f32.gmra.mrb[0].mxu0 %v2353
        %v3654 = vpop.f32.mrb[0].mxu0
        %v3655 = vadd.f32 %v3430, %v3654
        %v3656 = vpop.f32.mrb[0].mxu0
        %3657 = vmatprep.mubr.f32.mxu0 0.0
        %3658 = vmatmul.mubr.f32.gmra.mrb[0].mxu0 %v2355
        %v3659 = vpop.f32.mrb[0].mxu0
        %v3660 = vadd.f32 %v3435, %v3659
        %v3661 = vpop.f32.mrb[0].mxu0
        %3662 = vmatprep.mubr.f32.mxu0 0.0
        %3663 = vmatmul.mubr.f32.gmra.mrb[0].mxu0 %v2358
        %v3664 = vpop.f32.mrb[0].mxu0
        %v3665 = vadd.f32 %v3440, %v3664
        %v3666 = vpop.f32.mrb[0].mxu0
        %3667 = vmatprep.mubr.f32.mxu0 0.0
        %3668 = vmatmul.mubr.f32.gmra.mrb[0].mxu0 %v2360
        %v3669 = vpop.f32.mrb[0].mxu0
        %v3670 = vadd.f32 %v3445, %v3669
        %v3671 = vpop.f32.mrb[0].mxu0
        %3672 = vmatprep.mubr.f32.mxu0 0.0
        %3673 = vmatmul.mubr.f32.gmra.mrb[0].mxu0 %v2363
        %v3674 = vpop.f32.mrb[0].mxu0
        %v3675 = vadd.f32 %v3450, %v3674
        %v3676 = vpop.f32.mrb[0].mxu0
        %3677 = vmatprep.mubr.f32.mxu0 0.0
        %3678 = vmatmul.mubr.f32.gmra.mrb[0].mxu0 %v2365
        %v3679 = vpop.f32.mrb[0].mxu0
        %v3680 = vadd.f32 %v3455, %v3679
        %v3681 = vpop.f32.mrb[0].mxu0
        %3682 = vmatprep.mubr.f32.mxu0 0.0
        %3683 = vmatmul.mubr.f32.gmra.mrb[0].mxu0 %v2368
        %v3684 = vpop.f32.mrb[0].mxu0
        %v3685 = vadd.f32 %v3460, %v3684
        %v3686 = vpop.f32.mrb[0].mxu0
        %3687 = vmatprep.mubr.f32.mxu0 0.0
        %3688 = vmatmul.mubr.f32.gmra.mrb[0].mxu0 %v2370
        %v3689 = vpop.f32.mrb[0].mxu0
        %v3690 = vadd.f32 %v3465, %v3689
        %v3691 = vpop.f32.mrb[0].mxu0
        %3692 = vmatprep.mubr.f32.mxu0 0.0
        %3693 = vmatmul.mubr.f32.gmra.mrb[0].mxu0 %v2415
        %v3694 = vpop.f32.mrb[0].mxu0
        %v3695 = vadd.f32 %v3470, %v3694
        %v3696 = vpop.f32.mrb[0].mxu0
        %3697 = vmatprep.mubr.f32.mxu0 0.0
        %3698 = vmatmul.mubr.f32.gmra.mrb[0].mxu0 %v2417
        %v3699 = vpop.f32.mrb[0].mxu0
        %v3700 = vadd.f32 %v3475, %v3699
        %v3701 = vpop.f32.mrb[0].mxu0
        %3702 = vmatprep.mubr.f32.mxu0 0.0
        %3703 = vmatmul.mubr.f32.gmra.mrb[0].mxu0 %v2432
        %v3704 = vpop.f32.mrb[0].mxu0
        %v3705 = vadd.f32 %v3480, %v3704
        %v3706 = vpop.f32.mrb[0].mxu0
        %3707 = vmatprep.mubr.f32.mxu0 0.0
        %3708 = vmatmul.mubr.f32.gmra.mrb[0].mxu0 %v2434
        %v3709 = vpop.f32.mrb[0].mxu0
        %v3710 = vadd.f32 %v3485, %v3709
        %v3711 = vpop.f32.mrb[0].mxu0
        %3712 = vdwg.mxu0
        %v3713 = vadd.f32 %v3555, %v223
        %v3714 = vadd.f32 %v3560, %v224
        %v3715 = vadd.f32 %v3565, %v225
        %v3716 = vadd.f32 %v3570, %v226
        %v3717 = vadd.f32 %v3575, %v227
        %v3718 = vadd.f32 %v3580, %v228
        %v3719 = vadd.f32 %v3585, %v229
        %v3720 = vadd.f32 %v3590, %v230
        %v3721 = vadd.f32 %v3595, %v231
        %v3722 = vadd.f32 %v3600, %v232
        %v3723 = vadd.f32 %v3605, %v233
        %v3724 = vadd.f32 %v3610, %v234
        %v3725 = vadd.f32 %v3615, %v235
        %v3726 = vadd.f32 %v3620, %v236
        %v3727 = vadd.f32 %v3625, %v237
        %v3728 = vadd.f32 %v3630, %v238
        %v3729 = vadd.f32 %v3635, %v239
        %v3730 = vadd.f32 %v3640, %v240
        %v3731 = vadd.f32 %v3645, %v241
        %v3732 = vadd.f32 %v3650, %v242
        %v3733 = vadd.f32 %v3655, %v243
        %v3734 = vadd.f32 %v3660, %v244
        %v3735 = vadd.f32 %v3665, %v245
        %v3736 = vadd.f32 %v3670, %v246
        %v3737 = vadd.f32 %v3675, %v247
        %v3738 = vadd.f32 %v3680, %v248
        %v3739 = vadd.f32 %v3685, %v249
        %v3740 = vadd.f32 %v3690, %v250
        %v3741 = vadd.f32 %v3695, %v251
        %v3742 = vadd.f32 %v3700, %v252
        %v3743 = vadd.f32 %v3705, %v253
        %v3744 = vadd.f32 %v3710, %v254
        %v3745 = vmax.f32 %v3713, 0.0
        %v3746 = vmax.f32 %v3714, 0.0
        %v3747 = vmax.f32 %v3715, 0.0
        %v3748 = vmax.f32 %v3716, 0.0
        %v3749 = vmax.f32 %v3717, 0.0
        %v3750 = vmax.f32 %v3718, 0.0
        %v3751 = vmax.f32 %v3719, 0.0
        %v3752 = vmax.f32 %v3720, 0.0
        %v3753 = vmax.f32 %v3721, 0.0
        %v3754 = vmax.f32 %v3722, 0.0
        %v3755 = vmax.f32 %v3723, 0.0
        %v3756 = vmax.f32 %v3724, 0.0
        %v3757 = vmax.f32 %v3725, 0.0
        %v3758 = vmax.f32 %v3726, 0.0
        %v3759 = vmax.f32 %v3727, 0.0
        %v3760 = vmax.f32 %v3728, 0.0
        %v3761 = vmax.f32 %v3729, 0.0
        %v3762 = vmax.f32 %v3730, 0.0
        %v3763 = vmax.f32 %v3731, 0.0
        %v3764 = vmax.f32 %v3732, 0.0
        %v3765 = vmax.f32 %v3733, 0.0
        %v3766 = vmax.f32 %v3734, 0.0
        %v3767 = vmax.f32 %v3735, 0.0
        %v3768 = vmax.f32 %v3736, 0.0
        %v3769 = vmax.f32 %v3737, 0.0
        %v3770 = vmax.f32 %v3738, 0.0
        %v3771 = vmax.f32 %v3739, 0.0
        %v3772 = vmax.f32 %v3740, 0.0
        %v3773 = vmax.f32 %v3741, 0.0
        %v3774 = vmax.f32 %v3742, 0.0
        %v3775 = vmax.f32 %v3743, 0.0
        %v3776 = vmax.f32 %v3744, 0.0
        %3777 = vst [vmem:[%s217] sm:$0xff] %v3745
        %3778 = vst [vmem:[%s217 + $0x8] sm:$0xff] %v3746
        %3779 = vst [vmem:[%s217 + $0x10] sm:$0xff] %v3747
        %3780 = vst [vmem:[%s217 + $0x18] sm:$0xff] %v3748
        %3781 = vst [vmem:[%s217 + $0x20] sm:$0xff] %v3749
        %3782 = vst [vmem:[%s217 + $0x28] sm:$0xff] %v3750
        %3783 = vst [vmem:[%s217 + $0x30] sm:$0xff] %v3751
        %3784 = vst [vmem:[%s217 + $0x38] sm:$0xff] %v3752
        %3785 = vst [vmem:[%s217 + $0x40] sm:$0xff] %v3753
        %3786 = vst [vmem:[%s217 + $0x48] sm:$0xff] %v3754
        %3787 = vst [vmem:[%s217 + $0x50] sm:$0xff] %v3755
        %3788 = vst [vmem:[%s217 + $0x58] sm:$0xff] %v3756
        %3789 = vst [vmem:[%s217 + $0x60] sm:$0xff] %v3757
        %3790 = vst [vmem:[%s217 + $0x68] sm:$0xff] %v3758
        %3791 = vst [vmem:[%s217 + $0x70] sm:$0xff] %v3759
        %3792 = vst [vmem:[%s217 + $0x78] sm:$0xff] %v3760
        %3793 = vst [vmem:[%s217 + $0x80] sm:$0xff] %v3761
        %3794 = vst [vmem:[%s217 + $0x88] sm:$0xff] %v3762
        %3795 = vst [vmem:[%s217 + $0x90] sm:$0xff] %v3763
        %3796 = vst [vmem:[%s217 + $0x98] sm:$0xff] %v3764
        %3797 = vst [vmem:[%s217 + $0xa0] sm:$0xff] %v3765
        %3798 = vst [vmem:[%s217 + $0xa8] sm:$0xff] %v3766
        %3799 = vst [vmem:[%s217 + $0xb0] sm:$0xff] %v3767
        %3800 = vst [vmem:[%s217 + $0xb8] sm:$0xff] %v3768
        %3801 = vst [vmem:[%s217 + $0xc0] sm:$0xff] %v3769
        %3802 = vst [vmem:[%s217 + $0xc8] sm:$0xff] %v3770
        %3803 = vst [vmem:[%s217 + $0xd0] sm:$0xff] %v3771
        %3804 = vst [vmem:[%s217 + $0xd8] sm:$0xff] %v3772
        %3805 = vst [vmem:[%s217 + $0xe0] sm:$0xff] %v3773
        %3806 = vst [vmem:[%s217 + $0xe8] sm:$0xff] %v3774
        %3807 = vst [vmem:[%s217 + $0xf0] sm:$0xff] %v3775
        %3808 = vst [vmem:[%s217 + $0xf8] sm:$0xff] %v3776
        %s3809 = sand.u32 %s137, 1
        %s3810 = scalar_lea.sflag [#allocation5], %s3809
        %s3811 = sand.u32 %s137, 1
        %s3812 = smul.addr %s3811, 256
        %s3813 = scalar_lea.vmem [#allocation4], %s3812
        // Predicated region
        $region41: #{residual_block_forward.1} parent=39 // pred_check
          %p3814 = pneg %p147
        $region42: #{residual_block_forward.1} parent=39 // pred_check_branch
          %3816 = sbr.rel (%p3814) target = $region44
        $region43: #{residual_block_forward.1} parent=39 // pred_region
          %s3818 = ssub.s32 4096, 4096
          %3819 = vsyncadd %s3810, %s3818
          %s3820 = smul.addr %s19, 32
          %s3821 = smul.addr %s3820, 128
          %s3822 = scalar_lea.hbm %s5, %s3821
          %s3823 = sshll.u32 %s3813, 4
          %s3824 = int_to_ptr.vmem [resolvable:$true] %s3823
          %3829 = dma.vmem_to_hbm [thread:$0]  %s3824, 4096, %s3822, %s3810, 128, 128, 8
        $region44: #{residual_block_forward.1} parent=39 // pred_fallthru
          _
      $region40: #{residual_block_forward.1} parent=5 // pred_fallthru
        _
      %p3830 = scmp.le.s32.totalorder 2, %s14
      // Predicated region
      $region45: #{residual_block_forward.1} parent=5 // pred_check
        %p3831 = pneg %p3830
      $region46: #{residual_block_forward.1} parent=5 // pred_check_branch
        %3833 = sbr.rel (%p3831) target = $region48
      $region47: #{residual_block_forward.1} parent=5 // pred_region
        %s3834 = ssub.s32 %s14, 2
        // Predicated region
        $region49: #{residual_block_forward.1} parent=47 // pred_check
          %p3835 = pneg %p153
        $region50: #{residual_block_forward.1} parent=47 // pred_check_branch
          %3837 = sbr.rel (%p3835) target = $region52
        $region51: #{residual_block_forward.1} parent=47 // pred_region
          %s3838 = sand.u32 %s138, 1
          %s3839 = scalar_lea.sflag [#allocation5], %s3838
          %s3840 = sand.u32 %s138, 1
          %s3841 = smul.addr %s3840, 256
          %s3842 = scalar_lea.vmem [#allocation4], %s3841
          %3843 = dma.done %s3839, 4096
        $region52: #{residual_block_forward.1} parent=47 // pred_fallthru
          _
      $region48: #{residual_block_forward.1} parent=5 // pred_fallthru
        _
    $region6: #{residual_block_forward.1} parent=1 // loop_footer
      %s18 = sadd.s32 1, %s14
    $region7: #{residual_block_forward.1} parent=1 // loop_footer_branch
      %13 = sbr.rel target = $region3
    $region8: #{residual_block_forward.1} parent=1 // loop_exit
      _
    %3844 = vsyncpa [#allocation5], 1
    %s3845 = scalar_lea.sflag [#allocation5], 1
    %3846 = vsyncpa %s3845, 1

</llo_original>
